<compile_context>
chip_gen: v7x
topology: tpu7x:2x2x1
jax: 0.10.0
libtpu: 0.0.40
codegen_flags: <defaults>
</compile_context>

<pallas_src>
import functools

import numpy as np
import jax
import jax.numpy as jnp
from jax.experimental import pallas as pl
from jax.experimental.pallas import tpu as pltpu


# ----------------------------------------------------------------------------- #
# Bicubic interpolation weight matrices (Keys cubic, a = -0.5, border-clamped).
# ----------------------------------------------------------------------------- #
def _cubic_kernel(t, a=-0.5):
    t = np.abs(t)
    return np.where(
        t <= 1.0,
        (a + 2.0) * t ** 3 - (a + 3.0) * t ** 2 + 1.0,
        np.where(t < 2.0, a * t ** 3 - 5.0 * a * t ** 2 + 8.0 * a * t - 4.0 * a, 0.0),
    )


@functools.lru_cache(maxsize=None)
def bicubic_weight_matrix(out_size: int, in_size: int) -> np.ndarray:
    """Dense (out_size, in_size) 1-D bicubic resampling matrix (deterministic)."""
    W = np.zeros((out_size, in_size), dtype=np.float64)
    scale = in_size / out_size
    for i in range(out_size):
        center = (i + 0.5) * scale - 0.5
        base = int(np.floor(center))
        idx = np.arange(base - 1, base + 3)
        w = _cubic_kernel(center - idx).astype(np.float64)
        w = w / w.sum()
        idx = np.clip(idx, 0, in_size - 1)
        for j, wk in zip(idx, w):
            W[i, j] += wk
    return W.astype(np.float32)


@functools.lru_cache(maxsize=None)
def _resize_constants(C: int, H_in: int, W_in: int, out_size: int, pad: int):
    """Host-built, cached device constants:
       wh_scaled : (OUT, H_in)      row-interp matrix, pre-scaled by 2/255
       ww_blk    : (C*W_in, C*pad)  block-diagonal column-interp matrix, each
                                    channel block zero-padded to `pad` lanes
    """
    wh = bicubic_weight_matrix(out_size, H_in) * np.float32(2.0 / 255.0)
    ww = bicubic_weight_matrix(out_size, W_in)                      # (OUT, W_in)
    ww_blk = np.zeros((C * W_in, C * pad), dtype=np.float32)
    for c in range(C):
        ww_blk[c * W_in:(c + 1) * W_in, c * pad:c * pad + out_size] = ww.T
    return jnp.asarray(wh), jnp.asarray(ww_blk)


# ----------------------------------------------------------------------------- #
# Pallas kernel: fused all-channel bicubic resize (2 MXU matmuls) + normalize.
#   img_ref   : (H_in, C*W_in)   channels interleaved along lanes
#   wwblk_ref : (C*W_in, C*PAD)  block-diagonal column interp (lane-padded)
#   wh_ref    : (OUT, H_in)      row interp, carries the 2/255 ToTensor scale
#   out_ref   : (OUT, C*PAD)     lane-aligned output slab for batch element b
# ----------------------------------------------------------------------------- #
def _resize_norm_kernel(img_ref, wwblk_ref, wh_ref, out_ref):
    # Stage 1: column resize of all channels in one MXU pass.
    tmp = jnp.dot(
        img_ref[...], wwblk_ref[...],
        preferred_element_type=jnp.float32,
        precision=jax.lax.Precision.HIGHEST,
    )
    # Stage 2: row resize of all channels in one MXU pass (scale folded in wh).
    res = jnp.dot(
        wh_ref[...], tmp,
        preferred_element_type=jnp.float32,
        precision=jax.lax.Precision.HIGHEST,
    )
    # Normalize(mean=0.5, std=0.5) after ToTensor: (x/255 - 0.5)/0.5 = x*2/255 - 1
    out_ref[...] = res - jnp.float32(1.0)


def face_shifter_target_preprocess(target_image: jax.Array, out_size: int, batch: int):
    """target_image: (C, H_in, W_in) float32 pixel values in [0, 255] (pre-ToTensor)."""
    C, H_in, W_in = target_image.shape
    PAD = -(-out_size // 128) * 128                      # lane-aligned channel stride

    wh_scaled, ww_blk = _resize_constants(C, H_in, W_in, out_size, PAD)

    # Channel-interleaved along lanes: row h = [ch0 row h | ch1 row h | ch2 row h].
    img_lanes = jnp.transpose(target_image, (1, 0, 2)).reshape(H_in, C * W_in)

    cost = pl.CostEstimate(
        flops=2 * batch * (H_in * (C * W_in) * (C * PAD) + out_size * H_in * (C * PAD)),
        transcendentals=0,
        bytes_accessed=4 * (H_in * C * W_in + C * W_in * C * PAD + out_size * H_in
                            + batch * out_size * C * PAD),
    )

    out_slab = pl.pallas_call(
        _resize_norm_kernel,
        out_shape=jax.ShapeDtypeStruct((batch, out_size, C * PAD), jnp.float32),
        grid=(batch,),
        in_specs=[
            pl.BlockSpec((H_in, C * W_in), lambda b: (0, 0)),       # same block ∀ b
            pl.BlockSpec((C * W_in, C * PAD), lambda b: (0, 0)),
            pl.BlockSpec((out_size, H_in), lambda b: (0, 0)),
        ],
        out_specs=pl.BlockSpec((None, out_size, C * PAD), lambda b: (b, 0, 0)),
        compiler_params=pltpu.CompilerParams(dimension_semantics=("parallel",)),
        cost_estimate=cost,
    )(img_lanes, ww_blk, wh_scaled)

    # Un-pad and split channels: (B, OUT, C*PAD) -> (B, C, OUT, OUT).
    out = out_slab.reshape(batch, out_size, C, PAD)[..., :out_size]
    return jnp.transpose(out, (0, 2, 1, 3))


def face_shifter_forward(x: jax.Array, target_image: jax.Array, out_size: int = 112):
    """Mirrors FaceShifter.forward: preprocess target, then (externally) face-swap."""
    target_image_tensor = face_shifter_target_preprocess(target_image, out_size, x.shape[0])
    # TODO(synk): external `face_shifter` GAN (AEI-Net) is not defined in the module;
    # returning the preprocessed target tensor (the implementable part of forward).
    x_swap = target_image_tensor
    return x_swap


# ----------------------------------------------------------------------------- #
# Main
# ----------------------------------------------------------------------------- #
if __name__ == "__main__":
    key = jax.random.PRNGKey(0)
    kx, kt = jax.random.split(key)

    # x: batch of source images (only batch size is consumed by this module's compute).
    x = jax.random.normal(kx, (2, 3, 16, 16), dtype=jnp.float32)

    # Simulated PIL target image as CHW uint8-valued pixels.
    target_image = jax.random.randint(kt, (3, 24, 24), 0, 256, dtype=jnp.int32).astype(jnp.float32)

    OUT = 112  # transforms.Resize(112)
    out = face_shifter_forward(x, target_image, out_size=OUT)
    out = jax.block_until_ready(out)

    # Host float64 reference of the same preprocessing (sanity check).
    t_np = np.asarray(target_image, dtype=np.float64)
    wh_np = bicubic_weight_matrix(OUT, t_np.shape[1]).astype(np.float64)
    ww_np = bicubic_weight_matrix(OUT, t_np.shape[2]).astype(np.float64)
    ref = np.einsum("oh,chw,pw->cop", wh_np, t_np, ww_np) * (2.0 / 255.0) - 1.0
    ref = np.broadcast_to(ref[None], (x.shape[0], 3, OUT, OUT))

    assert out.shape == (x.shape[0], 3, OUT, OUT), out.shape
    assert out.dtype == jnp.float32
    max_err = float(np.max(np.abs(np.asarray(out) - ref)))
    assert max_err < 1e-3, max_err
    print("KERNEL_OK")
</pallas_src>

<mosaic_0001>
module attributes {stable_mosaic.version = 11 : i64} {
  func.func @_resize_norm_kernel(%arg0: i32, %arg1: memref<24x72xf32, #tpu.memory_space<vmem>>, %arg2: memref<72x384xf32, #tpu.memory_space<vmem>>, %arg3: memref<112x24xf32, #tpu.memory_space<vmem>>, %arg4: memref<1x112x384xf32, #tpu.memory_space<vmem>>) attributes {dimension_semantics = [#tpu.dimension_semantics<parallel>], iteration_bounds = array<i64: 2>, scalar_prefetch = 0 : i64, scratch_operands = 0 : i64, tpu.core_type = #tpu.core_type<tc>, window_params = [{pipeline_mode = #tpu.pipeline_mode<synchronous>, transform_indices = @transform_0, window_bounds = array<i64: 24, 72>}, {pipeline_mode = #tpu.pipeline_mode<synchronous>, transform_indices = @transform_1, window_bounds = array<i64: 72, 384>}, {pipeline_mode = #tpu.pipeline_mode<synchronous>, transform_indices = @transform_2, window_bounds = array<i64: 112, 24>}, {transform_indices = @transform_3, window_bounds = array<i64: 1, 112, 384>}]} {
    %c0 = arith.constant 0 : index
    %c0_0 = arith.constant 0 : index
    %0 = vector.load %arg1[%c0, %c0_0] : memref<24x72xf32, #tpu.memory_space<vmem>>, vector<24x72xf32>
    %c0_1 = arith.constant 0 : index
    %c0_2 = arith.constant 0 : index
    %1 = vector.load %arg2[%c0_1, %c0_2] : memref<72x384xf32, #tpu.memory_space<vmem>>, vector<72x384xf32>
    %cst = arith.constant dense<0.000000e+00> : vector<24x384xf32>
    %2 = tpu.matmul %0, %1, %cst {dimension_numbers = #tpu.dot_dimension_numbers<[1], [0], [0], [1], [0, 0, 1, 1], [], []>, precision = #tpu.contract_precision<fp32>} : vector<24x72xf32>, vector<72x384xf32>, vector<24x384xf32> -> vector<24x384xf32>
    %c0_3 = arith.constant 0 : index
    %c0_4 = arith.constant 0 : index
    %3 = vector.load %arg3[%c0_3, %c0_4] : memref<112x24xf32, #tpu.memory_space<vmem>>, vector<112x24xf32>
    %cst_5 = arith.constant dense<0.000000e+00> : vector<112x384xf32>
    %4 = tpu.matmul %3, %2, %cst_5 {dimension_numbers = #tpu.dot_dimension_numbers<[1], [0], [0], [1], [0, 0, 1, 1], [], []>, precision = #tpu.contract_precision<fp32>} : vector<112x24xf32>, vector<24x384xf32>, vector<112x384xf32> -> vector<112x384xf32>
    %cst_6 = arith.constant 1.000000e+00 : f32
    %5 = vector.broadcast %cst_6 : f32 to vector<112x384xf32>
    %6 = arith.subf %4, %5 : vector<112x384xf32>
    %c0_7 = arith.constant 0 : index
    %c0_8 = arith.constant 0 : index
    %c0_9 = arith.constant 0 : index
    %7 = vector.load %arg4[%c0_7, %c0_8, %c0_9] : memref<1x112x384xf32, #tpu.memory_space<vmem>>, vector<1x112x384xf32>
    %8 = vector.shape_cast %7 : vector<1x112x384xf32> to vector<112x384xf32>
    %9 = vector.shape_cast %6 : vector<112x384xf32> to vector<1x112x384xf32>
    tpu.vector_store %arg4[%c0_7, %c0_8, %c0_9], %9 {strides = array<i32>} : memref<1x112x384xf32, #tpu.memory_space<vmem>>, vector<1x112x384xf32>,
    return
  }
  func.func @transform_0(%arg0: i32) -> (i32, i32) {
    %c0_i32 = arith.constant 0 : i32
    %c0_i32_0 = arith.constant 0 : i32
    %c0_i32_1 = arith.constant 0 : i32
    return %c0_i32, %c0_i32_0 : i32, i32
  }
  func.func @transform_1(%arg0: i32) -> (i32, i32) {
    %c0_i32 = arith.constant 0 : i32
    %c0_i32_0 = arith.constant 0 : i32
    %c0_i32_1 = arith.constant 0 : i32
    return %c0_i32, %c0_i32_0 : i32, i32
  }
  func.func @transform_2(%arg0: i32) -> (i32, i32) {
    %c0_i32 = arith.constant 0 : i32
    %c0_i32_0 = arith.constant 0 : i32
    %c0_i32_1 = arith.constant 0 : i32
    return %c0_i32, %c0_i32_0 : i32, i32
  }
  func.func @transform_3(%arg0: i32) -> (i32, i32, i32) {
    %c0_i32 = arith.constant 0 : i32
    %c0_i32_0 = arith.constant 0 : i32
    %c0_i32_1 = arith.constant 0 : i32
    return %arg0, %c0_i32, %c0_i32_0 : i32, i32, i32
  }
}

</mosaic_0001>

<llo_original>
// kernel: tpu_custom_call.1
$region0: #{tpu_custom_call.1}
  #allocation0 [shape = 'u32[]', space=smem, size = 0x4, offset = 0x4, fixed_abs, tag = 'smem constant byte address 0x4 - core index']
  #allocation1 [shape = 'u32[144,128]{1,0:T(1,128)}', space=vmem, size = 0x12000, scoped, tag = 'internal scratch']
  %s0 = inlined_call_operand.vmem [shape: f32[24,72], index: 0, kind: input, shape index: {}]
  %s1 = inlined_call_operand.hbm [shape: f32[72,384], index: 1, kind: input, shape index: {}]
  %s2 = inlined_call_operand.vmem [shape: f32[112,24], index: 2, kind: input, shape index: {}]
  %s3 = inlined_call_operand.hbm [shape: f32[2,112,384], index: 3, kind: output, shape index: {}]
  %s4 = sld [smem:[#allocation0]]
  $region49: #{tpu_custom_call.1} parent=0
    _
  %s6 = ssub.s32 1, %s4
  %s7 = scalar_select 0, %s6, %s4
  $region1: #{tpu_custom_call.1} parent=0
    #allocation2 [shape = 'u8[110592]{0}', space=vmem, size = 0x1b000, scoped, tag = 'input window, operand 1, single buffered']
    #allocation3 [shape = 's32[2]{0}', space=sflag, size = 0x8, scoped, tag = 'scoped memory for tpu_custom_call.1']
    #allocation4 [shape = 's32[2]{0}', space=sflag, size = 0x8, scoped, tag = 'scoped memory for tpu_custom_call.1']
    #allocation5 [shape = 'u8[344064]{0}', space=vmem, size = 0x54000, scoped, tag = 'output window, operand 0']
    %8 = vsyncpa [#allocation3], 0
    %9 = vsyncpa [#allocation4], 0
    %s10 = scalar_lea.sflag [#allocation4], 1
    %11 = vsyncpa %s10, 0
    loop: start=0, step=1, limit=4
    $region2: #{tpu_custom_call.1} parent=1 // loop_pre_header
      _
    $region3: #{tpu_custom_call.1} parent=1 // loop_header
      %s13 = sphi 0, %s17
      %p14 = scmp.ge.s32.totalorder %s13, 4
      %s21 = sphi 0, %s21
      %s23 = sphi 0, %s21
      %s24 = sphi 0, %s23
      %s38 = sphi 0, %s24
      %s42 = sphi 0, %s42
      %s44 = sphi 0, %s42
      %s45 = sphi 0, %s44
      %s59 = sphi 0, %s45
      %s63 = sphi 0, %s63
      %s65 = sphi 0, %s63
      %s66 = sphi 0, %s65
      %s80 = sphi 0, %s66
      %s86 = sphi 0, %s88
      %s89 = sphi 0, %s86
      %s90 = sphi 0, %s89
      %s106 = sphi 0, %s90
    $region4: #{tpu_custom_call.1} parent=1 // loop_header_branch
      %16 = sbr.rel (%p14) target = $region8
    $region5: #{tpu_custom_call.1} parent=1 // loop_body
      %s18 = ssub.s32 %s13, 1
      %s19 = ssub.s32 %s13, 2
      %s20 = sadd.s32 %s13, 1
      %s22 = sadd.s32 %s21, 1
      %p25 = scmp.eq.s32.totalorder %s13, 1
      %p26 = scmp.ne.s32.totalorder %s21, %s23
      %p27 = scmp.eq.s32.totalorder %s13, 0
      %p28 = por %p26, %p27
      %p29 = scmp.ne.s32.totalorder %s21, %s23
      %p30 = scmp.eq.s32.totalorder %s18, 1
      %p31 = por %p29, %p30
      %p32 = scmp.ne.s32.totalorder %s23, %s24
      %p33 = scmp.eq.s32.totalorder %s18, 0
      %p34 = por %p32, %p33
      %p35 = scmp.ne.s32.totalorder %s23, %s24
      %p36 = scmp.eq.s32.totalorder %s19, 1
      %p37 = por %p35, %p36
      %p39 = scmp.ne.s32.totalorder %s24, %s38
      %p40 = scmp.eq.s32.totalorder %s19, 0
      %p41 = por %p39, %p40
      %s43 = sadd.s32 %s42, 1
      %p46 = scmp.eq.s32.totalorder %s13, 1
      %p47 = scmp.ne.s32.totalorder %s42, %s44
      %p48 = scmp.eq.s32.totalorder %s13, 0
      %p49 = por %p47, %p48
      %p50 = scmp.ne.s32.totalorder %s42, %s44
      %p51 = scmp.eq.s32.totalorder %s18, 1
      %p52 = por %p50, %p51
      %p53 = scmp.ne.s32.totalorder %s44, %s45
      %p54 = scmp.eq.s32.totalorder %s18, 0
      %p55 = por %p53, %p54
      %p56 = scmp.ne.s32.totalorder %s44, %s45
      %p57 = scmp.eq.s32.totalorder %s19, 1
      %p58 = por %p56, %p57
      %p60 = scmp.ne.s32.totalorder %s45, %s59
      %p61 = scmp.eq.s32.totalorder %s19, 0
      %p62 = por %p60, %p61
      %s64 = sadd.s32 %s63, 1
      %p67 = scmp.eq.s32.totalorder %s13, 1
      %p68 = scmp.ne.s32.totalorder %s63, %s65
      %p69 = scmp.eq.s32.totalorder %s13, 0
      %p70 = por %p68, %p69
      %p71 = scmp.ne.s32.totalorder %s63, %s65
      %p72 = scmp.eq.s32.totalorder %s18, 1
      %p73 = por %p71, %p72
      %p74 = scmp.ne.s32.totalorder %s65, %s66
      %p75 = scmp.eq.s32.totalorder %s18, 0
      %p76 = por %p74, %p75
      %p77 = scmp.ne.s32.totalorder %s65, %s66
      %p78 = scmp.eq.s32.totalorder %s19, 1
      %p79 = por %p77, %p78
      %p81 = scmp.ne.s32.totalorder %s66, %s80
      %p82 = scmp.eq.s32.totalorder %s19, 0
      %p83 = por %p81, %p82
      %s84 = ssub.s32 %s13, %s20
      %p85 = scmp.eq.s32.totalorder %s84, 0
      %s87 = sadd.s32 %s86, 1
      %s88 = scalar_select %p85, %s86, %s87
      %p91 = pneg %p85
      %p92 = scmp.eq.s32.totalorder %s13, 1
      %p93 = por %p91, %p92
      %p94 = scmp.ne.s32.totalorder %s86, %s89
      %p95 = scmp.eq.s32.totalorder %s13, 0
      %p96 = por %p94, %p95
      %p97 = scmp.ne.s32.totalorder %s86, %s89
      %p98 = scmp.eq.s32.totalorder %s18, 1
      %p99 = por %p97, %p98
      %p100 = scmp.ne.s32.totalorder %s89, %s90
      %p101 = scmp.eq.s32.totalorder %s18, 0
      %p102 = por %p100, %p101
      %p103 = scmp.ne.s32.totalorder %s89, %s90
      %p104 = scmp.eq.s32.totalorder %s19, 1
      %p105 = por %p103, %p104
      %p107 = scmp.ne.s32.totalorder %s90, %s106
      %p108 = scmp.eq.s32.totalorder %s19, 0
      %p109 = por %p107, %p108
      %p110 = scmp.le.s32.totalorder 1, %s13
      %p111 = scmp.lt.s32.totalorder %s13, 3
      %p112 = pnand %p110, %p111
      %p113 = pneg %p112
      // Predicated region
      $region9: #{tpu_custom_call.1} parent=5 // pred_check
        _
      $region10: #{tpu_custom_call.1} parent=5 // pred_check_branch
        %115 = sbr.rel (%p112) target = $region12
      $region11: #{tpu_custom_call.1} parent=5 // pred_region
        %s116 = ssub.s32 %s13, 1
        // Predicated region
        $region13: #{tpu_custom_call.1} parent=11 // pred_check
          %p117 = pneg %p34
        $region14: #{tpu_custom_call.1} parent=11 // pred_check_branch
          %119 = sbr.rel (%p117) target = $region16
        $region15: #{tpu_custom_call.1} parent=11 // pred_region
          _
        $region16: #{tpu_custom_call.1} parent=11 // pred_fallthru
          _
        // Predicated region
        $region17: #{tpu_custom_call.1} parent=11 // pred_check
          %p120 = pneg %p55
        $region18: #{tpu_custom_call.1} parent=11 // pred_check_branch
          %122 = sbr.rel (%p120) target = $region20
        $region19: #{tpu_custom_call.1} parent=11 // pred_region
          %s124 = ssub.s32 3456, 3456
          %125 = vsyncadd [#allocation3], %s124
          %s126 = sshll.u32 [#allocation2], 4
          %s127 = int_to_ptr.vmem [resolvable:$true] %s126
          %132 = dma.hbm_to_vmem [thread:$0]  %s1, 3456, %s127, [#allocation3], 384, 384, 24
        $region20: #{tpu_custom_call.1} parent=11 // pred_fallthru
          _
        // Predicated region
        $region21: #{tpu_custom_call.1} parent=11 // pred_check
          %p133 = pneg %p76
        $region22: #{tpu_custom_call.1} parent=11 // pred_check_branch
          %135 = sbr.rel (%p133) target = $region24
        $region23: #{tpu_custom_call.1} parent=11 // pred_region
          _
        $region24: #{tpu_custom_call.1} parent=11 // pred_fallthru
          _
      $region12: #{tpu_custom_call.1} parent=5 // pred_fallthru
        _
      %p136 = scmp.lt.s32.totalorder %s13, 2
      // Predicated region
      $region25: #{tpu_custom_call.1} parent=5 // pred_check
        %p137 = pneg %p136
      $region26: #{tpu_custom_call.1} parent=5 // pred_check_branch
        %139 = sbr.rel (%p137) target = $region28
      $region27: #{tpu_custom_call.1} parent=5 // pred_region
        _
      $region28: #{tpu_custom_call.1} parent=5 // pred_fallthru
        _
      %p140 = scmp.le.s32.totalorder 1, %s13
      %p141 = scmp.lt.s32.totalorder %s13, 3
      %p142 = pnand %p140, %p141
      %p143 = pneg %p142
      // Predicated region
      $region29: #{tpu_custom_call.1} parent=5 // pred_check
        _
      $region30: #{tpu_custom_call.1} parent=5 // pred_check_branch
        %145 = sbr.rel (%p142) target = $region32
      $region31: #{tpu_custom_call.1} parent=5 // pred_region
        %s146 = ssub.s32 %s13, 1
        // Predicated region
        $region33: #{tpu_custom_call.1} parent=31 // pred_check
          %p147 = pneg %p55
        $region34: #{tpu_custom_call.1} parent=31 // pred_check_branch
          %149 = sbr.rel (%p147) target = $region36
        $region35: #{tpu_custom_call.1} parent=31 // pred_region
          %150 = dma.done [#allocation3], 3456
        $region36: #{tpu_custom_call.1} parent=31 // pred_fallthru
          _
        %p151 = pneg %p34
        %p152 = pneg %p31
        %p153 = pneg %p55
        %p154 = pneg %p52
        %p155 = pneg %p76
        %p156 = pneg %p73
        %p157 = pneg %p102
        %p158 = pneg %p99
        %s159 = sand.u32 %s89, 1
        %s160 = scalar_lea.sflag [#allocation4], %s159
        %s161 = sand.u32 %s89, 1
        %s162 = smul.addr %s161, 336
        %s163 = scalar_lea.vmem [#allocation5], %s162
        %v164 = vld [vmem:[%s0] sm:$0xff]
        %v165 = vld [vmem:[%s0 + $0x8] sm:$0xff]
        %v166 = vld [vmem:[%s0 + $0x10] sm:$0xff]
        %v167 = vld [vmem:[#allocation2] sm:$0xff]
        %v168 = vld [vmem:[#allocation2 + $0x8] sm:$0xff]
        %v169 = vld [vmem:[#allocation2 + $0x10] sm:$0xff]
        %v170 = vld [vmem:[#allocation2 + $0x18] sm:$0xff]
        %v171 = vld [vmem:[#allocation2 + $0x20] sm:$0xff]
        %v172 = vld [vmem:[#allocation2 + $0x28] sm:$0xff]
        %v173 = vld [vmem:[#allocation2 + $0x30] sm:$0xff]
        %v174 = vld [vmem:[#allocation2 + $0x38] sm:$0xff]
        %v175 = vld [vmem:[#allocation2 + $0x40] sm:$0xff]
        %v176 = vld [vmem:[#allocation2 + $0x48] sm:$0xff]
        %v177 = vld [vmem:[#allocation2 + $0x50] sm:$0xff]
        %v178 = vld [vmem:[#allocation2 + $0x58] sm:$0xff]
        %v179 = vld [vmem:[#allocation2 + $0x60] sm:$0xff]
        %v180 = vld [vmem:[#allocation2 + $0x68] sm:$0xff]
        %v181 = vld [vmem:[#allocation2 + $0x70] sm:$0xff]
        %v182 = vld [vmem:[#allocation2 + $0x78] sm:$0xff]
        %v183 = vld [vmem:[#allocation2 + $0x80] sm:$0xff]
        %v184 = vld [vmem:[#allocation2 + $0x88] sm:$0xff]
        %v185 = vld [vmem:[#allocation2 + $0x90] sm:$0xff]
        %v186 = vld [vmem:[#allocation2 + $0x98] sm:$0xff]
        %v187 = vld [vmem:[#allocation2 + $0xa0] sm:$0xff]
        %v188 = vld [vmem:[#allocation2 + $0xa8] sm:$0xff]
        %v189 = vld [vmem:[#allocation2 + $0xb0] sm:$0xff]
        %v190 = vld [vmem:[#allocation2 + $0xb8] sm:$0xff]
        %v191 = vld [vmem:[#allocation2 + $0xc0] sm:$0xff]
        %v192 = vld [vmem:[#allocation2 + $0xc8] sm:$0xff]
        %v193 = vld [vmem:[#allocation2 + $0xd0] sm:$0xff]
        %vm194 = vcmask 588800
        %v196 = vsel %vm194, %v164, 0
        %v199 = vsel %vm194, %v165, 0
        %v202 = vsel %vm194, %v166, 0
        %v204 = vand.u32 %v168, 4294901760
        %205 = vmatprep.subr.mxu0 %v204
        %v206 = vand.u32 %v167, 4294901760
        %207 = vmatpush1.msra.mxu0 %v206
        %v208 = vand.u32 %v171, 4294901760
        %209 = vmatprep.subr.mxu0 %v208
        %v210 = vand.u32 %v170, 4294901760
        %211 = vmatpush1.msra.mxu0 %v210
        %v212 = vand.u32 %v174, 4294901760
        %213 = vmatprep.subr.mxu0 %v212
        %v214 = vand.u32 %v173, 4294901760
        %215 = vmatpush1.msra.mxu0 %v214
        %v216 = vand.u32 %v177, 4294901760
        %217 = vmatprep.subr.mxu0 %v216
        %v218 = vand.u32 %v176, 4294901760
        %219 = vmatpush1.msra.mxu0 %v218
        %v220 = vand.u32 %v180, 4294901760
        %221 = vmatprep.subr.mxu0 %v220
        %v222 = vand.u32 %v179, 4294901760
        %223 = vmatpush1.msra.mxu0 %v222
        %v224 = vand.u32 %v183, 4294901760
        %225 = vmatprep.subr.mxu0 %v224
        %v226 = vand.u32 %v182, 4294901760
        %227 = vmatpush1.msra.mxu0 %v226
        %v228 = vand.u32 %v186, 4294901760
        %229 = vmatprep.subr.mxu0 %v228
        %v230 = vand.u32 %v185, 4294901760
        %231 = vmatpush1.msra.mxu0 %v230
        %v232 = vand.u32 %v189, 4294901760
        %233 = vmatprep.subr.mxu0 %v232
        %v234 = vand.u32 %v188, 4294901760
        %235 = vmatpush1.msra.mxu0 %v234
        %v236 = vand.u32 %v192, 4294901760
        %237 = vmatprep.subr.mxu0 %v236
        %v238 = vand.u32 %v191, 4294901760
        %239 = vmatpush1.msra.mxu0 %v238
        %240 = vmatprep.subr.mxu0 0.0
        %241 = vmatpush1.msra.mxu0 0.0
        %242 = vmatprep.subr.mxu0 0.0
        %243 = vmatpush1.msra.mxu0 0.0
        %244 = vmatprep.subr.mxu0 0.0
        %245 = vmatpush1.msra.mxu0 0.0
        %246 = vmatprep.subr.mxu0 0.0
        %247 = vmatpush1.msra.mxu0 0.0
        %248 = vmatprep.subr.mxu0 0.0
        %249 = vmatpush1.msra.mxu0 0.0
        %250 = vmatprep.subr.mxu0 0.0
        %251 = vmatpush1.msra.mxu0 0.0
        %252 = vmatprep.subr.mxu0 0.0
        %253 = vmatpush1.msra.mxu0 0.0
        %254 = vmatprep.subr.mxu0 0.0
        %255 = vmatpush1.msra.mxu0 0.0
        %256 = vmatprep.subr.mxu0 0.0
        %257 = vmatpush1.msra.mxu0 0.0
        %258 = vmatprep.subr.mxu0 0.0
        %259 = vmatpush1.msra.mxu0 0.0
        %260 = vmatprep.subr.mxu0 0.0
        %261 = vmatpush1.msra.mxu0 0.0
        %262 = vmatprep.subr.mxu0 0.0
        %263 = vmatpush1.msra.mxu0 0.0
        %264 = vmatprep.subr.mxu0 0.0
        %265 = vmatpush1.msra.mxu0 0.0
        %266 = vmatprep.subr.mxu0 0.0
        %267 = vmatpush1.msra.mxu0 0.0
        %268 = vmatprep.subr.mxu0 0.0
        %269 = vmatpush1.msra.mxu0 0.0
        %270 = vmatprep.subr.mxu0 0.0
        %271 = vmatpush1.msra.mxu0 0.0
        %272 = vmatprep.subr.mxu0 0.0
        %273 = vmatpush1.msra.mxu0 0.0
        %274 = vmatprep.subr.mxu0 0.0
        %275 = vmatpush1.msra.mxu0 0.0
        %276 = vmatprep.subr.mxu0 0.0
        %277 = vmatpush1.msra.mxu0 0.0
        %278 = vmatprep.subr.mxu0 0.0
        %279 = vmatpush1.msra.mxu0 0.0
        %280 = vmatprep.subr.mxu0 0.0
        %281 = vmatpush1.msra.mxu0 0.0
        %282 = vmatprep.subr.mxu0 0.0
        %283 = vmatpush1.msra.mxu0 0.0
        %284 = vmatprep.subr.mxu0 0.0
        %285 = vmatpush1.msra.mxu0 0.0
        %286 = vmatprep.mubr.f32.mxu0 0.0
        %v287 = vand.u32 %v196, 4294901760
        %v288 = vsub.f32 %v196, %v287
        %v289 = vand.u32 %v288, 4294901760
        %v290 = vsub.f32 %v288, %v289
        %v291 = vand.u32 %v290, 4294901760
        %292 = vmatmul.mubr.f32.gmra.mrb[0].mxu0 %v291
        %v293 = vpop.f32.mrb[0].mxu0
        %v294 = vadd.f32 0.0, %v293
        %v295 = vpop.f32.mrb[0].mxu0
        %v296 = vadd.f32 0.0, %v295
        %297 = vmatprep.mubr.f32.mxu0 0.0
        %v298 = vand.u32 %v199, 4294901760
        %v299 = vsub.f32 %v199, %v298
        %v300 = vand.u32 %v299, 4294901760
        %v301 = vsub.f32 %v299, %v300
        %v302 = vand.u32 %v301, 4294901760
        %303 = vmatmul.mubr.f32.gmra.mrb[0].mxu0 %v302
        %v304 = vpop.f32.mrb[0].mxu0
        %v305 = vadd.f32 0.0, %v304
        %v306 = vpop.f32.mrb[0].mxu0
        %v307 = vadd.f32 0.0, %v306
        %308 = vmatprep.mubr.f32.mxu0 0.0
        %v309 = vand.u32 %v202, 4294901760
        %v310 = vsub.f32 %v202, %v309
        %v311 = vand.u32 %v310, 4294901760
        %v312 = vsub.f32 %v310, %v311
        %v313 = vand.u32 %v312, 4294901760
        %314 = vmatmul.mubr.f32.gmra.mrb[0].mxu0 %v313
        %v315 = vpop.f32.mrb[0].mxu0
        %v316 = vadd.f32 0.0, %v315
        %v317 = vpop.f32.mrb[0].mxu0
        %v318 = vadd.f32 0.0, %v317
        %319 = vdwg.mxu0
        %v320 = vand.u32 %v168, 4294901760
        %v321 = vsub.f32 %v168, %v320
        %v322 = vand.u32 %v321, 4294901760
        %v323 = vsub.f32 %v321, %v322
        %v324 = vand.u32 %v323, 4294901760
        %325 = vmatprep.subr.mxu0 %v324
        %v326 = vand.u32 %v167, 4294901760
        %v327 = vsub.f32 %v167, %v326
        %v328 = vand.u32 %v327, 4294901760
        %v329 = vsub.f32 %v327, %v328
        %v330 = vand.u32 %v329, 4294901760
        %331 = vmatpush1.msra.mxu0 %v330
        %v332 = vand.u32 %v171, 4294901760
        %v333 = vsub.f32 %v171, %v332
        %v334 = vand.u32 %v333, 4294901760
        %v335 = vsub.f32 %v333, %v334
        %v336 = vand.u32 %v335, 4294901760
        %337 = vmatprep.subr.mxu0 %v336
        %v338 = vand.u32 %v170, 4294901760
        %v339 = vsub.f32 %v170, %v338
        %v340 = vand.u32 %v339, 4294901760
        %v341 = vsub.f32 %v339, %v340
        %v342 = vand.u32 %v341, 4294901760
        %343 = vmatpush1.msra.mxu0 %v342
        %v344 = vand.u32 %v174, 4294901760
        %v345 = vsub.f32 %v174, %v344
        %v346 = vand.u32 %v345, 4294901760
        %v347 = vsub.f32 %v345, %v346
        %v348 = vand.u32 %v347, 4294901760
        %349 = vmatprep.subr.mxu0 %v348
        %v350 = vand.u32 %v173, 4294901760
        %v351 = vsub.f32 %v173, %v350
        %v352 = vand.u32 %v351, 4294901760
        %v353 = vsub.f32 %v351, %v352
        %v354 = vand.u32 %v353, 4294901760
        %355 = vmatpush1.msra.mxu0 %v354
        %v356 = vand.u32 %v177, 4294901760
        %v357 = vsub.f32 %v177, %v356
        %v358 = vand.u32 %v357, 4294901760
        %v359 = vsub.f32 %v357, %v358
        %v360 = vand.u32 %v359, 4294901760
        %361 = vmatprep.subr.mxu0 %v360
        %v362 = vand.u32 %v176, 4294901760
        %v363 = vsub.f32 %v176, %v362
        %v364 = vand.u32 %v363, 4294901760
        %v365 = vsub.f32 %v363, %v364
        %v366 = vand.u32 %v365, 4294901760
        %367 = vmatpush1.msra.mxu0 %v366
        %v368 = vand.u32 %v180, 4294901760
        %v369 = vsub.f32 %v180, %v368
        %v370 = vand.u32 %v369, 4294901760
        %v371 = vsub.f32 %v369, %v370
        %v372 = vand.u32 %v371, 4294901760
        %373 = vmatprep.subr.mxu0 %v372
        %v374 = vand.u32 %v179, 4294901760
        %v375 = vsub.f32 %v179, %v374
        %v376 = vand.u32 %v375, 4294901760
        %v377 = vsub.f32 %v375, %v376
        %v378 = vand.u32 %v377, 4294901760
        %379 = vmatpush1.msra.mxu0 %v378
        %v380 = vand.u32 %v183, 4294901760
        %v381 = vsub.f32 %v183, %v380
        %v382 = vand.u32 %v381, 4294901760
        %v383 = vsub.f32 %v381, %v382
        %v384 = vand.u32 %v383, 4294901760
        %385 = vmatprep.subr.mxu0 %v384
        %v386 = vand.u32 %v182, 4294901760
        %v387 = vsub.f32 %v182, %v386
        %v388 = vand.u32 %v387, 4294901760
        %v389 = vsub.f32 %v387, %v388
        %v390 = vand.u32 %v389, 4294901760
        %391 = vmatpush1.msra.mxu0 %v390
        %v392 = vand.u32 %v186, 4294901760
        %v393 = vsub.f32 %v186, %v392
        %v394 = vand.u32 %v393, 4294901760
        %v395 = vsub.f32 %v393, %v394
        %v396 = vand.u32 %v395, 4294901760
        %397 = vmatprep.subr.mxu0 %v396
        %v398 = vand.u32 %v185, 4294901760
        %v399 = vsub.f32 %v185, %v398
        %v400 = vand.u32 %v399, 4294901760
        %v401 = vsub.f32 %v399, %v400
        %v402 = vand.u32 %v401, 4294901760
        %403 = vmatpush1.msra.mxu0 %v402
        %v404 = vand.u32 %v189, 4294901760
        %v405 = vsub.f32 %v189, %v404
        %v406 = vand.u32 %v405, 4294901760
        %v407 = vsub.f32 %v405, %v406
        %v408 = vand.u32 %v407, 4294901760
        %409 = vmatprep.subr.mxu0 %v408
        %v410 = vand.u32 %v188, 4294901760
        %v411 = vsub.f32 %v188, %v410
        %v412 = vand.u32 %v411, 4294901760
        %v413 = vsub.f32 %v411, %v412
        %v414 = vand.u32 %v413, 4294901760
        %415 = vmatpush1.msra.mxu0 %v414
        %v416 = vand.u32 %v192, 4294901760
        %v417 = vsub.f32 %v192, %v416
        %v418 = vand.u32 %v417, 4294901760
        %v419 = vsub.f32 %v417, %v418
        %v420 = vand.u32 %v419, 4294901760
        %421 = vmatprep.subr.mxu0 %v420
        %v422 = vand.u32 %v191, 4294901760
        %v423 = vsub.f32 %v191, %v422
        %v424 = vand.u32 %v423, 4294901760
        %v425 = vsub.f32 %v423, %v424
        %v426 = vand.u32 %v425, 4294901760
        %427 = vmatpush1.msra.mxu0 %v426
        %428 = vmatprep.subr.mxu0 0.0
        %429 = vmatpush1.msra.mxu0 0.0
        %430 = vmatprep.subr.mxu0 0.0
        %431 = vmatpush1.msra.mxu0 0.0
        %432 = vmatprep.subr.mxu0 0.0
        %433 = vmatpush1.msra.mxu0 0.0
        %434 = vmatprep.subr.mxu0 0.0
        %435 = vmatpush1.msra.mxu0 0.0
        %436 = vmatprep.subr.mxu0 0.0
        %437 = vmatpush1.msra.mxu0 0.0
        %438 = vmatprep.subr.mxu0 0.0
        %439 = vmatpush1.msra.mxu0 0.0
        %440 = vmatprep.subr.mxu0 0.0
        %441 = vmatpush1.msra.mxu0 0.0
        %442 = vmatprep.subr.mxu0 0.0
        %443 = vmatpush1.msra.mxu0 0.0
        %444 = vmatprep.subr.mxu0 0.0
        %445 = vmatpush1.msra.mxu0 0.0
        %446 = vmatprep.subr.mxu0 0.0
        %447 = vmatpush1.msra.mxu0 0.0
        %448 = vmatprep.subr.mxu0 0.0
        %449 = vmatpush1.msra.mxu0 0.0
        %450 = vmatprep.subr.mxu0 0.0
        %451 = vmatpush1.msra.mxu0 0.0
        %452 = vmatprep.subr.mxu0 0.0
        %453 = vmatpush1.msra.mxu0 0.0
        %454 = vmatprep.subr.mxu0 0.0
        %455 = vmatpush1.msra.mxu0 0.0
        %456 = vmatprep.subr.mxu0 0.0
        %457 = vmatpush1.msra.mxu0 0.0
        %458 = vmatprep.subr.mxu0 0.0
        %459 = vmatpush1.msra.mxu0 0.0
        %460 = vmatprep.subr.mxu0 0.0
        %461 = vmatpush1.msra.mxu0 0.0
        %462 = vmatprep.subr.mxu0 0.0
        %463 = vmatpush1.msra.mxu0 0.0
        %464 = vmatprep.subr.mxu0 0.0
        %465 = vmatpush1.msra.mxu0 0.0
        %466 = vmatprep.subr.mxu0 0.0
        %467 = vmatpush1.msra.mxu0 0.0
        %468 = vmatprep.subr.mxu0 0.0
        %469 = vmatpush1.msra.mxu0 0.0
        %470 = vmatprep.subr.mxu0 0.0
        %471 = vmatpush1.msra.mxu0 0.0
        %472 = vmatprep.subr.mxu0 0.0
        %473 = vmatpush1.msra.mxu0 0.0
        %474 = vmatprep.mubr.f32.mxu0 0.0
        %v475 = vand.u32 %v196, 4294901760
        %476 = vmatmul.mubr.f32.gmra.mrb[0].mxu0 %v475
        %v477 = vpop.f32.mrb[0].mxu0
        %v478 = vadd.f32 %v294, %v477
        %v479 = vpop.f32.mrb[0].mxu0
        %v480 = vadd.f32 %v296, %v479
        %481 = vmatprep.mubr.f32.mxu0 0.0
        %v482 = vand.u32 %v199, 4294901760
        %483 = vmatmul.mubr.f32.gmra.mrb[0].mxu0 %v482
        %v484 = vpop.f32.mrb[0].mxu0
        %v485 = vadd.f32 %v305, %v484
        %v486 = vpop.f32.mrb[0].mxu0
        %v487 = vadd.f32 %v307, %v486
        %488 = vmatprep.mubr.f32.mxu0 0.0
        %v489 = vand.u32 %v202, 4294901760
        %490 = vmatmul.mubr.f32.gmra.mrb[0].mxu0 %v489
        %v491 = vpop.f32.mrb[0].mxu0
        %v492 = vadd.f32 %v316, %v491
        %v493 = vpop.f32.mrb[0].mxu0
        %v494 = vadd.f32 %v318, %v493
        %495 = vdwg.mxu0
        %v496 = vand.u32 %v168, 4294901760
        %v497 = vsub.f32 %v168, %v496
        %498 = vmatprep.subr.mxu0 %v497
        %v499 = vand.u32 %v167, 4294901760
        %v500 = vsub.f32 %v167, %v499
        %501 = vmatpush1.msra.mxu0 %v500
        %v502 = vand.u32 %v171, 4294901760
        %v503 = vsub.f32 %v171, %v502
        %504 = vmatprep.subr.mxu0 %v503
        %v505 = vand.u32 %v170, 4294901760
        %v506 = vsub.f32 %v170, %v505
        %507 = vmatpush1.msra.mxu0 %v506
        %v508 = vand.u32 %v174, 4294901760
        %v509 = vsub.f32 %v174, %v508
        %510 = vmatprep.subr.mxu0 %v509
        %v511 = vand.u32 %v173, 4294901760
        %v512 = vsub.f32 %v173, %v511
        %513 = vmatpush1.msra.mxu0 %v512
        %v514 = vand.u32 %v177, 4294901760
        %v515 = vsub.f32 %v177, %v514
        %516 = vmatprep.subr.mxu0 %v515
        %v517 = vand.u32 %v176, 4294901760
        %v518 = vsub.f32 %v176, %v517
        %519 = vmatpush1.msra.mxu0 %v518
        %v520 = vand.u32 %v180, 4294901760
        %v521 = vsub.f32 %v180, %v520
        %522 = vmatprep.subr.mxu0 %v521
        %v523 = vand.u32 %v179, 4294901760
        %v524 = vsub.f32 %v179, %v523
        %525 = vmatpush1.msra.mxu0 %v524
        %v526 = vand.u32 %v183, 4294901760
        %v527 = vsub.f32 %v183, %v526
        %528 = vmatprep.subr.mxu0 %v527
        %v529 = vand.u32 %v182, 4294901760
        %v530 = vsub.f32 %v182, %v529
        %531 = vmatpush1.msra.mxu0 %v530
        %v532 = vand.u32 %v186, 4294901760
        %v533 = vsub.f32 %v186, %v532
        %534 = vmatprep.subr.mxu0 %v533
        %v535 = vand.u32 %v185, 4294901760
        %v536 = vsub.f32 %v185, %v535
        %537 = vmatpush1.msra.mxu0 %v536
        %v538 = vand.u32 %v189, 4294901760
        %v539 = vsub.f32 %v189, %v538
        %540 = vmatprep.subr.mxu0 %v539
        %v541 = vand.u32 %v188, 4294901760
        %v542 = vsub.f32 %v188, %v541
        %543 = vmatpush1.msra.mxu0 %v542
        %v544 = vand.u32 %v192, 4294901760
        %v545 = vsub.f32 %v192, %v544
        %546 = vmatprep.subr.mxu0 %v545
        %v547 = vand.u32 %v191, 4294901760
        %v548 = vsub.f32 %v191, %v547
        %549 = vmatpush1.msra.mxu0 %v548
        %550 = vmatprep.subr.mxu0 0.0
        %551 = vmatpush1.msra.mxu0 0.0
        %552 = vmatprep.subr.mxu0 0.0
        %553 = vmatpush1.msra.mxu0 0.0
        %554 = vmatprep.subr.mxu0 0.0
        %555 = vmatpush1.msra.mxu0 0.0
        %556 = vmatprep.subr.mxu0 0.0
        %557 = vmatpush1.msra.mxu0 0.0
        %558 = vmatprep.subr.mxu0 0.0
        %559 = vmatpush1.msra.mxu0 0.0
        %560 = vmatprep.subr.mxu0 0.0
        %561 = vmatpush1.msra.mxu0 0.0
        %562 = vmatprep.subr.mxu0 0.0
        %563 = vmatpush1.msra.mxu0 0.0
        %564 = vmatprep.subr.mxu0 0.0
        %565 = vmatpush1.msra.mxu0 0.0
        %566 = vmatprep.subr.mxu0 0.0
        %567 = vmatpush1.msra.mxu0 0.0
        %568 = vmatprep.subr.mxu0 0.0
        %569 = vmatpush1.msra.mxu0 0.0
        %570 = vmatprep.subr.mxu0 0.0
        %571 = vmatpush1.msra.mxu0 0.0
        %572 = vmatprep.subr.mxu0 0.0
        %573 = vmatpush1.msra.mxu0 0.0
        %574 = vmatprep.subr.mxu0 0.0
        %575 = vmatpush1.msra.mxu0 0.0
        %576 = vmatprep.subr.mxu0 0.0
        %577 = vmatpush1.msra.mxu0 0.0
        %578 = vmatprep.subr.mxu0 0.0
        %579 = vmatpush1.msra.mxu0 0.0
        %580 = vmatprep.subr.mxu0 0.0
        %581 = vmatpush1.msra.mxu0 0.0
        %582 = vmatprep.subr.mxu0 0.0
        %583 = vmatpush1.msra.mxu0 0.0
        %584 = vmatprep.subr.mxu0 0.0
        %585 = vmatpush1.msra.mxu0 0.0
        %586 = vmatprep.subr.mxu0 0.0
        %587 = vmatpush1.msra.mxu0 0.0
        %588 = vmatprep.subr.mxu0 0.0
        %589 = vmatpush1.msra.mxu0 0.0
        %590 = vmatprep.subr.mxu0 0.0
        %591 = vmatpush1.msra.mxu0 0.0
        %592 = vmatprep.subr.mxu0 0.0
        %593 = vmatpush1.msra.mxu0 0.0
        %594 = vmatprep.subr.mxu0 0.0
        %595 = vmatpush1.msra.mxu0 0.0
        %596 = vmatprep.mubr.f32.mxu0 0.0
        %v597 = vand.u32 %v196, 4294901760
        %v598 = vsub.f32 %v196, %v597
        %599 = vmatmul.mubr.f32.gmra.mrb[0].mxu0 %v598
        %v600 = vpop.f32.mrb[0].mxu0
        %v601 = vadd.f32 %v478, %v600
        %v602 = vpop.f32.mrb[0].mxu0
        %v603 = vadd.f32 %v480, %v602
        %604 = vmatprep.mubr.f32.mxu0 0.0
        %v605 = vand.u32 %v199, 4294901760
        %v606 = vsub.f32 %v199, %v605
        %607 = vmatmul.mubr.f32.gmra.mrb[0].mxu0 %v606
        %v608 = vpop.f32.mrb[0].mxu0
        %v609 = vadd.f32 %v485, %v608
        %v610 = vpop.f32.mrb[0].mxu0
        %v611 = vadd.f32 %v487, %v610
        %612 = vmatprep.mubr.f32.mxu0 0.0
        %v613 = vand.u32 %v202, 4294901760
        %v614 = vsub.f32 %v202, %v613
        %615 = vmatmul.mubr.f32.gmra.mrb[0].mxu0 %v614
        %v616 = vpop.f32.mrb[0].mxu0
        %v617 = vadd.f32 %v492, %v616
        %v618 = vpop.f32.mrb[0].mxu0
        %v619 = vadd.f32 %v494, %v618
        %620 = vdwg.mxu0
        %v621 = vand.u32 %v168, 4294901760
        %622 = vmatprep.subr.mxu0 %v621
        %v623 = vand.u32 %v167, 4294901760
        %624 = vmatpush1.msra.mxu0 %v623
        %v625 = vand.u32 %v171, 4294901760
        %626 = vmatprep.subr.mxu0 %v625
        %v627 = vand.u32 %v170, 4294901760
        %628 = vmatpush1.msra.mxu0 %v627
        %v629 = vand.u32 %v174, 4294901760
        %630 = vmatprep.subr.mxu0 %v629
        %v631 = vand.u32 %v173, 4294901760
        %632 = vmatpush1.msra.mxu0 %v631
        %v633 = vand.u32 %v177, 4294901760
        %634 = vmatprep.subr.mxu0 %v633
        %v635 = vand.u32 %v176, 4294901760
        %636 = vmatpush1.msra.mxu0 %v635
        %v637 = vand.u32 %v180, 4294901760
        %638 = vmatprep.subr.mxu0 %v637
        %v639 = vand.u32 %v179, 4294901760
        %640 = vmatpush1.msra.mxu0 %v639
        %v641 = vand.u32 %v183, 4294901760
        %642 = vmatprep.subr.mxu0 %v641
        %v643 = vand.u32 %v182, 4294901760
        %644 = vmatpush1.msra.mxu0 %v643
        %v645 = vand.u32 %v186, 4294901760
        %646 = vmatprep.subr.mxu0 %v645
        %v647 = vand.u32 %v185, 4294901760
        %648 = vmatpush1.msra.mxu0 %v647
        %v649 = vand.u32 %v189, 4294901760
        %650 = vmatprep.subr.mxu0 %v649
        %v651 = vand.u32 %v188, 4294901760
        %652 = vmatpush1.msra.mxu0 %v651
        %v653 = vand.u32 %v192, 4294901760
        %654 = vmatprep.subr.mxu0 %v653
        %v655 = vand.u32 %v191, 4294901760
        %656 = vmatpush1.msra.mxu0 %v655
        %657 = vmatprep.subr.mxu0 0.0
        %658 = vmatpush1.msra.mxu0 0.0
        %659 = vmatprep.subr.mxu0 0.0
        %660 = vmatpush1.msra.mxu0 0.0
        %661 = vmatprep.subr.mxu0 0.0
        %662 = vmatpush1.msra.mxu0 0.0
        %663 = vmatprep.subr.mxu0 0.0
        %664 = vmatpush1.msra.mxu0 0.0
        %665 = vmatprep.subr.mxu0 0.0
        %666 = vmatpush1.msra.mxu0 0.0
        %667 = vmatprep.subr.mxu0 0.0
        %668 = vmatpush1.msra.mxu0 0.0
        %669 = vmatprep.subr.mxu0 0.0
        %670 = vmatpush1.msra.mxu0 0.0
        %671 = vmatprep.subr.mxu0 0.0
        %672 = vmatpush1.msra.mxu0 0.0
        %673 = vmatprep.subr.mxu0 0.0
        %674 = vmatpush1.msra.mxu0 0.0
        %675 = vmatprep.subr.mxu0 0.0
        %676 = vmatpush1.msra.mxu0 0.0
        %677 = vmatprep.subr.mxu0 0.0
        %678 = vmatpush1.msra.mxu0 0.0
        %679 = vmatprep.subr.mxu0 0.0
        %680 = vmatpush1.msra.mxu0 0.0
        %681 = vmatprep.subr.mxu0 0.0
        %682 = vmatpush1.msra.mxu0 0.0
        %683 = vmatprep.subr.mxu0 0.0
        %684 = vmatpush1.msra.mxu0 0.0
        %685 = vmatprep.subr.mxu0 0.0
        %686 = vmatpush1.msra.mxu0 0.0
        %687 = vmatprep.subr.mxu0 0.0
        %688 = vmatpush1.msra.mxu0 0.0
        %689 = vmatprep.subr.mxu0 0.0
        %690 = vmatpush1.msra.mxu0 0.0
        %691 = vmatprep.subr.mxu0 0.0
        %692 = vmatpush1.msra.mxu0 0.0
        %693 = vmatprep.subr.mxu0 0.0
        %694 = vmatpush1.msra.mxu0 0.0
        %695 = vmatprep.subr.mxu0 0.0
        %696 = vmatpush1.msra.mxu0 0.0
        %697 = vmatprep.subr.mxu0 0.0
        %698 = vmatpush1.msra.mxu0 0.0
        %699 = vmatprep.subr.mxu0 0.0
        %700 = vmatpush1.msra.mxu0 0.0
        %701 = vmatprep.subr.mxu0 0.0
        %702 = vmatpush1.msra.mxu0 0.0
        %703 = vmatprep.mubr.f32.mxu0 0.0
        %v704 = vand.u32 %v196, 4294901760
        %v705 = vsub.f32 %v196, %v704
        %v706 = vand.u32 %v705, 4294901760
        %707 = vmatmul.mubr.f32.gmra.mrb[0].mxu0 %v706
        %v708 = vpop.f32.mrb[0].mxu0
        %v709 = vadd.f32 %v601, %v708
        %v710 = vpop.f32.mrb[0].mxu0
        %v711 = vadd.f32 %v603, %v710
        %712 = vmatprep.mubr.f32.mxu0 0.0
        %v713 = vand.u32 %v199, 4294901760
        %v714 = vsub.f32 %v199, %v713
        %v715 = vand.u32 %v714, 4294901760
        %716 = vmatmul.mubr.f32.gmra.mrb[0].mxu0 %v715
        %v717 = vpop.f32.mrb[0].mxu0
        %v718 = vadd.f32 %v609, %v717
        %v719 = vpop.f32.mrb[0].mxu0
        %v720 = vadd.f32 %v611, %v719
        %721 = vmatprep.mubr.f32.mxu0 0.0
        %v722 = vand.u32 %v202, 4294901760
        %v723 = vsub.f32 %v202, %v722
        %v724 = vand.u32 %v723, 4294901760
        %725 = vmatmul.mubr.f32.gmra.mrb[0].mxu0 %v724
        %v726 = vpop.f32.mrb[0].mxu0
        %v727 = vadd.f32 %v617, %v726
        %v728 = vpop.f32.mrb[0].mxu0
        %v729 = vadd.f32 %v619, %v728
        %730 = vdwg.mxu0
        %v731 = vand.u32 %v168, 4294901760
        %v732 = vsub.f32 %v168, %v731
        %v733 = vand.u32 %v732, 4294901760
        %734 = vmatprep.subr.mxu0 %v733
        %v735 = vand.u32 %v167, 4294901760
        %v736 = vsub.f32 %v167, %v735
        %v737 = vand.u32 %v736, 4294901760
        %738 = vmatpush1.msra.mxu0 %v737
        %v739 = vand.u32 %v171, 4294901760
        %v740 = vsub.f32 %v171, %v739
        %v741 = vand.u32 %v740, 4294901760
        %742 = vmatprep.subr.mxu0 %v741
        %v743 = vand.u32 %v170, 4294901760
        %v744 = vsub.f32 %v170, %v743
        %v745 = vand.u32 %v744, 4294901760
        %746 = vmatpush1.msra.mxu0 %v745
        %v747 = vand.u32 %v174, 4294901760
        %v748 = vsub.f32 %v174, %v747
        %v749 = vand.u32 %v748, 4294901760
        %750 = vmatprep.subr.mxu0 %v749
        %v751 = vand.u32 %v173, 4294901760
        %v752 = vsub.f32 %v173, %v751
        %v753 = vand.u32 %v752, 4294901760
        %754 = vmatpush1.msra.mxu0 %v753
        %v755 = vand.u32 %v177, 4294901760
        %v756 = vsub.f32 %v177, %v755
        %v757 = vand.u32 %v756, 4294901760
        %758 = vmatprep.subr.mxu0 %v757
        %v759 = vand.u32 %v176, 4294901760
        %v760 = vsub.f32 %v176, %v759
        %v761 = vand.u32 %v760, 4294901760
        %762 = vmatpush1.msra.mxu0 %v761
        %v763 = vand.u32 %v180, 4294901760
        %v764 = vsub.f32 %v180, %v763
        %v765 = vand.u32 %v764, 4294901760
        %766 = vmatprep.subr.mxu0 %v765
        %v767 = vand.u32 %v179, 4294901760
        %v768 = vsub.f32 %v179, %v767
        %v769 = vand.u32 %v768, 4294901760
        %770 = vmatpush1.msra.mxu0 %v769
        %v771 = vand.u32 %v183, 4294901760
        %v772 = vsub.f32 %v183, %v771
        %v773 = vand.u32 %v772, 4294901760
        %774 = vmatprep.subr.mxu0 %v773
        %v775 = vand.u32 %v182, 4294901760
        %v776 = vsub.f32 %v182, %v775
        %v777 = vand.u32 %v776, 4294901760
        %778 = vmatpush1.msra.mxu0 %v777
        %v779 = vand.u32 %v186, 4294901760
        %v780 = vsub.f32 %v186, %v779
        %v781 = vand.u32 %v780, 4294901760
        %782 = vmatprep.subr.mxu0 %v781
        %v783 = vand.u32 %v185, 4294901760
        %v784 = vsub.f32 %v185, %v783
        %v785 = vand.u32 %v784, 4294901760
        %786 = vmatpush1.msra.mxu0 %v785
        %v787 = vand.u32 %v189, 4294901760
        %v788 = vsub.f32 %v189, %v787
        %v789 = vand.u32 %v788, 4294901760
        %790 = vmatprep.subr.mxu0 %v789
        %v791 = vand.u32 %v188, 4294901760
        %v792 = vsub.f32 %v188, %v791
        %v793 = vand.u32 %v792, 4294901760
        %794 = vmatpush1.msra.mxu0 %v793
        %v795 = vand.u32 %v192, 4294901760
        %v796 = vsub.f32 %v192, %v795
        %v797 = vand.u32 %v796, 4294901760
        %798 = vmatprep.subr.mxu0 %v797
        %v799 = vand.u32 %v191, 4294901760
        %v800 = vsub.f32 %v191, %v799
        %v801 = vand.u32 %v800, 4294901760
        %802 = vmatpush1.msra.mxu0 %v801
        %803 = vmatprep.subr.mxu0 0.0
        %804 = vmatpush1.msra.mxu0 0.0
        %805 = vmatprep.subr.mxu0 0.0
        %806 = vmatpush1.msra.mxu0 0.0
        %807 = vmatprep.subr.mxu0 0.0
        %808 = vmatpush1.msra.mxu0 0.0
        %809 = vmatprep.subr.mxu0 0.0
        %810 = vmatpush1.msra.mxu0 0.0
        %811 = vmatprep.subr.mxu0 0.0
        %812 = vmatpush1.msra.mxu0 0.0
        %813 = vmatprep.subr.mxu0 0.0
        %814 = vmatpush1.msra.mxu0 0.0
        %815 = vmatprep.subr.mxu0 0.0
        %816 = vmatpush1.msra.mxu0 0.0
        %817 = vmatprep.subr.mxu0 0.0
        %818 = vmatpush1.msra.mxu0 0.0
        %819 = vmatprep.subr.mxu0 0.0
        %820 = vmatpush1.msra.mxu0 0.0
        %821 = vmatprep.subr.mxu0 0.0
        %822 = vmatpush1.msra.mxu0 0.0
        %823 = vmatprep.subr.mxu0 0.0
        %824 = vmatpush1.msra.mxu0 0.0
        %825 = vmatprep.subr.mxu0 0.0
        %826 = vmatpush1.msra.mxu0 0.0
        %827 = vmatprep.subr.mxu0 0.0
        %828 = vmatpush1.msra.mxu0 0.0
        %829 = vmatprep.subr.mxu0 0.0
        %830 = vmatpush1.msra.mxu0 0.0
        %831 = vmatprep.subr.mxu0 0.0
        %832 = vmatpush1.msra.mxu0 0.0
        %833 = vmatprep.subr.mxu0 0.0
        %834 = vmatpush1.msra.mxu0 0.0
        %835 = vmatprep.subr.mxu0 0.0
        %836 = vmatpush1.msra.mxu0 0.0
        %837 = vmatprep.subr.mxu0 0.0
        %838 = vmatpush1.msra.mxu0 0.0
        %839 = vmatprep.subr.mxu0 0.0
        %840 = vmatpush1.msra.mxu0 0.0
        %841 = vmatprep.subr.mxu0 0.0
        %842 = vmatpush1.msra.mxu0 0.0
        %843 = vmatprep.subr.mxu0 0.0
        %844 = vmatpush1.msra.mxu0 0.0
        %845 = vmatprep.subr.mxu0 0.0
        %846 = vmatpush1.msra.mxu0 0.0
        %847 = vmatprep.subr.mxu0 0.0
        %848 = vmatpush1.msra.mxu0 0.0
        %849 = vmatprep.mubr.f32.mxu0 0.0
        %v850 = vand.u32 %v196, 4294901760
        %851 = vmatmul.mubr.f32.gmra.mrb[0].mxu0 %v850
        %v852 = vpop.f32.mrb[0].mxu0
        %v853 = vadd.f32 %v709, %v852
        %v854 = vpop.f32.mrb[0].mxu0
        %v855 = vadd.f32 %v711, %v854
        %856 = vmatprep.mubr.f32.mxu0 0.0
        %v857 = vand.u32 %v199, 4294901760
        %858 = vmatmul.mubr.f32.gmra.mrb[0].mxu0 %v857
        %v859 = vpop.f32.mrb[0].mxu0
        %v860 = vadd.f32 %v718, %v859
        %v861 = vpop.f32.mrb[0].mxu0
        %v862 = vadd.f32 %v720, %v861
        %863 = vmatprep.mubr.f32.mxu0 0.0
        %v864 = vand.u32 %v202, 4294901760
        %865 = vmatmul.mubr.f32.gmra.mrb[0].mxu0 %v864
        %v866 = vpop.f32.mrb[0].mxu0
        %v867 = vadd.f32 %v727, %v866
        %v868 = vpop.f32.mrb[0].mxu0
        %v869 = vadd.f32 %v729, %v868
        %870 = vdwg.mxu0
        %v871 = vand.u32 %v168, 4294901760
        %872 = vmatprep.subr.mxu0 %v871
        %v873 = vand.u32 %v167, 4294901760
        %874 = vmatpush1.msra.mxu0 %v873
        %v875 = vand.u32 %v171, 4294901760
        %876 = vmatprep.subr.mxu0 %v875
        %v877 = vand.u32 %v170, 4294901760
        %878 = vmatpush1.msra.mxu0 %v877
        %v879 = vand.u32 %v174, 4294901760
        %880 = vmatprep.subr.mxu0 %v879
        %v881 = vand.u32 %v173, 4294901760
        %882 = vmatpush1.msra.mxu0 %v881
        %v883 = vand.u32 %v177, 4294901760
        %884 = vmatprep.subr.mxu0 %v883
        %v885 = vand.u32 %v176, 4294901760
        %886 = vmatpush1.msra.mxu0 %v885
        %v887 = vand.u32 %v180, 4294901760
        %888 = vmatprep.subr.mxu0 %v887
        %v889 = vand.u32 %v179, 4294901760
        %890 = vmatpush1.msra.mxu0 %v889
        %v891 = vand.u32 %v183, 4294901760
        %892 = vmatprep.subr.mxu0 %v891
        %v893 = vand.u32 %v182, 4294901760
        %894 = vmatpush1.msra.mxu0 %v893
        %v895 = vand.u32 %v186, 4294901760
        %896 = vmatprep.subr.mxu0 %v895
        %v897 = vand.u32 %v185, 4294901760
        %898 = vmatpush1.msra.mxu0 %v897
        %v899 = vand.u32 %v189, 4294901760
        %900 = vmatprep.subr.mxu0 %v899
        %v901 = vand.u32 %v188, 4294901760
        %902 = vmatpush1.msra.mxu0 %v901
        %v903 = vand.u32 %v192, 4294901760
        %904 = vmatprep.subr.mxu0 %v903
        %v905 = vand.u32 %v191, 4294901760
        %906 = vmatpush1.msra.mxu0 %v905
        %907 = vmatprep.subr.mxu0 0.0
        %908 = vmatpush1.msra.mxu0 0.0
        %909 = vmatprep.subr.mxu0 0.0
        %910 = vmatpush1.msra.mxu0 0.0
        %911 = vmatprep.subr.mxu0 0.0
        %912 = vmatpush1.msra.mxu0 0.0
        %913 = vmatprep.subr.mxu0 0.0
        %914 = vmatpush1.msra.mxu0 0.0
        %915 = vmatprep.subr.mxu0 0.0
        %916 = vmatpush1.msra.mxu0 0.0
        %917 = vmatprep.subr.mxu0 0.0
        %918 = vmatpush1.msra.mxu0 0.0
        %919 = vmatprep.subr.mxu0 0.0
        %920 = vmatpush1.msra.mxu0 0.0
        %921 = vmatprep.subr.mxu0 0.0
        %922 = vmatpush1.msra.mxu0 0.0
        %923 = vmatprep.subr.mxu0 0.0
        %924 = vmatpush1.msra.mxu0 0.0
        %925 = vmatprep.subr.mxu0 0.0
        %926 = vmatpush1.msra.mxu0 0.0
        %927 = vmatprep.subr.mxu0 0.0
        %928 = vmatpush1.msra.mxu0 0.0
        %929 = vmatprep.subr.mxu0 0.0
        %930 = vmatpush1.msra.mxu0 0.0
        %931 = vmatprep.subr.mxu0 0.0
        %932 = vmatpush1.msra.mxu0 0.0
        %933 = vmatprep.subr.mxu0 0.0
        %934 = vmatpush1.msra.mxu0 0.0
        %935 = vmatprep.subr.mxu0 0.0
        %936 = vmatpush1.msra.mxu0 0.0
        %937 = vmatprep.subr.mxu0 0.0
        %938 = vmatpush1.msra.mxu0 0.0
        %939 = vmatprep.subr.mxu0 0.0
        %940 = vmatpush1.msra.mxu0 0.0
        %941 = vmatprep.subr.mxu0 0.0
        %942 = vmatpush1.msra.mxu0 0.0
        %943 = vmatprep.subr.mxu0 0.0
        %944 = vmatpush1.msra.mxu0 0.0
        %945 = vmatprep.subr.mxu0 0.0
        %946 = vmatpush1.msra.mxu0 0.0
        %947 = vmatprep.subr.mxu0 0.0
        %948 = vmatpush1.msra.mxu0 0.0
        %949 = vmatprep.subr.mxu0 0.0
        %950 = vmatpush1.msra.mxu0 0.0
        %951 = vmatprep.subr.mxu0 0.0
        %952 = vmatpush1.msra.mxu0 0.0
        %953 = vmatprep.mubr.f32.mxu0 0.0
        %v954 = vand.u32 %v196, 4294901760
        %955 = vmatmul.mubr.f32.gmra.mrb[0].mxu0 %v954
        %v956 = vpop.f32.mrb[0].mxu0
        %v957 = vadd.f32 %v853, %v956
        %v958 = vpop.f32.mrb[0].mxu0
        %v959 = vadd.f32 %v855, %v958
        %960 = vmatprep.mubr.f32.mxu0 0.0
        %v961 = vand.u32 %v199, 4294901760
        %962 = vmatmul.mubr.f32.gmra.mrb[0].mxu0 %v961
        %v963 = vpop.f32.mrb[0].mxu0
        %v964 = vadd.f32 %v860, %v963
        %v965 = vpop.f32.mrb[0].mxu0
        %v966 = vadd.f32 %v862, %v965
        %967 = vmatprep.mubr.f32.mxu0 0.0
        %v968 = vand.u32 %v202, 4294901760
        %969 = vmatmul.mubr.f32.gmra.mrb[0].mxu0 %v968
        %v970 = vpop.f32.mrb[0].mxu0
        %v971 = vadd.f32 %v867, %v970
        %v972 = vpop.f32.mrb[0].mxu0
        %v973 = vadd.f32 %v869, %v972
        %974 = vdwg.mxu0
        %975 = vmatprep.subr.mxu0 0.0
        %v976 = vand.u32 %v169, 4294901760
        %977 = vmatpush1.msra.mxu0 %v976
        %978 = vmatprep.subr.mxu0 0.0
        %v979 = vand.u32 %v172, 4294901760
        %980 = vmatpush1.msra.mxu0 %v979
        %981 = vmatprep.subr.mxu0 0.0
        %v982 = vand.u32 %v175, 4294901760
        %983 = vmatpush1.msra.mxu0 %v982
        %984 = vmatprep.subr.mxu0 0.0
        %v985 = vand.u32 %v178, 4294901760
        %986 = vmatpush1.msra.mxu0 %v985
        %987 = vmatprep.subr.mxu0 0.0
        %v988 = vand.u32 %v181, 4294901760
        %989 = vmatpush1.msra.mxu0 %v988
        %990 = vmatprep.subr.mxu0 0.0
        %v991 = vand.u32 %v184, 4294901760
        %992 = vmatpush1.msra.mxu0 %v991
        %993 = vmatprep.subr.mxu0 0.0
        %v994 = vand.u32 %v187, 4294901760
        %995 = vmatpush1.msra.mxu0 %v994
        %996 = vmatprep.subr.mxu0 0.0
        %v997 = vand.u32 %v190, 4294901760
        %998 = vmatpush1.msra.mxu0 %v997
        %999 = vmatprep.subr.mxu0 0.0
        %v1000 = vand.u32 %v193, 4294901760
        %1001 = vmatpush1.msra.mxu0 %v1000
        %1002 = vmatprep.subr.mxu0 0.0
        %1003 = vmatpush1.msra.mxu0 0.0
        %1004 = vmatprep.subr.mxu0 0.0
        %1005 = vmatpush1.msra.mxu0 0.0
        %1006 = vmatprep.subr.mxu0 0.0
        %1007 = vmatpush1.msra.mxu0 0.0
        %1008 = vmatprep.subr.mxu0 0.0
        %1009 = vmatpush1.msra.mxu0 0.0
        %1010 = vmatprep.subr.mxu0 0.0
        %1011 = vmatpush1.msra.mxu0 0.0
        %1012 = vmatprep.subr.mxu0 0.0
        %1013 = vmatpush1.msra.mxu0 0.0
        %1014 = vmatprep.subr.mxu0 0.0
        %1015 = vmatpush1.msra.mxu0 0.0
        %1016 = vmatprep.subr.mxu0 0.0
        %1017 = vmatpush1.msra.mxu0 0.0
        %1018 = vmatprep.subr.mxu0 0.0
        %1019 = vmatpush1.msra.mxu0 0.0
        %1020 = vmatprep.subr.mxu0 0.0
        %1021 = vmatpush1.msra.mxu0 0.0
        %1022 = vmatprep.subr.mxu0 0.0
        %1023 = vmatpush1.msra.mxu0 0.0
        %1024 = vmatprep.subr.mxu0 0.0
        %1025 = vmatpush1.msra.mxu0 0.0
        %1026 = vmatprep.subr.mxu0 0.0
        %1027 = vmatpush1.msra.mxu0 0.0
        %1028 = vmatprep.subr.mxu0 0.0
        %1029 = vmatpush1.msra.mxu0 0.0
        %1030 = vmatprep.subr.mxu0 0.0
        %1031 = vmatpush1.msra.mxu0 0.0
        %1032 = vmatprep.subr.mxu0 0.0
        %1033 = vmatpush1.msra.mxu0 0.0
        %1034 = vmatprep.subr.mxu0 0.0
        %1035 = vmatpush1.msra.mxu0 0.0
        %1036 = vmatprep.subr.mxu0 0.0
        %1037 = vmatpush1.msra.mxu0 0.0
        %1038 = vmatprep.subr.mxu0 0.0
        %1039 = vmatpush1.msra.mxu0 0.0
        %1040 = vmatprep.subr.mxu0 0.0
        %1041 = vmatpush1.msra.mxu0 0.0
        %1042 = vmatprep.subr.mxu0 0.0
        %1043 = vmatpush1.msra.mxu0 0.0
        %1044 = vmatprep.subr.mxu0 0.0
        %1045 = vmatpush1.msra.mxu0 0.0
        %1046 = vmatprep.subr.mxu0 0.0
        %1047 = vmatpush1.msra.mxu0 0.0
        %1048 = vmatprep.mubr.f32.mxu0 0.0
        %v1049 = vand.u32 %v196, 4294901760
        %v1050 = vsub.f32 %v196, %v1049
        %v1051 = vand.u32 %v1050, 4294901760
        %v1052 = vsub.f32 %v1050, %v1051
        %v1053 = vand.u32 %v1052, 4294901760
        %1054 = vmatmul.mubr.f32.gmra.mrb[0].mxu0 %v1053
        %v1055 = vpop.f32.mrb[0].mxu0
        %v1056 = vadd.f32 0.0, %v1055
        %v1057 = vpop.f32.mrb[0].mxu0
        %1058 = vmatprep.mubr.f32.mxu0 0.0
        %v1059 = vand.u32 %v199, 4294901760
        %v1060 = vsub.f32 %v199, %v1059
        %v1061 = vand.u32 %v1060, 4294901760
        %v1062 = vsub.f32 %v1060, %v1061
        %v1063 = vand.u32 %v1062, 4294901760
        %1064 = vmatmul.mubr.f32.gmra.mrb[0].mxu0 %v1063
        %v1065 = vpop.f32.mrb[0].mxu0
        %v1066 = vadd.f32 0.0, %v1065
        %v1067 = vpop.f32.mrb[0].mxu0
        %1068 = vmatprep.mubr.f32.mxu0 0.0
        %v1069 = vand.u32 %v202, 4294901760
        %v1070 = vsub.f32 %v202, %v1069
        %v1071 = vand.u32 %v1070, 4294901760
        %v1072 = vsub.f32 %v1070, %v1071
        %v1073 = vand.u32 %v1072, 4294901760
        %1074 = vmatmul.mubr.f32.gmra.mrb[0].mxu0 %v1073
        %v1075 = vpop.f32.mrb[0].mxu0
        %v1076 = vadd.f32 0.0, %v1075
        %v1077 = vpop.f32.mrb[0].mxu0
        %1078 = vdwg.mxu0
        %1079 = vmatprep.subr.mxu0 0.0
        %v1080 = vand.u32 %v169, 4294901760
        %v1081 = vsub.f32 %v169, %v1080
        %v1082 = vand.u32 %v1081, 4294901760
        %v1083 = vsub.f32 %v1081, %v1082
        %v1084 = vand.u32 %v1083, 4294901760
        %1085 = vmatpush1.msra.mxu0 %v1084
        %1086 = vmatprep.subr.mxu0 0.0
        %v1087 = vand.u32 %v172, 4294901760
        %v1088 = vsub.f32 %v172, %v1087
        %v1089 = vand.u32 %v1088, 4294901760
        %v1090 = vsub.f32 %v1088, %v1089
        %v1091 = vand.u32 %v1090, 4294901760
        %1092 = vmatpush1.msra.mxu0 %v1091
        %1093 = vmatprep.subr.mxu0 0.0
        %v1094 = vand.u32 %v175, 4294901760
        %v1095 = vsub.f32 %v175, %v1094
        %v1096 = vand.u32 %v1095, 4294901760
        %v1097 = vsub.f32 %v1095, %v1096
        %v1098 = vand.u32 %v1097, 4294901760
        %1099 = vmatpush1.msra.mxu0 %v1098
        %1100 = vmatprep.subr.mxu0 0.0
        %v1101 = vand.u32 %v178, 4294901760
        %v1102 = vsub.f32 %v178, %v1101
        %v1103 = vand.u32 %v1102, 4294901760
        %v1104 = vsub.f32 %v1102, %v1103
        %v1105 = vand.u32 %v1104, 4294901760
        %1106 = vmatpush1.msra.mxu0 %v1105
        %1107 = vmatprep.subr.mxu0 0.0
        %v1108 = vand.u32 %v181, 4294901760
        %v1109 = vsub.f32 %v181, %v1108
        %v1110 = vand.u32 %v1109, 4294901760
        %v1111 = vsub.f32 %v1109, %v1110
        %v1112 = vand.u32 %v1111, 4294901760
        %1113 = vmatpush1.msra.mxu0 %v1112
        %1114 = vmatprep.subr.mxu0 0.0
        %v1115 = vand.u32 %v184, 4294901760
        %v1116 = vsub.f32 %v184, %v1115
        %v1117 = vand.u32 %v1116, 4294901760
        %v1118 = vsub.f32 %v1116, %v1117
        %v1119 = vand.u32 %v1118, 4294901760
        %1120 = vmatpush1.msra.mxu0 %v1119
        %1121 = vmatprep.subr.mxu0 0.0
        %v1122 = vand.u32 %v187, 4294901760
        %v1123 = vsub.f32 %v187, %v1122
        %v1124 = vand.u32 %v1123, 4294901760
        %v1125 = vsub.f32 %v1123, %v1124
        %v1126 = vand.u32 %v1125, 4294901760
        %1127 = vmatpush1.msra.mxu0 %v1126
        %1128 = vmatprep.subr.mxu0 0.0
        %v1129 = vand.u32 %v190, 4294901760
        %v1130 = vsub.f32 %v190, %v1129
        %v1131 = vand.u32 %v1130, 4294901760
        %v1132 = vsub.f32 %v1130, %v1131
        %v1133 = vand.u32 %v1132, 4294901760
        %1134 = vmatpush1.msra.mxu0 %v1133
        %1135 = vmatprep.subr.mxu0 0.0
        %v1136 = vand.u32 %v193, 4294901760
        %v1137 = vsub.f32 %v193, %v1136
        %v1138 = vand.u32 %v1137, 4294901760
        %v1139 = vsub.f32 %v1137, %v1138
        %v1140 = vand.u32 %v1139, 4294901760
        %1141 = vmatpush1.msra.mxu0 %v1140
        %1142 = vmatprep.subr.mxu0 0.0
        %1143 = vmatpush1.msra.mxu0 0.0
        %1144 = vmatprep.subr.mxu0 0.0
        %1145 = vmatpush1.msra.mxu0 0.0
        %1146 = vmatprep.subr.mxu0 0.0
        %1147 = vmatpush1.msra.mxu0 0.0
        %1148 = vmatprep.subr.mxu0 0.0
        %1149 = vmatpush1.msra.mxu0 0.0
        %1150 = vmatprep.subr.mxu0 0.0
        %1151 = vmatpush1.msra.mxu0 0.0
        %1152 = vmatprep.subr.mxu0 0.0
        %1153 = vmatpush1.msra.mxu0 0.0
        %1154 = vmatprep.subr.mxu0 0.0
        %1155 = vmatpush1.msra.mxu0 0.0
        %1156 = vmatprep.subr.mxu0 0.0
        %1157 = vmatpush1.msra.mxu0 0.0
        %1158 = vmatprep.subr.mxu0 0.0
        %1159 = vmatpush1.msra.mxu0 0.0
        %1160 = vmatprep.subr.mxu0 0.0
        %1161 = vmatpush1.msra.mxu0 0.0
        %1162 = vmatprep.subr.mxu0 0.0
        %1163 = vmatpush1.msra.mxu0 0.0
        %1164 = vmatprep.subr.mxu0 0.0
        %1165 = vmatpush1.msra.mxu0 0.0
        %1166 = vmatprep.subr.mxu0 0.0
        %1167 = vmatpush1.msra.mxu0 0.0
        %1168 = vmatprep.subr.mxu0 0.0
        %1169 = vmatpush1.msra.mxu0 0.0
        %1170 = vmatprep.subr.mxu0 0.0
        %1171 = vmatpush1.msra.mxu0 0.0
        %1172 = vmatprep.subr.mxu0 0.0
        %1173 = vmatpush1.msra.mxu0 0.0
        %1174 = vmatprep.subr.mxu0 0.0
        %1175 = vmatpush1.msra.mxu0 0.0
        %1176 = vmatprep.subr.mxu0 0.0
        %1177 = vmatpush1.msra.mxu0 0.0
        %1178 = vmatprep.subr.mxu0 0.0
        %1179 = vmatpush1.msra.mxu0 0.0
        %1180 = vmatprep.subr.mxu0 0.0
        %1181 = vmatpush1.msra.mxu0 0.0
        %1182 = vmatprep.subr.mxu0 0.0
        %1183 = vmatpush1.msra.mxu0 0.0
        %1184 = vmatprep.subr.mxu0 0.0
        %1185 = vmatpush1.msra.mxu0 0.0
        %1186 = vmatprep.subr.mxu0 0.0
        %1187 = vmatpush1.msra.mxu0 0.0
        %1188 = vmatprep.mubr.f32.mxu0 0.0
        %v1189 = vand.u32 %v196, 4294901760
        %1190 = vmatmul.mubr.f32.gmra.mrb[0].mxu0 %v1189
        %v1191 = vpop.f32.mrb[0].mxu0
        %v1192 = vadd.f32 %v1056, %v1191
        %v1193 = vpop.f32.mrb[0].mxu0
        %1194 = vmatprep.mubr.f32.mxu0 0.0
        %v1195 = vand.u32 %v199, 4294901760
        %1196 = vmatmul.mubr.f32.gmra.mrb[0].mxu0 %v1195
        %v1197 = vpop.f32.mrb[0].mxu0
        %v1198 = vadd.f32 %v1066, %v1197
        %v1199 = vpop.f32.mrb[0].mxu0
        %1200 = vmatprep.mubr.f32.mxu0 0.0
        %v1201 = vand.u32 %v202, 4294901760
        %1202 = vmatmul.mubr.f32.gmra.mrb[0].mxu0 %v1201
        %v1203 = vpop.f32.mrb[0].mxu0
        %v1204 = vadd.f32 %v1076, %v1203
        %v1205 = vpop.f32.mrb[0].mxu0
        %1206 = vdwg.mxu0
        %1207 = vmatprep.subr.mxu0 0.0
        %v1208 = vand.u32 %v169, 4294901760
        %v1209 = vsub.f32 %v169, %v1208
        %1210 = vmatpush1.msra.mxu0 %v1209
        %1211 = vmatprep.subr.mxu0 0.0
        %v1212 = vand.u32 %v172, 4294901760
        %v1213 = vsub.f32 %v172, %v1212
        %1214 = vmatpush1.msra.mxu0 %v1213
        %1215 = vmatprep.subr.mxu0 0.0
        %v1216 = vand.u32 %v175, 4294901760
        %v1217 = vsub.f32 %v175, %v1216
        %1218 = vmatpush1.msra.mxu0 %v1217
        %1219 = vmatprep.subr.mxu0 0.0
        %v1220 = vand.u32 %v178, 4294901760
        %v1221 = vsub.f32 %v178, %v1220
        %1222 = vmatpush1.msra.mxu0 %v1221
        %1223 = vmatprep.subr.mxu0 0.0
        %v1224 = vand.u32 %v181, 4294901760
        %v1225 = vsub.f32 %v181, %v1224
        %1226 = vmatpush1.msra.mxu0 %v1225
        %1227 = vmatprep.subr.mxu0 0.0
        %v1228 = vand.u32 %v184, 4294901760
        %v1229 = vsub.f32 %v184, %v1228
        %1230 = vmatpush1.msra.mxu0 %v1229
        %1231 = vmatprep.subr.mxu0 0.0
        %v1232 = vand.u32 %v187, 4294901760
        %v1233 = vsub.f32 %v187, %v1232
        %1234 = vmatpush1.msra.mxu0 %v1233
        %1235 = vmatprep.subr.mxu0 0.0
        %v1236 = vand.u32 %v190, 4294901760
        %v1237 = vsub.f32 %v190, %v1236
        %1238 = vmatpush1.msra.mxu0 %v1237
        %1239 = vmatprep.subr.mxu0 0.0
        %v1240 = vand.u32 %v193, 4294901760
        %v1241 = vsub.f32 %v193, %v1240
        %1242 = vmatpush1.msra.mxu0 %v1241
        %1243 = vmatprep.subr.mxu0 0.0
        %1244 = vmatpush1.msra.mxu0 0.0
        %1245 = vmatprep.subr.mxu0 0.0
        %1246 = vmatpush1.msra.mxu0 0.0
        %1247 = vmatprep.subr.mxu0 0.0
        %1248 = vmatpush1.msra.mxu0 0.0
        %1249 = vmatprep.subr.mxu0 0.0
        %1250 = vmatpush1.msra.mxu0 0.0
        %1251 = vmatprep.subr.mxu0 0.0
        %1252 = vmatpush1.msra.mxu0 0.0
        %1253 = vmatprep.subr.mxu0 0.0
        %1254 = vmatpush1.msra.mxu0 0.0
        %1255 = vmatprep.subr.mxu0 0.0
        %1256 = vmatpush1.msra.mxu0 0.0
        %1257 = vmatprep.subr.mxu0 0.0
        %1258 = vmatpush1.msra.mxu0 0.0
        %1259 = vmatprep.subr.mxu0 0.0
        %1260 = vmatpush1.msra.mxu0 0.0
        %1261 = vmatprep.subr.mxu0 0.0
        %1262 = vmatpush1.msra.mxu0 0.0
        %1263 = vmatprep.subr.mxu0 0.0
        %1264 = vmatpush1.msra.mxu0 0.0
        %1265 = vmatprep.subr.mxu0 0.0
        %1266 = vmatpush1.msra.mxu0 0.0
        %1267 = vmatprep.subr.mxu0 0.0
        %1268 = vmatpush1.msra.mxu0 0.0
        %1269 = vmatprep.subr.mxu0 0.0
        %1270 = vmatpush1.msra.mxu0 0.0
        %1271 = vmatprep.subr.mxu0 0.0
        %1272 = vmatpush1.msra.mxu0 0.0
        %1273 = vmatprep.subr.mxu0 0.0
        %1274 = vmatpush1.msra.mxu0 0.0
        %1275 = vmatprep.subr.mxu0 0.0
        %1276 = vmatpush1.msra.mxu0 0.0
        %1277 = vmatprep.subr.mxu0 0.0
        %1278 = vmatpush1.msra.mxu0 0.0
        %1279 = vmatprep.subr.mxu0 0.0
        %1280 = vmatpush1.msra.mxu0 0.0
        %1281 = vmatprep.subr.mxu0 0.0
        %1282 = vmatpush1.msra.mxu0 0.0
        %1283 = vmatprep.subr.mxu0 0.0
        %1284 = vmatpush1.msra.mxu0 0.0
        %1285 = vmatprep.subr.mxu0 0.0
        %1286 = vmatpush1.msra.mxu0 0.0
        %1287 = vmatprep.subr.mxu0 0.0
        %1288 = vmatpush1.msra.mxu0 0.0
        %1289 = vmatprep.mubr.f32.mxu0 0.0
        %v1290 = vand.u32 %v196, 4294901760
        %v1291 = vsub.f32 %v196, %v1290
        %1292 = vmatmul.mubr.f32.gmra.mrb[0].mxu0 %v1291
        %v1293 = vpop.f32.mrb[0].mxu0
        %v1294 = vadd.f32 %v1192, %v1293
        %v1295 = vpop.f32.mrb[0].mxu0
        %1296 = vmatprep.mubr.f32.mxu0 0.0
        %v1297 = vand.u32 %v199, 4294901760
        %v1298 = vsub.f32 %v199, %v1297
        %1299 = vmatmul.mubr.f32.gmra.mrb[0].mxu0 %v1298
        %v1300 = vpop.f32.mrb[0].mxu0
        %v1301 = vadd.f32 %v1198, %v1300
        %v1302 = vpop.f32.mrb[0].mxu0
        %1303 = vmatprep.mubr.f32.mxu0 0.0
        %v1304 = vand.u32 %v202, 4294901760
        %v1305 = vsub.f32 %v202, %v1304
        %1306 = vmatmul.mubr.f32.gmra.mrb[0].mxu0 %v1305
        %v1307 = vpop.f32.mrb[0].mxu0
        %v1308 = vadd.f32 %v1204, %v1307
        %v1309 = vpop.f32.mrb[0].mxu0
        %1310 = vdwg.mxu0
        %1311 = vmatprep.subr.mxu0 0.0
        %v1312 = vand.u32 %v169, 4294901760
        %1313 = vmatpush1.msra.mxu0 %v1312
        %1314 = vmatprep.subr.mxu0 0.0
        %v1315 = vand.u32 %v172, 4294901760
        %1316 = vmatpush1.msra.mxu0 %v1315
        %1317 = vmatprep.subr.mxu0 0.0
        %v1318 = vand.u32 %v175, 4294901760
        %1319 = vmatpush1.msra.mxu0 %v1318
        %1320 = vmatprep.subr.mxu0 0.0
        %v1321 = vand.u32 %v178, 4294901760
        %1322 = vmatpush1.msra.mxu0 %v1321
        %1323 = vmatprep.subr.mxu0 0.0
        %v1324 = vand.u32 %v181, 4294901760
        %1325 = vmatpush1.msra.mxu0 %v1324
        %1326 = vmatprep.subr.mxu0 0.0
        %v1327 = vand.u32 %v184, 4294901760
        %1328 = vmatpush1.msra.mxu0 %v1327
        %1329 = vmatprep.subr.mxu0 0.0
        %v1330 = vand.u32 %v187, 4294901760
        %1331 = vmatpush1.msra.mxu0 %v1330
        %1332 = vmatprep.subr.mxu0 0.0
        %v1333 = vand.u32 %v190, 4294901760
        %1334 = vmatpush1.msra.mxu0 %v1333
        %1335 = vmatprep.subr.mxu0 0.0
        %v1336 = vand.u32 %v193, 4294901760
        %1337 = vmatpush1.msra.mxu0 %v1336
        %1338 = vmatprep.subr.mxu0 0.0
        %1339 = vmatpush1.msra.mxu0 0.0
        %1340 = vmatprep.subr.mxu0 0.0
        %1341 = vmatpush1.msra.mxu0 0.0
        %1342 = vmatprep.subr.mxu0 0.0
        %1343 = vmatpush1.msra.mxu0 0.0
        %1344 = vmatprep.subr.mxu0 0.0
        %1345 = vmatpush1.msra.mxu0 0.0
        %1346 = vmatprep.subr.mxu0 0.0
        %1347 = vmatpush1.msra.mxu0 0.0
        %1348 = vmatprep.subr.mxu0 0.0
        %1349 = vmatpush1.msra.mxu0 0.0
        %1350 = vmatprep.subr.mxu0 0.0
        %1351 = vmatpush1.msra.mxu0 0.0
        %1352 = vmatprep.subr.mxu0 0.0
        %1353 = vmatpush1.msra.mxu0 0.0
        %1354 = vmatprep.subr.mxu0 0.0
        %1355 = vmatpush1.msra.mxu0 0.0
        %1356 = vmatprep.subr.mxu0 0.0
        %1357 = vmatpush1.msra.mxu0 0.0
        %1358 = vmatprep.subr.mxu0 0.0
        %1359 = vmatpush1.msra.mxu0 0.0
        %1360 = vmatprep.subr.mxu0 0.0
        %1361 = vmatpush1.msra.mxu0 0.0
        %1362 = vmatprep.subr.mxu0 0.0
        %1363 = vmatpush1.msra.mxu0 0.0
        %1364 = vmatprep.subr.mxu0 0.0
        %1365 = vmatpush1.msra.mxu0 0.0
        %1366 = vmatprep.subr.mxu0 0.0
        %1367 = vmatpush1.msra.mxu0 0.0
        %1368 = vmatprep.subr.mxu0 0.0
        %1369 = vmatpush1.msra.mxu0 0.0
        %1370 = vmatprep.subr.mxu0 0.0
        %1371 = vmatpush1.msra.mxu0 0.0
        %1372 = vmatprep.subr.mxu0 0.0
        %1373 = vmatpush1.msra.mxu0 0.0
        %1374 = vmatprep.subr.mxu0 0.0
        %1375 = vmatpush1.msra.mxu0 0.0
        %1376 = vmatprep.subr.mxu0 0.0
        %1377 = vmatpush1.msra.mxu0 0.0
        %1378 = vmatprep.subr.mxu0 0.0
        %1379 = vmatpush1.msra.mxu0 0.0
        %1380 = vmatprep.subr.mxu0 0.0
        %1381 = vmatpush1.msra.mxu0 0.0
        %1382 = vmatprep.subr.mxu0 0.0
        %1383 = vmatpush1.msra.mxu0 0.0
        %1384 = vmatprep.mubr.f32.mxu0 0.0
        %v1385 = vand.u32 %v196, 4294901760
        %v1386 = vsub.f32 %v196, %v1385
        %v1387 = vand.u32 %v1386, 4294901760
        %1388 = vmatmul.mubr.f32.gmra.mrb[0].mxu0 %v1387
        %v1389 = vpop.f32.mrb[0].mxu0
        %v1390 = vadd.f32 %v1294, %v1389
        %v1391 = vpop.f32.mrb[0].mxu0
        %1392 = vmatprep.mubr.f32.mxu0 0.0
        %v1393 = vand.u32 %v199, 4294901760
        %v1394 = vsub.f32 %v199, %v1393
        %v1395 = vand.u32 %v1394, 4294901760
        %1396 = vmatmul.mubr.f32.gmra.mrb[0].mxu0 %v1395
        %v1397 = vpop.f32.mrb[0].mxu0
        %v1398 = vadd.f32 %v1301, %v1397
        %v1399 = vpop.f32.mrb[0].mxu0
        %1400 = vmatprep.mubr.f32.mxu0 0.0
        %v1401 = vand.u32 %v202, 4294901760
        %v1402 = vsub.f32 %v202, %v1401
        %v1403 = vand.u32 %v1402, 4294901760
        %1404 = vmatmul.mubr.f32.gmra.mrb[0].mxu0 %v1403
        %v1405 = vpop.f32.mrb[0].mxu0
        %v1406 = vadd.f32 %v1308, %v1405
        %v1407 = vpop.f32.mrb[0].mxu0
        %1408 = vdwg.mxu0
        %1409 = vmatprep.subr.mxu0 0.0
        %v1410 = vand.u32 %v169, 4294901760
        %v1411 = vsub.f32 %v169, %v1410
        %v1412 = vand.u32 %v1411, 4294901760
        %1413 = vmatpush1.msra.mxu0 %v1412
        %1414 = vmatprep.subr.mxu0 0.0
        %v1415 = vand.u32 %v172, 4294901760
        %v1416 = vsub.f32 %v172, %v1415
        %v1417 = vand.u32 %v1416, 4294901760
        %1418 = vmatpush1.msra.mxu0 %v1417
        %1419 = vmatprep.subr.mxu0 0.0
        %v1420 = vand.u32 %v175, 4294901760
        %v1421 = vsub.f32 %v175, %v1420
        %v1422 = vand.u32 %v1421, 4294901760
        %1423 = vmatpush1.msra.mxu0 %v1422
        %1424 = vmatprep.subr.mxu0 0.0
        %v1425 = vand.u32 %v178, 4294901760
        %v1426 = vsub.f32 %v178, %v1425
        %v1427 = vand.u32 %v1426, 4294901760
        %1428 = vmatpush1.msra.mxu0 %v1427
        %1429 = vmatprep.subr.mxu0 0.0
        %v1430 = vand.u32 %v181, 4294901760
        %v1431 = vsub.f32 %v181, %v1430
        %v1432 = vand.u32 %v1431, 4294901760
        %1433 = vmatpush1.msra.mxu0 %v1432
        %1434 = vmatprep.subr.mxu0 0.0
        %v1435 = vand.u32 %v184, 4294901760
        %v1436 = vsub.f32 %v184, %v1435
        %v1437 = vand.u32 %v1436, 4294901760
        %1438 = vmatpush1.msra.mxu0 %v1437
        %1439 = vmatprep.subr.mxu0 0.0
        %v1440 = vand.u32 %v187, 4294901760
        %v1441 = vsub.f32 %v187, %v1440
        %v1442 = vand.u32 %v1441, 4294901760
        %1443 = vmatpush1.msra.mxu0 %v1442
        %1444 = vmatprep.subr.mxu0 0.0
        %v1445 = vand.u32 %v190, 4294901760
        %v1446 = vsub.f32 %v190, %v1445
        %v1447 = vand.u32 %v1446, 4294901760
        %1448 = vmatpush1.msra.mxu0 %v1447
        %1449 = vmatprep.subr.mxu0 0.0
        %v1450 = vand.u32 %v193, 4294901760
        %v1451 = vsub.f32 %v193, %v1450
        %v1452 = vand.u32 %v1451, 4294901760
        %1453 = vmatpush1.msra.mxu0 %v1452
        %1454 = vmatprep.subr.mxu0 0.0
        %1455 = vmatpush1.msra.mxu0 0.0
        %1456 = vmatprep.subr.mxu0 0.0
        %1457 = vmatpush1.msra.mxu0 0.0
        %1458 = vmatprep.subr.mxu0 0.0
        %1459 = vmatpush1.msra.mxu0 0.0
        %1460 = vmatprep.subr.mxu0 0.0
        %1461 = vmatpush1.msra.mxu0 0.0
        %1462 = vmatprep.subr.mxu0 0.0
        %1463 = vmatpush1.msra.mxu0 0.0
        %1464 = vmatprep.subr.mxu0 0.0
        %1465 = vmatpush1.msra.mxu0 0.0
        %1466 = vmatprep.subr.mxu0 0.0
        %1467 = vmatpush1.msra.mxu0 0.0
        %1468 = vmatprep.subr.mxu0 0.0
        %1469 = vmatpush1.msra.mxu0 0.0
        %1470 = vmatprep.subr.mxu0 0.0
        %1471 = vmatpush1.msra.mxu0 0.0
        %1472 = vmatprep.subr.mxu0 0.0
        %1473 = vmatpush1.msra.mxu0 0.0
        %1474 = vmatprep.subr.mxu0 0.0
        %1475 = vmatpush1.msra.mxu0 0.0
        %1476 = vmatprep.subr.mxu0 0.0
        %1477 = vmatpush1.msra.mxu0 0.0
        %1478 = vmatprep.subr.mxu0 0.0
        %1479 = vmatpush1.msra.mxu0 0.0
        %1480 = vmatprep.subr.mxu0 0.0
        %1481 = vmatpush1.msra.mxu0 0.0
        %1482 = vmatprep.subr.mxu0 0.0
        %1483 = vmatpush1.msra.mxu0 0.0
        %1484 = vmatprep.subr.mxu0 0.0
        %1485 = vmatpush1.msra.mxu0 0.0
        %1486 = vmatprep.subr.mxu0 0.0
        %1487 = vmatpush1.msra.mxu0 0.0
        %1488 = vmatprep.subr.mxu0 0.0
        %1489 = vmatpush1.msra.mxu0 0.0
        %1490 = vmatprep.subr.mxu0 0.0
        %1491 = vmatpush1.msra.mxu0 0.0
        %1492 = vmatprep.subr.mxu0 0.0
        %1493 = vmatpush1.msra.mxu0 0.0
        %1494 = vmatprep.subr.mxu0 0.0
        %1495 = vmatpush1.msra.mxu0 0.0
        %1496 = vmatprep.subr.mxu0 0.0
        %1497 = vmatpush1.msra.mxu0 0.0
        %1498 = vmatprep.subr.mxu0 0.0
        %1499 = vmatpush1.msra.mxu0 0.0
        %1500 = vmatprep.mubr.f32.mxu0 0.0
        %v1501 = vand.u32 %v196, 4294901760
        %1502 = vmatmul.mubr.f32.gmra.mrb[0].mxu0 %v1501
        %v1503 = vpop.f32.mrb[0].mxu0
        %v1504 = vadd.f32 %v1390, %v1503
        %v1505 = vpop.f32.mrb[0].mxu0
        %1506 = vmatprep.mubr.f32.mxu0 0.0
        %v1507 = vand.u32 %v199, 4294901760
        %1508 = vmatmul.mubr.f32.gmra.mrb[0].mxu0 %v1507
        %v1509 = vpop.f32.mrb[0].mxu0
        %v1510 = vadd.f32 %v1398, %v1509
        %v1511 = vpop.f32.mrb[0].mxu0
        %1512 = vmatprep.mubr.f32.mxu0 0.0
        %v1513 = vand.u32 %v202, 4294901760
        %1514 = vmatmul.mubr.f32.gmra.mrb[0].mxu0 %v1513
        %v1515 = vpop.f32.mrb[0].mxu0
        %v1516 = vadd.f32 %v1406, %v1515
        %v1517 = vpop.f32.mrb[0].mxu0
        %1518 = vdwg.mxu0
        %1519 = vmatprep.subr.mxu0 0.0
        %v1520 = vand.u32 %v169, 4294901760
        %1521 = vmatpush1.msra.mxu0 %v1520
        %1522 = vmatprep.subr.mxu0 0.0
        %v1523 = vand.u32 %v172, 4294901760
        %1524 = vmatpush1.msra.mxu0 %v1523
        %1525 = vmatprep.subr.mxu0 0.0
        %v1526 = vand.u32 %v175, 4294901760
        %1527 = vmatpush1.msra.mxu0 %v1526
        %1528 = vmatprep.subr.mxu0 0.0
        %v1529 = vand.u32 %v178, 4294901760
        %1530 = vmatpush1.msra.mxu0 %v1529
        %1531 = vmatprep.subr.mxu0 0.0
        %v1532 = vand.u32 %v181, 4294901760
        %1533 = vmatpush1.msra.mxu0 %v1532
        %1534 = vmatprep.subr.mxu0 0.0
        %v1535 = vand.u32 %v184, 4294901760
        %1536 = vmatpush1.msra.mxu0 %v1535
        %1537 = vmatprep.subr.mxu0 0.0
        %v1538 = vand.u32 %v187, 4294901760
        %1539 = vmatpush1.msra.mxu0 %v1538
        %1540 = vmatprep.subr.mxu0 0.0
        %v1541 = vand.u32 %v190, 4294901760
        %1542 = vmatpush1.msra.mxu0 %v1541
        %1543 = vmatprep.subr.mxu0 0.0
        %v1544 = vand.u32 %v193, 4294901760
        %1545 = vmatpush1.msra.mxu0 %v1544
        %1546 = vmatprep.subr.mxu0 0.0
        %1547 = vmatpush1.msra.mxu0 0.0
        %1548 = vmatprep.subr.mxu0 0.0
        %1549 = vmatpush1.msra.mxu0 0.0
        %1550 = vmatprep.subr.mxu0 0.0
        %1551 = vmatpush1.msra.mxu0 0.0
        %1552 = vmatprep.subr.mxu0 0.0
        %1553 = vmatpush1.msra.mxu0 0.0
        %1554 = vmatprep.subr.mxu0 0.0
        %1555 = vmatpush1.msra.mxu0 0.0
        %1556 = vmatprep.subr.mxu0 0.0
        %1557 = vmatpush1.msra.mxu0 0.0
        %1558 = vmatprep.subr.mxu0 0.0
        %1559 = vmatpush1.msra.mxu0 0.0
        %1560 = vmatprep.subr.mxu0 0.0
        %1561 = vmatpush1.msra.mxu0 0.0
        %1562 = vmatprep.subr.mxu0 0.0
        %1563 = vmatpush1.msra.mxu0 0.0
        %1564 = vmatprep.subr.mxu0 0.0
        %1565 = vmatpush1.msra.mxu0 0.0
        %1566 = vmatprep.subr.mxu0 0.0
        %1567 = vmatpush1.msra.mxu0 0.0
        %1568 = vmatprep.subr.mxu0 0.0
        %1569 = vmatpush1.msra.mxu0 0.0
        %1570 = vmatprep.subr.mxu0 0.0
        %1571 = vmatpush1.msra.mxu0 0.0
        %1572 = vmatprep.subr.mxu0 0.0
        %1573 = vmatpush1.msra.mxu0 0.0
        %1574 = vmatprep.subr.mxu0 0.0
        %1575 = vmatpush1.msra.mxu0 0.0
        %1576 = vmatprep.subr.mxu0 0.0
        %1577 = vmatpush1.msra.mxu0 0.0
        %1578 = vmatprep.subr.mxu0 0.0
        %1579 = vmatpush1.msra.mxu0 0.0
        %1580 = vmatprep.subr.mxu0 0.0
        %1581 = vmatpush1.msra.mxu0 0.0
        %1582 = vmatprep.subr.mxu0 0.0
        %1583 = vmatpush1.msra.mxu0 0.0
        %1584 = vmatprep.subr.mxu0 0.0
        %1585 = vmatpush1.msra.mxu0 0.0
        %1586 = vmatprep.subr.mxu0 0.0
        %1587 = vmatpush1.msra.mxu0 0.0
        %1588 = vmatprep.subr.mxu0 0.0
        %1589 = vmatpush1.msra.mxu0 0.0
        %1590 = vmatprep.subr.mxu0 0.0
        %1591 = vmatpush1.msra.mxu0 0.0
        %1592 = vmatprep.mubr.f32.mxu0 0.0
        %v1593 = vand.u32 %v196, 4294901760
        %1594 = vmatmul.mubr.f32.gmra.mrb[0].mxu0 %v1593
        %v1595 = vpop.f32.mrb[0].mxu0
        %v1596 = vadd.f32 %v1504, %v1595
        %v1597 = vpop.f32.mrb[0].mxu0
        %1598 = vmatprep.mubr.f32.mxu0 0.0
        %v1599 = vand.u32 %v199, 4294901760
        %1600 = vmatmul.mubr.f32.gmra.mrb[0].mxu0 %v1599
        %v1601 = vpop.f32.mrb[0].mxu0
        %v1602 = vadd.f32 %v1510, %v1601
        %v1603 = vpop.f32.mrb[0].mxu0
        %1604 = vmatprep.mubr.f32.mxu0 0.0
        %v1605 = vand.u32 %v202, 4294901760
        %1606 = vmatmul.mubr.f32.gmra.mrb[0].mxu0 %v1605
        %v1607 = vpop.f32.mrb[0].mxu0
        %v1608 = vadd.f32 %v1516, %v1607
        %v1609 = vpop.f32.mrb[0].mxu0
        %1610 = vdwg.mxu0
        %v1611 = vld [vmem:[%s2] sm:$0xff]
        %v1612 = vld [vmem:[%s2 + $0x8] sm:$0xff]
        %v1613 = vld [vmem:[%s2 + $0x10] sm:$0xff]
        %v1614 = vld [vmem:[%s2 + $0x18] sm:$0xff]
        %v1615 = vld [vmem:[%s2 + $0x20] sm:$0xff]
        %v1616 = vld [vmem:[%s2 + $0x28] sm:$0xff]
        %v1617 = vld [vmem:[%s2 + $0x30] sm:$0xff]
        %v1618 = vld [vmem:[%s2 + $0x38] sm:$0xff]
        %v1619 = vld [vmem:[%s2 + $0x40] sm:$0xff]
        %v1620 = vld [vmem:[%s2 + $0x48] sm:$0xff]
        %v1621 = vld [vmem:[%s2 + $0x50] sm:$0xff]
        %v1622 = vld [vmem:[%s2 + $0x58] sm:$0xff]
        %v1623 = vld [vmem:[%s2 + $0x60] sm:$0xff]
        %v1624 = vld [vmem:[%s2 + $0x68] sm:$0xff]
        %vm1625 = vcmask 195584
        %v1627 = vsel %vm1625, %v1611, 0
        %v1630 = vsel %vm1625, %v1612, 0
        %v1633 = vsel %vm1625, %v1613, 0
        %v1636 = vsel %vm1625, %v1614, 0
        %v1639 = vsel %vm1625, %v1615, 0
        %v1642 = vsel %vm1625, %v1616, 0
        %v1645 = vsel %vm1625, %v1617, 0
        %v1648 = vsel %vm1625, %v1618, 0
        %v1651 = vsel %vm1625, %v1619, 0
        %v1654 = vsel %vm1625, %v1620, 0
        %v1657 = vsel %vm1625, %v1621, 0
        %v1660 = vsel %vm1625, %v1622, 0
        %v1663 = vsel %vm1625, %v1623, 0
        %v1666 = vsel %vm1625, %v1624, 0
        %v1668 = vand.u32 %v959, 4294901760
        %1669 = vmatprep.subr.mxu0 %v1668
        %v1670 = vand.u32 %v957, 4294901760
        %1671 = vmatpush1.msra.mxu0 %v1670
        %v1672 = vand.u32 %v966, 4294901760
        %1673 = vmatprep.subr.mxu0 %v1672
        %v1674 = vand.u32 %v964, 4294901760
        %1675 = vmatpush1.msra.mxu0 %v1674
        %v1676 = vand.u32 %v973, 4294901760
        %1677 = vmatprep.subr.mxu0 %v1676
        %v1678 = vand.u32 %v971, 4294901760
        %1679 = vmatpush1.msra.mxu0 %v1678
        %1680 = vmatprep.subr.mxu0 0.0
        %1681 = vmatpush1.msra.mxu0 0.0
        %1682 = vmatprep.subr.mxu0 0.0
        %1683 = vmatpush1.msra.mxu0 0.0
        %1684 = vmatprep.subr.mxu0 0.0
        %1685 = vmatpush1.msra.mxu0 0.0
        %1686 = vmatprep.subr.mxu0 0.0
        %1687 = vmatpush1.msra.mxu0 0.0
        %1688 = vmatprep.subr.mxu0 0.0
        %1689 = vmatpush1.msra.mxu0 0.0
        %1690 = vmatprep.subr.mxu0 0.0
        %1691 = vmatpush1.msra.mxu0 0.0
        %1692 = vmatprep.subr.mxu0 0.0
        %1693 = vmatpush1.msra.mxu0 0.0
        %1694 = vmatprep.subr.mxu0 0.0
        %1695 = vmatpush1.msra.mxu0 0.0
        %1696 = vmatprep.subr.mxu0 0.0
        %1697 = vmatpush1.msra.mxu0 0.0
        %1698 = vmatprep.subr.mxu0 0.0
        %1699 = vmatpush1.msra.mxu0 0.0
        %1700 = vmatprep.subr.mxu0 0.0
        %1701 = vmatpush1.msra.mxu0 0.0
        %1702 = vmatprep.subr.mxu0 0.0
        %1703 = vmatpush1.msra.mxu0 0.0
        %1704 = vmatprep.subr.mxu0 0.0
        %1705 = vmatpush1.msra.mxu0 0.0
        %1706 = vmatprep.subr.mxu0 0.0
        %1707 = vmatpush1.msra.mxu0 0.0
        %1708 = vmatprep.subr.mxu0 0.0
        %1709 = vmatpush1.msra.mxu0 0.0
        %1710 = vmatprep.subr.mxu0 0.0
        %1711 = vmatpush1.msra.mxu0 0.0
        %1712 = vmatprep.subr.mxu0 0.0
        %1713 = vmatpush1.msra.mxu0 0.0
        %1714 = vmatprep.subr.mxu0 0.0
        %1715 = vmatpush1.msra.mxu0 0.0
        %1716 = vmatprep.subr.mxu0 0.0
        %1717 = vmatpush1.msra.mxu0 0.0
        %1718 = vmatprep.subr.mxu0 0.0
        %1719 = vmatpush1.msra.mxu0 0.0
        %1720 = vmatprep.subr.mxu0 0.0
        %1721 = vmatpush1.msra.mxu0 0.0
        %1722 = vmatprep.subr.mxu0 0.0
        %1723 = vmatpush1.msra.mxu0 0.0
        %1724 = vmatprep.subr.mxu0 0.0
        %1725 = vmatpush1.msra.mxu0 0.0
        %1726 = vmatprep.subr.mxu0 0.0
        %1727 = vmatpush1.msra.mxu0 0.0
        %1728 = vmatprep.subr.mxu0 0.0
        %1729 = vmatpush1.msra.mxu0 0.0
        %1730 = vmatprep.subr.mxu0 0.0
        %1731 = vmatpush1.msra.mxu0 0.0
        %1732 = vmatprep.subr.mxu0 0.0
        %1733 = vmatpush1.msra.mxu0 0.0
        %1734 = vmatprep.subr.mxu0 0.0
        %1735 = vmatpush1.msra.mxu0 0.0
        %1736 = vmatprep.subr.mxu0 0.0
        %1737 = vmatpush1.msra.mxu0 0.0
        %1738 = vmatprep.mubr.f32.mxu0 0.0
        %v1739 = vand.u32 %v1627, 4294901760
        %v1740 = vsub.f32 %v1627, %v1739
        %v1741 = vand.u32 %v1740, 4294901760
        %v1742 = vsub.f32 %v1740, %v1741
        %v1743 = vand.u32 %v1742, 4294901760
        %1744 = vmatmul.mubr.f32.gmra.mrb[0].mxu0 %v1743
        %v1745 = vpop.f32.mrb[0].mxu0
        %v1746 = vadd.f32 0.0, %v1745
        %v1747 = vpop.f32.mrb[0].mxu0
        %v1748 = vadd.f32 0.0, %v1747
        %1749 = vmatprep.mubr.f32.mxu0 0.0
        %v1750 = vand.u32 %v1630, 4294901760
        %v1751 = vsub.f32 %v1630, %v1750
        %v1752 = vand.u32 %v1751, 4294901760
        %v1753 = vsub.f32 %v1751, %v1752
        %v1754 = vand.u32 %v1753, 4294901760
        %1755 = vmatmul.mubr.f32.gmra.mrb[0].mxu0 %v1754
        %v1756 = vpop.f32.mrb[0].mxu0
        %v1757 = vadd.f32 0.0, %v1756
        %v1758 = vpop.f32.mrb[0].mxu0
        %v1759 = vadd.f32 0.0, %v1758
        %1760 = vmatprep.mubr.f32.mxu0 0.0
        %v1761 = vand.u32 %v1633, 4294901760
        %v1762 = vsub.f32 %v1633, %v1761
        %v1763 = vand.u32 %v1762, 4294901760
        %v1764 = vsub.f32 %v1762, %v1763
        %v1765 = vand.u32 %v1764, 4294901760
        %1766 = vmatmul.mubr.f32.gmra.mrb[0].mxu0 %v1765
        %v1767 = vpop.f32.mrb[0].mxu0
        %v1768 = vadd.f32 0.0, %v1767
        %v1769 = vpop.f32.mrb[0].mxu0
        %v1770 = vadd.f32 0.0, %v1769
        %1771 = vmatprep.mubr.f32.mxu0 0.0
        %v1772 = vand.u32 %v1636, 4294901760
        %v1773 = vsub.f32 %v1636, %v1772
        %v1774 = vand.u32 %v1773, 4294901760
        %v1775 = vsub.f32 %v1773, %v1774
        %v1776 = vand.u32 %v1775, 4294901760
        %1777 = vmatmul.mubr.f32.gmra.mrb[0].mxu0 %v1776
        %v1778 = vpop.f32.mrb[0].mxu0
        %v1779 = vadd.f32 0.0, %v1778
        %v1780 = vpop.f32.mrb[0].mxu0
        %v1781 = vadd.f32 0.0, %v1780
        %1782 = vmatprep.mubr.f32.mxu0 0.0
        %v1783 = vand.u32 %v1639, 4294901760
        %v1784 = vsub.f32 %v1639, %v1783
        %v1785 = vand.u32 %v1784, 4294901760
        %v1786 = vsub.f32 %v1784, %v1785
        %v1787 = vand.u32 %v1786, 4294901760
        %1788 = vmatmul.mubr.f32.gmra.mrb[0].mxu0 %v1787
        %v1789 = vpop.f32.mrb[0].mxu0
        %v1790 = vadd.f32 0.0, %v1789
        %v1791 = vpop.f32.mrb[0].mxu0
        %v1792 = vadd.f32 0.0, %v1791
        %1793 = vmatprep.mubr.f32.mxu0 0.0
        %v1794 = vand.u32 %v1642, 4294901760
        %v1795 = vsub.f32 %v1642, %v1794
        %v1796 = vand.u32 %v1795, 4294901760
        %v1797 = vsub.f32 %v1795, %v1796
        %v1798 = vand.u32 %v1797, 4294901760
        %1799 = vmatmul.mubr.f32.gmra.mrb[0].mxu0 %v1798
        %v1800 = vpop.f32.mrb[0].mxu0
        %v1801 = vadd.f32 0.0, %v1800
        %v1802 = vpop.f32.mrb[0].mxu0
        %v1803 = vadd.f32 0.0, %v1802
        %1804 = vmatprep.mubr.f32.mxu0 0.0
        %v1805 = vand.u32 %v1645, 4294901760
        %v1806 = vsub.f32 %v1645, %v1805
        %v1807 = vand.u32 %v1806, 4294901760
        %v1808 = vsub.f32 %v1806, %v1807
        %v1809 = vand.u32 %v1808, 4294901760
        %1810 = vmatmul.mubr.f32.gmra.mrb[0].mxu0 %v1809
        %v1811 = vpop.f32.mrb[0].mxu0
        %v1812 = vadd.f32 0.0, %v1811
        %v1813 = vpop.f32.mrb[0].mxu0
        %v1814 = vadd.f32 0.0, %v1813
        %1815 = vmatprep.mubr.f32.mxu0 0.0
        %v1816 = vand.u32 %v1648, 4294901760
        %v1817 = vsub.f32 %v1648, %v1816
        %v1818 = vand.u32 %v1817, 4294901760
        %v1819 = vsub.f32 %v1817, %v1818
        %v1820 = vand.u32 %v1819, 4294901760
        %1821 = vmatmul.mubr.f32.gmra.mrb[0].mxu0 %v1820
        %v1822 = vpop.f32.mrb[0].mxu0
        %v1823 = vadd.f32 0.0, %v1822
        %v1824 = vpop.f32.mrb[0].mxu0
        %v1825 = vadd.f32 0.0, %v1824
        %1826 = vmatprep.mubr.f32.mxu0 0.0
        %v1827 = vand.u32 %v1651, 4294901760
        %v1828 = vsub.f32 %v1651, %v1827
        %v1829 = vand.u32 %v1828, 4294901760
        %v1830 = vsub.f32 %v1828, %v1829
        %v1831 = vand.u32 %v1830, 4294901760
        %1832 = vmatmul.mubr.f32.gmra.mrb[0].mxu0 %v1831
        %v1833 = vpop.f32.mrb[0].mxu0
        %v1834 = vadd.f32 0.0, %v1833
        %v1835 = vpop.f32.mrb[0].mxu0
        %v1836 = vadd.f32 0.0, %v1835
        %1837 = vmatprep.mubr.f32.mxu0 0.0
        %v1838 = vand.u32 %v1654, 4294901760
        %v1839 = vsub.f32 %v1654, %v1838
        %v1840 = vand.u32 %v1839, 4294901760
        %v1841 = vsub.f32 %v1839, %v1840
        %v1842 = vand.u32 %v1841, 4294901760
        %1843 = vmatmul.mubr.f32.gmra.mrb[0].mxu0 %v1842
        %v1844 = vpop.f32.mrb[0].mxu0
        %v1845 = vadd.f32 0.0, %v1844
        %v1846 = vpop.f32.mrb[0].mxu0
        %v1847 = vadd.f32 0.0, %v1846
        %1848 = vmatprep.mubr.f32.mxu0 0.0
        %v1849 = vand.u32 %v1657, 4294901760
        %v1850 = vsub.f32 %v1657, %v1849
        %v1851 = vand.u32 %v1850, 4294901760
        %v1852 = vsub.f32 %v1850, %v1851
        %v1853 = vand.u32 %v1852, 4294901760
        %1854 = vmatmul.mubr.f32.gmra.mrb[0].mxu0 %v1853
        %v1855 = vpop.f32.mrb[0].mxu0
        %v1856 = vadd.f32 0.0, %v1855
        %v1857 = vpop.f32.mrb[0].mxu0
        %v1858 = vadd.f32 0.0, %v1857
        %1859 = vmatprep.mubr.f32.mxu0 0.0
        %v1860 = vand.u32 %v1660, 4294901760
        %v1861 = vsub.f32 %v1660, %v1860
        %v1862 = vand.u32 %v1861, 4294901760
        %v1863 = vsub.f32 %v1861, %v1862
        %v1864 = vand.u32 %v1863, 4294901760
        %1865 = vmatmul.mubr.f32.gmra.mrb[0].mxu0 %v1864
        %v1866 = vpop.f32.mrb[0].mxu0
        %v1867 = vadd.f32 0.0, %v1866
        %v1868 = vpop.f32.mrb[0].mxu0
        %v1869 = vadd.f32 0.0, %v1868
        %1870 = vmatprep.mubr.f32.mxu0 0.0
        %v1871 = vand.u32 %v1663, 4294901760
        %v1872 = vsub.f32 %v1663, %v1871
        %v1873 = vand.u32 %v1872, 4294901760
        %v1874 = vsub.f32 %v1872, %v1873
        %v1875 = vand.u32 %v1874, 4294901760
        %1876 = vmatmul.mubr.f32.gmra.mrb[0].mxu0 %v1875
        %v1877 = vpop.f32.mrb[0].mxu0
        %v1878 = vadd.f32 0.0, %v1877
        %v1879 = vpop.f32.mrb[0].mxu0
        %v1880 = vadd.f32 0.0, %v1879
        %1881 = vmatprep.mubr.f32.mxu0 0.0
        %v1882 = vand.u32 %v1666, 4294901760
        %v1883 = vsub.f32 %v1666, %v1882
        %v1884 = vand.u32 %v1883, 4294901760
        %v1885 = vsub.f32 %v1883, %v1884
        %v1886 = vand.u32 %v1885, 4294901760
        %1887 = vmatmul.mubr.f32.gmra.mrb[0].mxu0 %v1886
        %v1888 = vpop.f32.mrb[0].mxu0
        %v1889 = vadd.f32 0.0, %v1888
        %v1890 = vpop.f32.mrb[0].mxu0
        %v1891 = vadd.f32 0.0, %v1890
        %1892 = vdwg.mxu0
        %v1893 = vand.u32 %v959, 4294901760
        %v1894 = vsub.f32 %v959, %v1893
        %v1895 = vand.u32 %v1894, 4294901760
        %v1896 = vsub.f32 %v1894, %v1895
        %v1897 = vand.u32 %v1896, 4294901760
        %1898 = vmatprep.subr.mxu0 %v1897
        %v1899 = vand.u32 %v957, 4294901760
        %v1900 = vsub.f32 %v957, %v1899
        %v1901 = vand.u32 %v1900, 4294901760
        %v1902 = vsub.f32 %v1900, %v1901
        %v1903 = vand.u32 %v1902, 4294901760
        %1904 = vmatpush1.msra.mxu0 %v1903
        %v1905 = vand.u32 %v966, 4294901760
        %v1906 = vsub.f32 %v966, %v1905
        %v1907 = vand.u32 %v1906, 4294901760
        %v1908 = vsub.f32 %v1906, %v1907
        %v1909 = vand.u32 %v1908, 4294901760
        %1910 = vmatprep.subr.mxu0 %v1909
        %v1911 = vand.u32 %v964, 4294901760
        %v1912 = vsub.f32 %v964, %v1911
        %v1913 = vand.u32 %v1912, 4294901760
        %v1914 = vsub.f32 %v1912, %v1913
        %v1915 = vand.u32 %v1914, 4294901760
        %1916 = vmatpush1.msra.mxu0 %v1915
        %v1917 = vand.u32 %v973, 4294901760
        %v1918 = vsub.f32 %v973, %v1917
        %v1919 = vand.u32 %v1918, 4294901760
        %v1920 = vsub.f32 %v1918, %v1919
        %v1921 = vand.u32 %v1920, 4294901760
        %1922 = vmatprep.subr.mxu0 %v1921
        %v1923 = vand.u32 %v971, 4294901760
        %v1924 = vsub.f32 %v971, %v1923
        %v1925 = vand.u32 %v1924, 4294901760
        %v1926 = vsub.f32 %v1924, %v1925
        %v1927 = vand.u32 %v1926, 4294901760
        %1928 = vmatpush1.msra.mxu0 %v1927
        %1929 = vmatprep.subr.mxu0 0.0
        %1930 = vmatpush1.msra.mxu0 0.0
        %1931 = vmatprep.subr.mxu0 0.0
        %1932 = vmatpush1.msra.mxu0 0.0
        %1933 = vmatprep.subr.mxu0 0.0
        %1934 = vmatpush1.msra.mxu0 0.0
        %1935 = vmatprep.subr.mxu0 0.0
        %1936 = vmatpush1.msra.mxu0 0.0
        %1937 = vmatprep.subr.mxu0 0.0
        %1938 = vmatpush1.msra.mxu0 0.0
        %1939 = vmatprep.subr.mxu0 0.0
        %1940 = vmatpush1.msra.mxu0 0.0
        %1941 = vmatprep.subr.mxu0 0.0
        %1942 = vmatpush1.msra.mxu0 0.0
        %1943 = vmatprep.subr.mxu0 0.0
        %1944 = vmatpush1.msra.mxu0 0.0
        %1945 = vmatprep.subr.mxu0 0.0
        %1946 = vmatpush1.msra.mxu0 0.0
        %1947 = vmatprep.subr.mxu0 0.0
        %1948 = vmatpush1.msra.mxu0 0.0
        %1949 = vmatprep.subr.mxu0 0.0
        %1950 = vmatpush1.msra.mxu0 0.0
        %1951 = vmatprep.subr.mxu0 0.0
        %1952 = vmatpush1.msra.mxu0 0.0
        %1953 = vmatprep.subr.mxu0 0.0
        %1954 = vmatpush1.msra.mxu0 0.0
        %1955 = vmatprep.subr.mxu0 0.0
        %1956 = vmatpush1.msra.mxu0 0.0
        %1957 = vmatprep.subr.mxu0 0.0
        %1958 = vmatpush1.msra.mxu0 0.0
        %1959 = vmatprep.subr.mxu0 0.0
        %1960 = vmatpush1.msra.mxu0 0.0
        %1961 = vmatprep.subr.mxu0 0.0
        %1962 = vmatpush1.msra.mxu0 0.0
        %1963 = vmatprep.subr.mxu0 0.0
        %1964 = vmatpush1.msra.mxu0 0.0
        %1965 = vmatprep.subr.mxu0 0.0
        %1966 = vmatpush1.msra.mxu0 0.0
        %1967 = vmatprep.subr.mxu0 0.0
        %1968 = vmatpush1.msra.mxu0 0.0
        %1969 = vmatprep.subr.mxu0 0.0
        %1970 = vmatpush1.msra.mxu0 0.0
        %1971 = vmatprep.subr.mxu0 0.0
        %1972 = vmatpush1.msra.mxu0 0.0
        %1973 = vmatprep.subr.mxu0 0.0
        %1974 = vmatpush1.msra.mxu0 0.0
        %1975 = vmatprep.subr.mxu0 0.0
        %1976 = vmatpush1.msra.mxu0 0.0
        %1977 = vmatprep.subr.mxu0 0.0
        %1978 = vmatpush1.msra.mxu0 0.0
        %1979 = vmatprep.subr.mxu0 0.0
        %1980 = vmatpush1.msra.mxu0 0.0
        %1981 = vmatprep.subr.mxu0 0.0
        %1982 = vmatpush1.msra.mxu0 0.0
        %1983 = vmatprep.subr.mxu0 0.0
        %1984 = vmatpush1.msra.mxu0 0.0
        %1985 = vmatprep.subr.mxu0 0.0
        %1986 = vmatpush1.msra.mxu0 0.0
        %1987 = vmatprep.mubr.f32.mxu0 0.0
        %v1988 = vand.u32 %v1627, 4294901760
        %1989 = vmatmul.mubr.f32.gmra.mrb[0].mxu0 %v1988
        %v1990 = vpop.f32.mrb[0].mxu0
        %v1991 = vadd.f32 %v1746, %v1990
        %v1992 = vpop.f32.mrb[0].mxu0
        %v1993 = vadd.f32 %v1748, %v1992
        %1994 = vmatprep.mubr.f32.mxu0 0.0
        %v1995 = vand.u32 %v1630, 4294901760
        %1996 = vmatmul.mubr.f32.gmra.mrb[0].mxu0 %v1995
        %v1997 = vpop.f32.mrb[0].mxu0
        %v1998 = vadd.f32 %v1757, %v1997
        %v1999 = vpop.f32.mrb[0].mxu0
        %v2000 = vadd.f32 %v1759, %v1999
        %2001 = vmatprep.mubr.f32.mxu0 0.0
        %v2002 = vand.u32 %v1633, 4294901760
        %2003 = vmatmul.mubr.f32.gmra.mrb[0].mxu0 %v2002
        %v2004 = vpop.f32.mrb[0].mxu0
        %v2005 = vadd.f32 %v1768, %v2004
        %v2006 = vpop.f32.mrb[0].mxu0
        %v2007 = vadd.f32 %v1770, %v2006
        %2008 = vmatprep.mubr.f32.mxu0 0.0
        %v2009 = vand.u32 %v1636, 4294901760
        %2010 = vmatmul.mubr.f32.gmra.mrb[0].mxu0 %v2009
        %v2011 = vpop.f32.mrb[0].mxu0
        %v2012 = vadd.f32 %v1779, %v2011
        %v2013 = vpop.f32.mrb[0].mxu0
        %v2014 = vadd.f32 %v1781, %v2013
        %2015 = vmatprep.mubr.f32.mxu0 0.0
        %v2016 = vand.u32 %v1639, 4294901760
        %2017 = vmatmul.mubr.f32.gmra.mrb[0].mxu0 %v2016
        %v2018 = vpop.f32.mrb[0].mxu0
        %v2019 = vadd.f32 %v1790, %v2018
        %v2020 = vpop.f32.mrb[0].mxu0
        %v2021 = vadd.f32 %v1792, %v2020
        %2022 = vmatprep.mubr.f32.mxu0 0.0
        %v2023 = vand.u32 %v1642, 4294901760
        %2024 = vmatmul.mubr.f32.gmra.mrb[0].mxu0 %v2023
        %v2025 = vpop.f32.mrb[0].mxu0
        %v2026 = vadd.f32 %v1801, %v2025
        %v2027 = vpop.f32.mrb[0].mxu0
        %v2028 = vadd.f32 %v1803, %v2027
        %2029 = vmatprep.mubr.f32.mxu0 0.0
        %v2030 = vand.u32 %v1645, 4294901760
        %2031 = vmatmul.mubr.f32.gmra.mrb[0].mxu0 %v2030
        %v2032 = vpop.f32.mrb[0].mxu0
        %v2033 = vadd.f32 %v1812, %v2032
        %v2034 = vpop.f32.mrb[0].mxu0
        %v2035 = vadd.f32 %v1814, %v2034
        %2036 = vmatprep.mubr.f32.mxu0 0.0
        %v2037 = vand.u32 %v1648, 4294901760
        %2038 = vmatmul.mubr.f32.gmra.mrb[0].mxu0 %v2037
        %v2039 = vpop.f32.mrb[0].mxu0
        %v2040 = vadd.f32 %v1823, %v2039
        %v2041 = vpop.f32.mrb[0].mxu0
        %v2042 = vadd.f32 %v1825, %v2041
        %2043 = vmatprep.mubr.f32.mxu0 0.0
        %v2044 = vand.u32 %v1651, 4294901760
        %2045 = vmatmul.mubr.f32.gmra.mrb[0].mxu0 %v2044
        %v2046 = vpop.f32.mrb[0].mxu0
        %v2047 = vadd.f32 %v1834, %v2046
        %v2048 = vpop.f32.mrb[0].mxu0
        %v2049 = vadd.f32 %v1836, %v2048
        %2050 = vmatprep.mubr.f32.mxu0 0.0
        %v2051 = vand.u32 %v1654, 4294901760
        %2052 = vmatmul.mubr.f32.gmra.mrb[0].mxu0 %v2051
        %v2053 = vpop.f32.mrb[0].mxu0
        %v2054 = vadd.f32 %v1845, %v2053
        %v2055 = vpop.f32.mrb[0].mxu0
        %v2056 = vadd.f32 %v1847, %v2055
        %2057 = vmatprep.mubr.f32.mxu0 0.0
        %v2058 = vand.u32 %v1657, 4294901760
        %2059 = vmatmul.mubr.f32.gmra.mrb[0].mxu0 %v2058
        %v2060 = vpop.f32.mrb[0].mxu0
        %v2061 = vadd.f32 %v1856, %v2060
        %v2062 = vpop.f32.mrb[0].mxu0
        %v2063 = vadd.f32 %v1858, %v2062
        %2064 = vmatprep.mubr.f32.mxu0 0.0
        %v2065 = vand.u32 %v1660, 4294901760
        %2066 = vmatmul.mubr.f32.gmra.mrb[0].mxu0 %v2065
        %v2067 = vpop.f32.mrb[0].mxu0
        %v2068 = vadd.f32 %v1867, %v2067
        %v2069 = vpop.f32.mrb[0].mxu0
        %v2070 = vadd.f32 %v1869, %v2069
        %2071 = vmatprep.mubr.f32.mxu0 0.0
        %v2072 = vand.u32 %v1663, 4294901760
        %2073 = vmatmul.mubr.f32.gmra.mrb[0].mxu0 %v2072
        %v2074 = vpop.f32.mrb[0].mxu0
        %v2075 = vadd.f32 %v1878, %v2074
        %v2076 = vpop.f32.mrb[0].mxu0
        %v2077 = vadd.f32 %v1880, %v2076
        %2078 = vmatprep.mubr.f32.mxu0 0.0
        %v2079 = vand.u32 %v1666, 4294901760
        %2080 = vmatmul.mubr.f32.gmra.mrb[0].mxu0 %v2079
        %v2081 = vpop.f32.mrb[0].mxu0
        %v2082 = vadd.f32 %v1889, %v2081
        %v2083 = vpop.f32.mrb[0].mxu0
        %v2084 = vadd.f32 %v1891, %v2083
        %2085 = vdwg.mxu0
        %v2086 = vand.u32 %v959, 4294901760
        %v2087 = vsub.f32 %v959, %v2086
        %2088 = vmatprep.subr.mxu0 %v2087
        %v2089 = vand.u32 %v957, 4294901760
        %v2090 = vsub.f32 %v957, %v2089
        %2091 = vmatpush1.msra.mxu0 %v2090
        %v2092 = vand.u32 %v966, 4294901760
        %v2093 = vsub.f32 %v966, %v2092
        %2094 = vmatprep.subr.mxu0 %v2093
        %v2095 = vand.u32 %v964, 4294901760
        %v2096 = vsub.f32 %v964, %v2095
        %2097 = vmatpush1.msra.mxu0 %v2096
        %v2098 = vand.u32 %v973, 4294901760
        %v2099 = vsub.f32 %v973, %v2098
        %2100 = vmatprep.subr.mxu0 %v2099
        %v2101 = vand.u32 %v971, 4294901760
        %v2102 = vsub.f32 %v971, %v2101
        %2103 = vmatpush1.msra.mxu0 %v2102
        %2104 = vmatprep.subr.mxu0 0.0
        %2105 = vmatpush1.msra.mxu0 0.0
        %2106 = vmatprep.subr.mxu0 0.0
        %2107 = vmatpush1.msra.mxu0 0.0
        %2108 = vmatprep.subr.mxu0 0.0
        %2109 = vmatpush1.msra.mxu0 0.0
        %2110 = vmatprep.subr.mxu0 0.0
        %2111 = vmatpush1.msra.mxu0 0.0
        %2112 = vmatprep.subr.mxu0 0.0
        %2113 = vmatpush1.msra.mxu0 0.0
        %2114 = vmatprep.subr.mxu0 0.0
        %2115 = vmatpush1.msra.mxu0 0.0
        %2116 = vmatprep.subr.mxu0 0.0
        %2117 = vmatpush1.msra.mxu0 0.0
        %2118 = vmatprep.subr.mxu0 0.0
        %2119 = vmatpush1.msra.mxu0 0.0
        %2120 = vmatprep.subr.mxu0 0.0
        %2121 = vmatpush1.msra.mxu0 0.0
        %2122 = vmatprep.subr.mxu0 0.0
        %2123 = vmatpush1.msra.mxu0 0.0
        %2124 = vmatprep.subr.mxu0 0.0
        %2125 = vmatpush1.msra.mxu0 0.0
        %2126 = vmatprep.subr.mxu0 0.0
        %2127 = vmatpush1.msra.mxu0 0.0
        %2128 = vmatprep.subr.mxu0 0.0
        %2129 = vmatpush1.msra.mxu0 0.0
        %2130 = vmatprep.subr.mxu0 0.0
        %2131 = vmatpush1.msra.mxu0 0.0
        %2132 = vmatprep.subr.mxu0 0.0
        %2133 = vmatpush1.msra.mxu0 0.0
        %2134 = vmatprep.subr.mxu0 0.0
        %2135 = vmatpush1.msra.mxu0 0.0
        %2136 = vmatprep.subr.mxu0 0.0
        %2137 = vmatpush1.msra.mxu0 0.0
        %2138 = vmatprep.subr.mxu0 0.0
        %2139 = vmatpush1.msra.mxu0 0.0
        %2140 = vmatprep.subr.mxu0 0.0
        %2141 = vmatpush1.msra.mxu0 0.0
        %2142 = vmatprep.subr.mxu0 0.0
        %2143 = vmatpush1.msra.mxu0 0.0
        %2144 = vmatprep.subr.mxu0 0.0
        %2145 = vmatpush1.msra.mxu0 0.0
        %2146 = vmatprep.subr.mxu0 0.0
        %2147 = vmatpush1.msra.mxu0 0.0
        %2148 = vmatprep.subr.mxu0 0.0
        %2149 = vmatpush1.msra.mxu0 0.0
        %2150 = vmatprep.subr.mxu0 0.0
        %2151 = vmatpush1.msra.mxu0 0.0
        %2152 = vmatprep.subr.mxu0 0.0
        %2153 = vmatpush1.msra.mxu0 0.0
        %2154 = vmatprep.subr.mxu0 0.0
        %2155 = vmatpush1.msra.mxu0 0.0
        %2156 = vmatprep.subr.mxu0 0.0
        %2157 = vmatpush1.msra.mxu0 0.0
        %2158 = vmatprep.subr.mxu0 0.0
        %2159 = vmatpush1.msra.mxu0 0.0
        %2160 = vmatprep.subr.mxu0 0.0
        %2161 = vmatpush1.msra.mxu0 0.0
        %2162 = vmatprep.mubr.f32.mxu0 0.0
        %v2163 = vand.u32 %v1627, 4294901760
        %v2164 = vsub.f32 %v1627, %v2163
        %2165 = vmatmul.mubr.f32.gmra.mrb[0].mxu0 %v2164
        %v2166 = vpop.f32.mrb[0].mxu0
        %v2167 = vadd.f32 %v1991, %v2166
        %v2168 = vpop.f32.mrb[0].mxu0
        %v2169 = vadd.f32 %v1993, %v2168
        %2170 = vmatprep.mubr.f32.mxu0 0.0
        %v2171 = vand.u32 %v1630, 4294901760
        %v2172 = vsub.f32 %v1630, %v2171
        %2173 = vmatmul.mubr.f32.gmra.mrb[0].mxu0 %v2172
        %v2174 = vpop.f32.mrb[0].mxu0
        %v2175 = vadd.f32 %v1998, %v2174
        %v2176 = vpop.f32.mrb[0].mxu0
        %v2177 = vadd.f32 %v2000, %v2176
        %2178 = vmatprep.mubr.f32.mxu0 0.0
        %v2179 = vand.u32 %v1633, 4294901760
        %v2180 = vsub.f32 %v1633, %v2179
        %2181 = vmatmul.mubr.f32.gmra.mrb[0].mxu0 %v2180
        %v2182 = vpop.f32.mrb[0].mxu0
        %v2183 = vadd.f32 %v2005, %v2182
        %v2184 = vpop.f32.mrb[0].mxu0
        %v2185 = vadd.f32 %v2007, %v2184
        %2186 = vmatprep.mubr.f32.mxu0 0.0
        %v2187 = vand.u32 %v1636, 4294901760
        %v2188 = vsub.f32 %v1636, %v2187
        %2189 = vmatmul.mubr.f32.gmra.mrb[0].mxu0 %v2188
        %v2190 = vpop.f32.mrb[0].mxu0
        %v2191 = vadd.f32 %v2012, %v2190
        %v2192 = vpop.f32.mrb[0].mxu0
        %v2193 = vadd.f32 %v2014, %v2192
        %2194 = vmatprep.mubr.f32.mxu0 0.0
        %v2195 = vand.u32 %v1639, 4294901760
        %v2196 = vsub.f32 %v1639, %v2195
        %2197 = vmatmul.mubr.f32.gmra.mrb[0].mxu0 %v2196
        %v2198 = vpop.f32.mrb[0].mxu0
        %v2199 = vadd.f32 %v2019, %v2198
        %v2200 = vpop.f32.mrb[0].mxu0
        %v2201 = vadd.f32 %v2021, %v2200
        %2202 = vmatprep.mubr.f32.mxu0 0.0
        %v2203 = vand.u32 %v1642, 4294901760
        %v2204 = vsub.f32 %v1642, %v2203
        %2205 = vmatmul.mubr.f32.gmra.mrb[0].mxu0 %v2204
        %v2206 = vpop.f32.mrb[0].mxu0
        %v2207 = vadd.f32 %v2026, %v2206
        %v2208 = vpop.f32.mrb[0].mxu0
        %v2209 = vadd.f32 %v2028, %v2208
        %2210 = vmatprep.mubr.f32.mxu0 0.0
        %v2211 = vand.u32 %v1645, 4294901760
        %v2212 = vsub.f32 %v1645, %v2211
        %2213 = vmatmul.mubr.f32.gmra.mrb[0].mxu0 %v2212
        %v2214 = vpop.f32.mrb[0].mxu0
        %v2215 = vadd.f32 %v2033, %v2214
        %v2216 = vpop.f32.mrb[0].mxu0
        %v2217 = vadd.f32 %v2035, %v2216
        %2218 = vmatprep.mubr.f32.mxu0 0.0
        %v2219 = vand.u32 %v1648, 4294901760
        %v2220 = vsub.f32 %v1648, %v2219
        %2221 = vmatmul.mubr.f32.gmra.mrb[0].mxu0 %v2220
        %v2222 = vpop.f32.mrb[0].mxu0
        %v2223 = vadd.f32 %v2040, %v2222
        %v2224 = vpop.f32.mrb[0].mxu0
        %v2225 = vadd.f32 %v2042, %v2224
        %2226 = vmatprep.mubr.f32.mxu0 0.0
        %v2227 = vand.u32 %v1651, 4294901760
        %v2228 = vsub.f32 %v1651, %v2227
        %2229 = vmatmul.mubr.f32.gmra.mrb[0].mxu0 %v2228
        %v2230 = vpop.f32.mrb[0].mxu0
        %v2231 = vadd.f32 %v2047, %v2230
        %v2232 = vpop.f32.mrb[0].mxu0
        %v2233 = vadd.f32 %v2049, %v2232
        %2234 = vmatprep.mubr.f32.mxu0 0.0
        %v2235 = vand.u32 %v1654, 4294901760
        %v2236 = vsub.f32 %v1654, %v2235
        %2237 = vmatmul.mubr.f32.gmra.mrb[0].mxu0 %v2236
        %v2238 = vpop.f32.mrb[0].mxu0
        %v2239 = vadd.f32 %v2054, %v2238
        %v2240 = vpop.f32.mrb[0].mxu0
        %v2241 = vadd.f32 %v2056, %v2240
        %2242 = vmatprep.mubr.f32.mxu0 0.0
        %v2243 = vand.u32 %v1657, 4294901760
        %v2244 = vsub.f32 %v1657, %v2243
        %2245 = vmatmul.mubr.f32.gmra.mrb[0].mxu0 %v2244
        %v2246 = vpop.f32.mrb[0].mxu0
        %v2247 = vadd.f32 %v2061, %v2246
        %v2248 = vpop.f32.mrb[0].mxu0
        %v2249 = vadd.f32 %v2063, %v2248
        %2250 = vmatprep.mubr.f32.mxu0 0.0
        %v2251 = vand.u32 %v1660, 4294901760
        %v2252 = vsub.f32 %v1660, %v2251
        %2253 = vmatmul.mubr.f32.gmra.mrb[0].mxu0 %v2252
        %v2254 = vpop.f32.mrb[0].mxu0
        %v2255 = vadd.f32 %v2068, %v2254
        %v2256 = vpop.f32.mrb[0].mxu0
        %v2257 = vadd.f32 %v2070, %v2256
        %2258 = vmatprep.mubr.f32.mxu0 0.0
        %v2259 = vand.u32 %v1663, 4294901760
        %v2260 = vsub.f32 %v1663, %v2259
        %2261 = vmatmul.mubr.f32.gmra.mrb[0].mxu0 %v2260
        %v2262 = vpop.f32.mrb[0].mxu0
        %v2263 = vadd.f32 %v2075, %v2262
        %v2264 = vpop.f32.mrb[0].mxu0
        %v2265 = vadd.f32 %v2077, %v2264
        %2266 = vmatprep.mubr.f32.mxu0 0.0
        %v2267 = vand.u32 %v1666, 4294901760
        %v2268 = vsub.f32 %v1666, %v2267
        %2269 = vmatmul.mubr.f32.gmra.mrb[0].mxu0 %v2268
        %v2270 = vpop.f32.mrb[0].mxu0
        %v2271 = vadd.f32 %v2082, %v2270
        %v2272 = vpop.f32.mrb[0].mxu0
        %v2273 = vadd.f32 %v2084, %v2272
        %2274 = vdwg.mxu0
        %v2275 = vand.u32 %v959, 4294901760
        %2276 = vmatprep.subr.mxu0 %v2275
        %v2277 = vand.u32 %v957, 4294901760
        %2278 = vmatpush1.msra.mxu0 %v2277
        %v2279 = vand.u32 %v966, 4294901760
        %2280 = vmatprep.subr.mxu0 %v2279
        %v2281 = vand.u32 %v964, 4294901760
        %2282 = vmatpush1.msra.mxu0 %v2281
        %v2283 = vand.u32 %v973, 4294901760
        %2284 = vmatprep.subr.mxu0 %v2283
        %v2285 = vand.u32 %v971, 4294901760
        %2286 = vmatpush1.msra.mxu0 %v2285
        %2287 = vmatprep.subr.mxu0 0.0
        %2288 = vmatpush1.msra.mxu0 0.0
        %2289 = vmatprep.subr.mxu0 0.0
        %2290 = vmatpush1.msra.mxu0 0.0
        %2291 = vmatprep.subr.mxu0 0.0
        %2292 = vmatpush1.msra.mxu0 0.0
        %2293 = vmatprep.subr.mxu0 0.0
        %2294 = vmatpush1.msra.mxu0 0.0
        %2295 = vmatprep.subr.mxu0 0.0
        %2296 = vmatpush1.msra.mxu0 0.0
        %2297 = vmatprep.subr.mxu0 0.0
        %2298 = vmatpush1.msra.mxu0 0.0
        %2299 = vmatprep.subr.mxu0 0.0
        %2300 = vmatpush1.msra.mxu0 0.0
        %2301 = vmatprep.subr.mxu0 0.0
        %2302 = vmatpush1.msra.mxu0 0.0
        %2303 = vmatprep.subr.mxu0 0.0
        %2304 = vmatpush1.msra.mxu0 0.0
        %2305 = vmatprep.subr.mxu0 0.0
        %2306 = vmatpush1.msra.mxu0 0.0
        %2307 = vmatprep.subr.mxu0 0.0
        %2308 = vmatpush1.msra.mxu0 0.0
        %2309 = vmatprep.subr.mxu0 0.0
        %2310 = vmatpush1.msra.mxu0 0.0
        %2311 = vmatprep.subr.mxu0 0.0
        %2312 = vmatpush1.msra.mxu0 0.0
        %2313 = vmatprep.subr.mxu0 0.0
        %2314 = vmatpush1.msra.mxu0 0.0
        %2315 = vmatprep.subr.mxu0 0.0
        %2316 = vmatpush1.msra.mxu0 0.0
        %2317 = vmatprep.subr.mxu0 0.0
        %2318 = vmatpush1.msra.mxu0 0.0
        %2319 = vmatprep.subr.mxu0 0.0
        %2320 = vmatpush1.msra.mxu0 0.0
        %2321 = vmatprep.subr.mxu0 0.0
        %2322 = vmatpush1.msra.mxu0 0.0
        %2323 = vmatprep.subr.mxu0 0.0
        %2324 = vmatpush1.msra.mxu0 0.0
        %2325 = vmatprep.subr.mxu0 0.0
        %2326 = vmatpush1.msra.mxu0 0.0
        %2327 = vmatprep.subr.mxu0 0.0
        %2328 = vmatpush1.msra.mxu0 0.0
        %2329 = vmatprep.subr.mxu0 0.0
        %2330 = vmatpush1.msra.mxu0 0.0
        %2331 = vmatprep.subr.mxu0 0.0
        %2332 = vmatpush1.msra.mxu0 0.0
        %2333 = vmatprep.subr.mxu0 0.0
        %2334 = vmatpush1.msra.mxu0 0.0
        %2335 = vmatprep.subr.mxu0 0.0
        %2336 = vmatpush1.msra.mxu0 0.0
        %2337 = vmatprep.subr.mxu0 0.0
        %2338 = vmatpush1.msra.mxu0 0.0
        %2339 = vmatprep.subr.mxu0 0.0
        %2340 = vmatpush1.msra.mxu0 0.0
        %2341 = vmatprep.subr.mxu0 0.0
        %2342 = vmatpush1.msra.mxu0 0.0
        %2343 = vmatprep.subr.mxu0 0.0
        %2344 = vmatpush1.msra.mxu0 0.0
        %2345 = vmatprep.mubr.f32.mxu0 0.0
        %v2346 = vand.u32 %v1627, 4294901760
        %v2347 = vsub.f32 %v1627, %v2346
        %v2348 = vand.u32 %v2347, 4294901760
        %2349 = vmatmul.mubr.f32.gmra.mrb[0].mxu0 %v2348
        %v2350 = vpop.f32.mrb[0].mxu0
        %v2351 = vadd.f32 %v2167, %v2350
        %v2352 = vpop.f32.mrb[0].mxu0
        %v2353 = vadd.f32 %v2169, %v2352
        %2354 = vmatprep.mubr.f32.mxu0 0.0
        %v2355 = vand.u32 %v1630, 4294901760
        %v2356 = vsub.f32 %v1630, %v2355
        %v2357 = vand.u32 %v2356, 4294901760
        %2358 = vmatmul.mubr.f32.gmra.mrb[0].mxu0 %v2357
        %v2359 = vpop.f32.mrb[0].mxu0
        %v2360 = vadd.f32 %v2175, %v2359
        %v2361 = vpop.f32.mrb[0].mxu0
        %v2362 = vadd.f32 %v2177, %v2361
        %2363 = vmatprep.mubr.f32.mxu0 0.0
        %v2364 = vand.u32 %v1633, 4294901760
        %v2365 = vsub.f32 %v1633, %v2364
        %v2366 = vand.u32 %v2365, 4294901760
        %2367 = vmatmul.mubr.f32.gmra.mrb[0].mxu0 %v2366
        %v2368 = vpop.f32.mrb[0].mxu0
        %v2369 = vadd.f32 %v2183, %v2368
        %v2370 = vpop.f32.mrb[0].mxu0
        %v2371 = vadd.f32 %v2185, %v2370
        %2372 = vmatprep.mubr.f32.mxu0 0.0
        %v2373 = vand.u32 %v1636, 4294901760
        %v2374 = vsub.f32 %v1636, %v2373
        %v2375 = vand.u32 %v2374, 4294901760
        %2376 = vmatmul.mubr.f32.gmra.mrb[0].mxu0 %v2375
        %v2377 = vpop.f32.mrb[0].mxu0
        %v2378 = vadd.f32 %v2191, %v2377
        %v2379 = vpop.f32.mrb[0].mxu0
        %v2380 = vadd.f32 %v2193, %v2379
        %2381 = vmatprep.mubr.f32.mxu0 0.0
        %v2382 = vand.u32 %v1639, 4294901760
        %v2383 = vsub.f32 %v1639, %v2382
        %v2384 = vand.u32 %v2383, 4294901760
        %2385 = vmatmul.mubr.f32.gmra.mrb[0].mxu0 %v2384
        %v2386 = vpop.f32.mrb[0].mxu0
        %v2387 = vadd.f32 %v2199, %v2386
        %v2388 = vpop.f32.mrb[0].mxu0
        %v2389 = vadd.f32 %v2201, %v2388
        %2390 = vmatprep.mubr.f32.mxu0 0.0
        %v2391 = vand.u32 %v1642, 4294901760
        %v2392 = vsub.f32 %v1642, %v2391
        %v2393 = vand.u32 %v2392, 4294901760
        %2394 = vmatmul.mubr.f32.gmra.mrb[0].mxu0 %v2393
        %v2395 = vpop.f32.mrb[0].mxu0
        %v2396 = vadd.f32 %v2207, %v2395
        %v2397 = vpop.f32.mrb[0].mxu0
        %v2398 = vadd.f32 %v2209, %v2397
        %2399 = vmatprep.mubr.f32.mxu0 0.0
        %v2400 = vand.u32 %v1645, 4294901760
        %v2401 = vsub.f32 %v1645, %v2400
        %v2402 = vand.u32 %v2401, 4294901760
        %2403 = vmatmul.mubr.f32.gmra.mrb[0].mxu0 %v2402
        %v2404 = vpop.f32.mrb[0].mxu0
        %v2405 = vadd.f32 %v2215, %v2404
        %v2406 = vpop.f32.mrb[0].mxu0
        %v2407 = vadd.f32 %v2217, %v2406
        %2408 = vmatprep.mubr.f32.mxu0 0.0
        %v2409 = vand.u32 %v1648, 4294901760
        %v2410 = vsub.f32 %v1648, %v2409
        %v2411 = vand.u32 %v2410, 4294901760
        %2412 = vmatmul.mubr.f32.gmra.mrb[0].mxu0 %v2411
        %v2413 = vpop.f32.mrb[0].mxu0
        %v2414 = vadd.f32 %v2223, %v2413
        %v2415 = vpop.f32.mrb[0].mxu0
        %v2416 = vadd.f32 %v2225, %v2415
        %2417 = vmatprep.mubr.f32.mxu0 0.0
        %v2418 = vand.u32 %v1651, 4294901760
        %v2419 = vsub.f32 %v1651, %v2418
        %v2420 = vand.u32 %v2419, 4294901760
        %2421 = vmatmul.mubr.f32.gmra.mrb[0].mxu0 %v2420
        %v2422 = vpop.f32.mrb[0].mxu0
        %v2423 = vadd.f32 %v2231, %v2422
        %v2424 = vpop.f32.mrb[0].mxu0
        %v2425 = vadd.f32 %v2233, %v2424
        %2426 = vmatprep.mubr.f32.mxu0 0.0
        %v2427 = vand.u32 %v1654, 4294901760
        %v2428 = vsub.f32 %v1654, %v2427
        %v2429 = vand.u32 %v2428, 4294901760
        %2430 = vmatmul.mubr.f32.gmra.mrb[0].mxu0 %v2429
        %v2431 = vpop.f32.mrb[0].mxu0
        %v2432 = vadd.f32 %v2239, %v2431
        %v2433 = vpop.f32.mrb[0].mxu0
        %v2434 = vadd.f32 %v2241, %v2433
        %2435 = vmatprep.mubr.f32.mxu0 0.0
        %v2436 = vand.u32 %v1657, 4294901760
        %v2437 = vsub.f32 %v1657, %v2436
        %v2438 = vand.u32 %v2437, 4294901760
        %2439 = vmatmul.mubr.f32.gmra.mrb[0].mxu0 %v2438
        %v2440 = vpop.f32.mrb[0].mxu0
        %v2441 = vadd.f32 %v2247, %v2440
        %v2442 = vpop.f32.mrb[0].mxu0
        %v2443 = vadd.f32 %v2249, %v2442
        %2444 = vmatprep.mubr.f32.mxu0 0.0
        %v2445 = vand.u32 %v1660, 4294901760
        %v2446 = vsub.f32 %v1660, %v2445
        %v2447 = vand.u32 %v2446, 4294901760
        %2448 = vmatmul.mubr.f32.gmra.mrb[0].mxu0 %v2447
        %v2449 = vpop.f32.mrb[0].mxu0
        %v2450 = vadd.f32 %v2255, %v2449
        %v2451 = vpop.f32.mrb[0].mxu0
        %v2452 = vadd.f32 %v2257, %v2451
        %2453 = vmatprep.mubr.f32.mxu0 0.0
        %v2454 = vand.u32 %v1663, 4294901760
        %v2455 = vsub.f32 %v1663, %v2454
        %v2456 = vand.u32 %v2455, 4294901760
        %2457 = vmatmul.mubr.f32.gmra.mrb[0].mxu0 %v2456
        %v2458 = vpop.f32.mrb[0].mxu0
        %v2459 = vadd.f32 %v2263, %v2458
        %v2460 = vpop.f32.mrb[0].mxu0
        %v2461 = vadd.f32 %v2265, %v2460
        %2462 = vmatprep.mubr.f32.mxu0 0.0
        %v2463 = vand.u32 %v1666, 4294901760
        %v2464 = vsub.f32 %v1666, %v2463
        %v2465 = vand.u32 %v2464, 4294901760
        %2466 = vmatmul.mubr.f32.gmra.mrb[0].mxu0 %v2465
        %v2467 = vpop.f32.mrb[0].mxu0
        %v2468 = vadd.f32 %v2271, %v2467
        %v2469 = vpop.f32.mrb[0].mxu0
        %v2470 = vadd.f32 %v2273, %v2469
        %2471 = vdwg.mxu0
        %v2472 = vand.u32 %v959, 4294901760
        %v2473 = vsub.f32 %v959, %v2472
        %v2474 = vand.u32 %v2473, 4294901760
        %2475 = vmatprep.subr.mxu0 %v2474
        %v2476 = vand.u32 %v957, 4294901760
        %v2477 = vsub.f32 %v957, %v2476
        %v2478 = vand.u32 %v2477, 4294901760
        %2479 = vmatpush1.msra.mxu0 %v2478
        %v2480 = vand.u32 %v966, 4294901760
        %v2481 = vsub.f32 %v966, %v2480
        %v2482 = vand.u32 %v2481, 4294901760
        %2483 = vmatprep.subr.mxu0 %v2482
        %v2484 = vand.u32 %v964, 4294901760
        %v2485 = vsub.f32 %v964, %v2484
        %v2486 = vand.u32 %v2485, 4294901760
        %2487 = vmatpush1.msra.mxu0 %v2486
        %v2488 = vand.u32 %v973, 4294901760
        %v2489 = vsub.f32 %v973, %v2488
        %v2490 = vand.u32 %v2489, 4294901760
        %2491 = vmatprep.subr.mxu0 %v2490
        %v2492 = vand.u32 %v971, 4294901760
        %v2493 = vsub.f32 %v971, %v2492
        %v2494 = vand.u32 %v2493, 4294901760
        %2495 = vmatpush1.msra.mxu0 %v2494
        %2496 = vmatprep.subr.mxu0 0.0
        %2497 = vmatpush1.msra.mxu0 0.0
        %2498 = vmatprep.subr.mxu0 0.0
        %2499 = vmatpush1.msra.mxu0 0.0
        %2500 = vmatprep.subr.mxu0 0.0
        %2501 = vmatpush1.msra.mxu0 0.0
        %2502 = vmatprep.subr.mxu0 0.0
        %2503 = vmatpush1.msra.mxu0 0.0
        %2504 = vmatprep.subr.mxu0 0.0
        %2505 = vmatpush1.msra.mxu0 0.0
        %2506 = vmatprep.subr.mxu0 0.0
        %2507 = vmatpush1.msra.mxu0 0.0
        %2508 = vmatprep.subr.mxu0 0.0
        %2509 = vmatpush1.msra.mxu0 0.0
        %2510 = vmatprep.subr.mxu0 0.0
        %2511 = vmatpush1.msra.mxu0 0.0
        %2512 = vmatprep.subr.mxu0 0.0
        %2513 = vmatpush1.msra.mxu0 0.0
        %2514 = vmatprep.subr.mxu0 0.0
        %2515 = vmatpush1.msra.mxu0 0.0
        %2516 = vmatprep.subr.mxu0 0.0
        %2517 = vmatpush1.msra.mxu0 0.0
        %2518 = vmatprep.subr.mxu0 0.0
        %2519 = vmatpush1.msra.mxu0 0.0
        %2520 = vmatprep.subr.mxu0 0.0
        %2521 = vmatpush1.msra.mxu0 0.0
        %2522 = vmatprep.subr.mxu0 0.0
        %2523 = vmatpush1.msra.mxu0 0.0
        %2524 = vmatprep.subr.mxu0 0.0
        %2525 = vmatpush1.msra.mxu0 0.0
        %2526 = vmatprep.subr.mxu0 0.0
        %2527 = vmatpush1.msra.mxu0 0.0
        %2528 = vmatprep.subr.mxu0 0.0
        %2529 = vmatpush1.msra.mxu0 0.0
        %2530 = vmatprep.subr.mxu0 0.0
        %2531 = vmatpush1.msra.mxu0 0.0
        %2532 = vmatprep.subr.mxu0 0.0
        %2533 = vmatpush1.msra.mxu0 0.0
        %2534 = vmatprep.subr.mxu0 0.0
        %2535 = vmatpush1.msra.mxu0 0.0
        %2536 = vmatprep.subr.mxu0 0.0
        %2537 = vmatpush1.msra.mxu0 0.0
        %2538 = vmatprep.subr.mxu0 0.0
        %2539 = vmatpush1.msra.mxu0 0.0
        %2540 = vmatprep.subr.mxu0 0.0
        %2541 = vmatpush1.msra.mxu0 0.0
        %2542 = vmatprep.subr.mxu0 0.0
        %2543 = vmatpush1.msra.mxu0 0.0
        %2544 = vmatprep.subr.mxu0 0.0
        %2545 = vmatpush1.msra.mxu0 0.0
        %2546 = vmatprep.subr.mxu0 0.0
        %2547 = vmatpush1.msra.mxu0 0.0
        %2548 = vmatprep.subr.mxu0 0.0
        %2549 = vmatpush1.msra.mxu0 0.0
        %2550 = vmatprep.subr.mxu0 0.0
        %2551 = vmatpush1.msra.mxu0 0.0
        %2552 = vmatprep.subr.mxu0 0.0
        %2553 = vmatpush1.msra.mxu0 0.0
        %2554 = vmatprep.mubr.f32.mxu0 0.0
        %v2555 = vand.u32 %v1627, 4294901760
        %2556 = vmatmul.mubr.f32.gmra.mrb[0].mxu0 %v2555
        %v2557 = vpop.f32.mrb[0].mxu0
        %v2558 = vadd.f32 %v2351, %v2557
        %v2559 = vpop.f32.mrb[0].mxu0
        %v2560 = vadd.f32 %v2353, %v2559
        %2561 = vmatprep.mubr.f32.mxu0 0.0
        %v2562 = vand.u32 %v1630, 4294901760
        %2563 = vmatmul.mubr.f32.gmra.mrb[0].mxu0 %v2562
        %v2564 = vpop.f32.mrb[0].mxu0
        %v2565 = vadd.f32 %v2360, %v2564
        %v2566 = vpop.f32.mrb[0].mxu0
        %v2567 = vadd.f32 %v2362, %v2566
        %2568 = vmatprep.mubr.f32.mxu0 0.0
        %v2569 = vand.u32 %v1633, 4294901760
        %2570 = vmatmul.mubr.f32.gmra.mrb[0].mxu0 %v2569
        %v2571 = vpop.f32.mrb[0].mxu0
        %v2572 = vadd.f32 %v2369, %v2571
        %v2573 = vpop.f32.mrb[0].mxu0
        %v2574 = vadd.f32 %v2371, %v2573
        %2575 = vmatprep.mubr.f32.mxu0 0.0
        %v2576 = vand.u32 %v1636, 4294901760
        %2577 = vmatmul.mubr.f32.gmra.mrb[0].mxu0 %v2576
        %v2578 = vpop.f32.mrb[0].mxu0
        %v2579 = vadd.f32 %v2378, %v2578
        %v2580 = vpop.f32.mrb[0].mxu0
        %v2581 = vadd.f32 %v2380, %v2580
        %2582 = vmatprep.mubr.f32.mxu0 0.0
        %v2583 = vand.u32 %v1639, 4294901760
        %2584 = vmatmul.mubr.f32.gmra.mrb[0].mxu0 %v2583
        %v2585 = vpop.f32.mrb[0].mxu0
        %v2586 = vadd.f32 %v2387, %v2585
        %v2587 = vpop.f32.mrb[0].mxu0
        %v2588 = vadd.f32 %v2389, %v2587
        %2589 = vmatprep.mubr.f32.mxu0 0.0
        %v2590 = vand.u32 %v1642, 4294901760
        %2591 = vmatmul.mubr.f32.gmra.mrb[0].mxu0 %v2590
        %v2592 = vpop.f32.mrb[0].mxu0
        %v2593 = vadd.f32 %v2396, %v2592
        %v2594 = vpop.f32.mrb[0].mxu0
        %v2595 = vadd.f32 %v2398, %v2594
        %2596 = vmatprep.mubr.f32.mxu0 0.0
        %v2597 = vand.u32 %v1645, 4294901760
        %2598 = vmatmul.mubr.f32.gmra.mrb[0].mxu0 %v2597
        %v2599 = vpop.f32.mrb[0].mxu0
        %v2600 = vadd.f32 %v2405, %v2599
        %v2601 = vpop.f32.mrb[0].mxu0
        %v2602 = vadd.f32 %v2407, %v2601
        %2603 = vmatprep.mubr.f32.mxu0 0.0
        %v2604 = vand.u32 %v1648, 4294901760
        %2605 = vmatmul.mubr.f32.gmra.mrb[0].mxu0 %v2604
        %v2606 = vpop.f32.mrb[0].mxu0
        %v2607 = vadd.f32 %v2414, %v2606
        %v2608 = vpop.f32.mrb[0].mxu0
        %v2609 = vadd.f32 %v2416, %v2608
        %2610 = vmatprep.mubr.f32.mxu0 0.0
        %v2611 = vand.u32 %v1651, 4294901760
        %2612 = vmatmul.mubr.f32.gmra.mrb[0].mxu0 %v2611
        %v2613 = vpop.f32.mrb[0].mxu0
        %v2614 = vadd.f32 %v2423, %v2613
        %v2615 = vpop.f32.mrb[0].mxu0
        %v2616 = vadd.f32 %v2425, %v2615
        %2617 = vmatprep.mubr.f32.mxu0 0.0
        %v2618 = vand.u32 %v1654, 4294901760
        %2619 = vmatmul.mubr.f32.gmra.mrb[0].mxu0 %v2618
        %v2620 = vpop.f32.mrb[0].mxu0
        %v2621 = vadd.f32 %v2432, %v2620
        %v2622 = vpop.f32.mrb[0].mxu0
        %v2623 = vadd.f32 %v2434, %v2622
        %2624 = vmatprep.mubr.f32.mxu0 0.0
        %v2625 = vand.u32 %v1657, 4294901760
        %2626 = vmatmul.mubr.f32.gmra.mrb[0].mxu0 %v2625
        %v2627 = vpop.f32.mrb[0].mxu0
        %v2628 = vadd.f32 %v2441, %v2627
        %v2629 = vpop.f32.mrb[0].mxu0
        %v2630 = vadd.f32 %v2443, %v2629
        %2631 = vmatprep.mubr.f32.mxu0 0.0
        %v2632 = vand.u32 %v1660, 4294901760
        %2633 = vmatmul.mubr.f32.gmra.mrb[0].mxu0 %v2632
        %v2634 = vpop.f32.mrb[0].mxu0
        %v2635 = vadd.f32 %v2450, %v2634
        %v2636 = vpop.f32.mrb[0].mxu0
        %v2637 = vadd.f32 %v2452, %v2636
        %2638 = vmatprep.mubr.f32.mxu0 0.0
        %v2639 = vand.u32 %v1663, 4294901760
        %2640 = vmatmul.mubr.f32.gmra.mrb[0].mxu0 %v2639
        %v2641 = vpop.f32.mrb[0].mxu0
        %v2642 = vadd.f32 %v2459, %v2641
        %v2643 = vpop.f32.mrb[0].mxu0
        %v2644 = vadd.f32 %v2461, %v2643
        %2645 = vmatprep.mubr.f32.mxu0 0.0
        %v2646 = vand.u32 %v1666, 4294901760
        %2647 = vmatmul.mubr.f32.gmra.mrb[0].mxu0 %v2646
        %v2648 = vpop.f32.mrb[0].mxu0
        %v2649 = vadd.f32 %v2468, %v2648
        %v2650 = vpop.f32.mrb[0].mxu0
        %v2651 = vadd.f32 %v2470, %v2650
        %2652 = vdwg.mxu0
        %v2653 = vand.u32 %v959, 4294901760
        %2654 = vmatprep.subr.mxu0 %v2653
        %v2655 = vand.u32 %v957, 4294901760
        %2656 = vmatpush1.msra.mxu0 %v2655
        %v2657 = vand.u32 %v966, 4294901760
        %2658 = vmatprep.subr.mxu0 %v2657
        %v2659 = vand.u32 %v964, 4294901760
        %2660 = vmatpush1.msra.mxu0 %v2659
        %v2661 = vand.u32 %v973, 4294901760
        %2662 = vmatprep.subr.mxu0 %v2661
        %v2663 = vand.u32 %v971, 4294901760
        %2664 = vmatpush1.msra.mxu0 %v2663
        %2665 = vmatprep.subr.mxu0 0.0
        %2666 = vmatpush1.msra.mxu0 0.0
        %2667 = vmatprep.subr.mxu0 0.0
        %2668 = vmatpush1.msra.mxu0 0.0
        %2669 = vmatprep.subr.mxu0 0.0
        %2670 = vmatpush1.msra.mxu0 0.0
        %2671 = vmatprep.subr.mxu0 0.0
        %2672 = vmatpush1.msra.mxu0 0.0
        %2673 = vmatprep.subr.mxu0 0.0
        %2674 = vmatpush1.msra.mxu0 0.0
        %2675 = vmatprep.subr.mxu0 0.0
        %2676 = vmatpush1.msra.mxu0 0.0
        %2677 = vmatprep.subr.mxu0 0.0
        %2678 = vmatpush1.msra.mxu0 0.0
        %2679 = vmatprep.subr.mxu0 0.0
        %2680 = vmatpush1.msra.mxu0 0.0
        %2681 = vmatprep.subr.mxu0 0.0
        %2682 = vmatpush1.msra.mxu0 0.0
        %2683 = vmatprep.subr.mxu0 0.0
        %2684 = vmatpush1.msra.mxu0 0.0
        %2685 = vmatprep.subr.mxu0 0.0
        %2686 = vmatpush1.msra.mxu0 0.0
        %2687 = vmatprep.subr.mxu0 0.0
        %2688 = vmatpush1.msra.mxu0 0.0
        %2689 = vmatprep.subr.mxu0 0.0
        %2690 = vmatpush1.msra.mxu0 0.0
        %2691 = vmatprep.subr.mxu0 0.0
        %2692 = vmatpush1.msra.mxu0 0.0
        %2693 = vmatprep.subr.mxu0 0.0
        %2694 = vmatpush1.msra.mxu0 0.0
        %2695 = vmatprep.subr.mxu0 0.0
        %2696 = vmatpush1.msra.mxu0 0.0
        %2697 = vmatprep.subr.mxu0 0.0
        %2698 = vmatpush1.msra.mxu0 0.0
        %2699 = vmatprep.subr.mxu0 0.0
        %2700 = vmatpush1.msra.mxu0 0.0
        %2701 = vmatprep.subr.mxu0 0.0
        %2702 = vmatpush1.msra.mxu0 0.0
        %2703 = vmatprep.subr.mxu0 0.0
        %2704 = vmatpush1.msra.mxu0 0.0
        %2705 = vmatprep.subr.mxu0 0.0
        %2706 = vmatpush1.msra.mxu0 0.0
        %2707 = vmatprep.subr.mxu0 0.0
        %2708 = vmatpush1.msra.mxu0 0.0
        %2709 = vmatprep.subr.mxu0 0.0
        %2710 = vmatpush1.msra.mxu0 0.0
        %2711 = vmatprep.subr.mxu0 0.0
        %2712 = vmatpush1.msra.mxu0 0.0
        %2713 = vmatprep.subr.mxu0 0.0
        %2714 = vmatpush1.msra.mxu0 0.0
        %2715 = vmatprep.subr.mxu0 0.0
        %2716 = vmatpush1.msra.mxu0 0.0
        %2717 = vmatprep.subr.mxu0 0.0
        %2718 = vmatpush1.msra.mxu0 0.0
        %2719 = vmatprep.subr.mxu0 0.0
        %2720 = vmatpush1.msra.mxu0 0.0
        %2721 = vmatprep.subr.mxu0 0.0
        %2722 = vmatpush1.msra.mxu0 0.0
        %2723 = vmatprep.mubr.f32.mxu0 0.0
        %v2724 = vand.u32 %v1627, 4294901760
        %2725 = vmatmul.mubr.f32.gmra.mrb[0].mxu0 %v2724
        %v2726 = vpop.f32.mrb[0].mxu0
        %v2727 = vadd.f32 %v2558, %v2726
        %v2728 = vpop.f32.mrb[0].mxu0
        %v2729 = vadd.f32 %v2560, %v2728
        %2730 = vmatprep.mubr.f32.mxu0 0.0
        %v2731 = vand.u32 %v1630, 4294901760
        %2732 = vmatmul.mubr.f32.gmra.mrb[0].mxu0 %v2731
        %v2733 = vpop.f32.mrb[0].mxu0
        %v2734 = vadd.f32 %v2565, %v2733
        %v2735 = vpop.f32.mrb[0].mxu0
        %v2736 = vadd.f32 %v2567, %v2735
        %2737 = vmatprep.mubr.f32.mxu0 0.0
        %v2738 = vand.u32 %v1633, 4294901760
        %2739 = vmatmul.mubr.f32.gmra.mrb[0].mxu0 %v2738
        %v2740 = vpop.f32.mrb[0].mxu0
        %v2741 = vadd.f32 %v2572, %v2740
        %v2742 = vpop.f32.mrb[0].mxu0
        %v2743 = vadd.f32 %v2574, %v2742
        %2744 = vmatprep.mubr.f32.mxu0 0.0
        %v2745 = vand.u32 %v1636, 4294901760
        %2746 = vmatmul.mubr.f32.gmra.mrb[0].mxu0 %v2745
        %v2747 = vpop.f32.mrb[0].mxu0
        %v2748 = vadd.f32 %v2579, %v2747
        %v2749 = vpop.f32.mrb[0].mxu0
        %v2750 = vadd.f32 %v2581, %v2749
        %2751 = vmatprep.mubr.f32.mxu0 0.0
        %v2752 = vand.u32 %v1639, 4294901760
        %2753 = vmatmul.mubr.f32.gmra.mrb[0].mxu0 %v2752
        %v2754 = vpop.f32.mrb[0].mxu0
        %v2755 = vadd.f32 %v2586, %v2754
        %v2756 = vpop.f32.mrb[0].mxu0
        %v2757 = vadd.f32 %v2588, %v2756
        %2758 = vmatprep.mubr.f32.mxu0 0.0
        %v2759 = vand.u32 %v1642, 4294901760
        %2760 = vmatmul.mubr.f32.gmra.mrb[0].mxu0 %v2759
        %v2761 = vpop.f32.mrb[0].mxu0
        %v2762 = vadd.f32 %v2593, %v2761
        %v2763 = vpop.f32.mrb[0].mxu0
        %v2764 = vadd.f32 %v2595, %v2763
        %2765 = vmatprep.mubr.f32.mxu0 0.0
        %v2766 = vand.u32 %v1645, 4294901760
        %2767 = vmatmul.mubr.f32.gmra.mrb[0].mxu0 %v2766
        %v2768 = vpop.f32.mrb[0].mxu0
        %v2769 = vadd.f32 %v2600, %v2768
        %v2770 = vpop.f32.mrb[0].mxu0
        %v2771 = vadd.f32 %v2602, %v2770
        %2772 = vmatprep.mubr.f32.mxu0 0.0
        %v2773 = vand.u32 %v1648, 4294901760
        %2774 = vmatmul.mubr.f32.gmra.mrb[0].mxu0 %v2773
        %v2775 = vpop.f32.mrb[0].mxu0
        %v2776 = vadd.f32 %v2607, %v2775
        %v2777 = vpop.f32.mrb[0].mxu0
        %v2778 = vadd.f32 %v2609, %v2777
        %2779 = vmatprep.mubr.f32.mxu0 0.0
        %v2780 = vand.u32 %v1651, 4294901760
        %2781 = vmatmul.mubr.f32.gmra.mrb[0].mxu0 %v2780
        %v2782 = vpop.f32.mrb[0].mxu0
        %v2783 = vadd.f32 %v2614, %v2782
        %v2784 = vpop.f32.mrb[0].mxu0
        %v2785 = vadd.f32 %v2616, %v2784
        %2786 = vmatprep.mubr.f32.mxu0 0.0
        %v2787 = vand.u32 %v1654, 4294901760
        %2788 = vmatmul.mubr.f32.gmra.mrb[0].mxu0 %v2787
        %v2789 = vpop.f32.mrb[0].mxu0
        %v2790 = vadd.f32 %v2621, %v2789
        %v2791 = vpop.f32.mrb[0].mxu0
        %v2792 = vadd.f32 %v2623, %v2791
        %2793 = vmatprep.mubr.f32.mxu0 0.0
        %v2794 = vand.u32 %v1657, 4294901760
        %2795 = vmatmul.mubr.f32.gmra.mrb[0].mxu0 %v2794
        %v2796 = vpop.f32.mrb[0].mxu0
        %v2797 = vadd.f32 %v2628, %v2796
        %v2798 = vpop.f32.mrb[0].mxu0
        %v2799 = vadd.f32 %v2630, %v2798
        %2800 = vmatprep.mubr.f32.mxu0 0.0
        %v2801 = vand.u32 %v1660, 4294901760
        %2802 = vmatmul.mubr.f32.gmra.mrb[0].mxu0 %v2801
        %v2803 = vpop.f32.mrb[0].mxu0
        %v2804 = vadd.f32 %v2635, %v2803
        %v2805 = vpop.f32.mrb[0].mxu0
        %v2806 = vadd.f32 %v2637, %v2805
        %2807 = vmatprep.mubr.f32.mxu0 0.0
        %v2808 = vand.u32 %v1663, 4294901760
        %2809 = vmatmul.mubr.f32.gmra.mrb[0].mxu0 %v2808
        %v2810 = vpop.f32.mrb[0].mxu0
        %v2811 = vadd.f32 %v2642, %v2810
        %v2812 = vpop.f32.mrb[0].mxu0
        %v2813 = vadd.f32 %v2644, %v2812
        %2814 = vmatprep.mubr.f32.mxu0 0.0
        %v2815 = vand.u32 %v1666, 4294901760
        %2816 = vmatmul.mubr.f32.gmra.mrb[0].mxu0 %v2815
        %v2817 = vpop.f32.mrb[0].mxu0
        %v2818 = vadd.f32 %v2649, %v2817
        %v2819 = vpop.f32.mrb[0].mxu0
        %v2820 = vadd.f32 %v2651, %v2819
        %2821 = vdwg.mxu0
        %2822 = vmatprep.subr.mxu0 0.0
        %v2823 = vand.u32 %v1596, 4294901760
        %2824 = vmatpush1.msra.mxu0 %v2823
        %2825 = vmatprep.subr.mxu0 0.0
        %v2826 = vand.u32 %v1602, 4294901760
        %2827 = vmatpush1.msra.mxu0 %v2826
        %2828 = vmatprep.subr.mxu0 0.0
        %v2829 = vand.u32 %v1608, 4294901760
        %2830 = vmatpush1.msra.mxu0 %v2829
        %2831 = vmatprep.subr.mxu0 0.0
        %2832 = vmatpush1.msra.mxu0 0.0
        %2833 = vmatprep.subr.mxu0 0.0
        %2834 = vmatpush1.msra.mxu0 0.0
        %2835 = vmatprep.subr.mxu0 0.0
        %2836 = vmatpush1.msra.mxu0 0.0
        %2837 = vmatprep.subr.mxu0 0.0
        %2838 = vmatpush1.msra.mxu0 0.0
        %2839 = vmatprep.subr.mxu0 0.0
        %2840 = vmatpush1.msra.mxu0 0.0
        %2841 = vmatprep.subr.mxu0 0.0
        %2842 = vmatpush1.msra.mxu0 0.0
        %2843 = vmatprep.subr.mxu0 0.0
        %2844 = vmatpush1.msra.mxu0 0.0
        %2845 = vmatprep.subr.mxu0 0.0
        %2846 = vmatpush1.msra.mxu0 0.0
        %2847 = vmatprep.subr.mxu0 0.0
        %2848 = vmatpush1.msra.mxu0 0.0
        %2849 = vmatprep.subr.mxu0 0.0
        %2850 = vmatpush1.msra.mxu0 0.0
        %2851 = vmatprep.subr.mxu0 0.0
        %2852 = vmatpush1.msra.mxu0 0.0
        %2853 = vmatprep.subr.mxu0 0.0
        %2854 = vmatpush1.msra.mxu0 0.0
        %2855 = vmatprep.subr.mxu0 0.0
        %2856 = vmatpush1.msra.mxu0 0.0
        %2857 = vmatprep.subr.mxu0 0.0
        %2858 = vmatpush1.msra.mxu0 0.0
        %2859 = vmatprep.subr.mxu0 0.0
        %2860 = vmatpush1.msra.mxu0 0.0
        %2861 = vmatprep.subr.mxu0 0.0
        %2862 = vmatpush1.msra.mxu0 0.0
        %2863 = vmatprep.subr.mxu0 0.0
        %2864 = vmatpush1.msra.mxu0 0.0
        %2865 = vmatprep.subr.mxu0 0.0
        %2866 = vmatpush1.msra.mxu0 0.0
        %2867 = vmatprep.subr.mxu0 0.0
        %2868 = vmatpush1.msra.mxu0 0.0
        %2869 = vmatprep.subr.mxu0 0.0
        %2870 = vmatpush1.msra.mxu0 0.0
        %2871 = vmatprep.subr.mxu0 0.0
        %2872 = vmatpush1.msra.mxu0 0.0
        %2873 = vmatprep.subr.mxu0 0.0
        %2874 = vmatpush1.msra.mxu0 0.0
        %2875 = vmatprep.subr.mxu0 0.0
        %2876 = vmatpush1.msra.mxu0 0.0
        %2877 = vmatprep.subr.mxu0 0.0
        %2878 = vmatpush1.msra.mxu0 0.0
        %2879 = vmatprep.subr.mxu0 0.0
        %2880 = vmatpush1.msra.mxu0 0.0
        %2881 = vmatprep.subr.mxu0 0.0
        %2882 = vmatpush1.msra.mxu0 0.0
        %2883 = vmatprep.subr.mxu0 0.0
        %2884 = vmatpush1.msra.mxu0 0.0
        %2885 = vmatprep.subr.mxu0 0.0
        %2886 = vmatpush1.msra.mxu0 0.0
        %2887 = vmatprep.subr.mxu0 0.0
        %2888 = vmatpush1.msra.mxu0 0.0
        %2889 = vmatprep.mubr.f32.mxu0 0.0
        %v2890 = vand.u32 %v1627, 4294901760
        %v2891 = vsub.f32 %v1627, %v2890
        %v2892 = vand.u32 %v2891, 4294901760
        %v2893 = vsub.f32 %v2891, %v2892
        %v2894 = vand.u32 %v2893, 4294901760
        %2895 = vmatmul.mubr.f32.gmra.mrb[0].mxu0 %v2894
        %v2896 = vpop.f32.mrb[0].mxu0
        %v2897 = vadd.f32 0.0, %v2896
        %v2898 = vpop.f32.mrb[0].mxu0
        %2899 = vmatprep.mubr.f32.mxu0 0.0
        %v2900 = vand.u32 %v1630, 4294901760
        %v2901 = vsub.f32 %v1630, %v2900
        %v2902 = vand.u32 %v2901, 4294901760
        %v2903 = vsub.f32 %v2901, %v2902
        %v2904 = vand.u32 %v2903, 4294901760
        %2905 = vmatmul.mubr.f32.gmra.mrb[0].mxu0 %v2904
        %v2906 = vpop.f32.mrb[0].mxu0
        %v2907 = vadd.f32 0.0, %v2906
        %v2908 = vpop.f32.mrb[0].mxu0
        %2909 = vmatprep.mubr.f32.mxu0 0.0
        %v2910 = vand.u32 %v1633, 4294901760
        %v2911 = vsub.f32 %v1633, %v2910
        %v2912 = vand.u32 %v2911, 4294901760
        %v2913 = vsub.f32 %v2911, %v2912
        %v2914 = vand.u32 %v2913, 4294901760
        %2915 = vmatmul.mubr.f32.gmra.mrb[0].mxu0 %v2914
        %v2916 = vpop.f32.mrb[0].mxu0
        %v2917 = vadd.f32 0.0, %v2916
        %v2918 = vpop.f32.mrb[0].mxu0
        %2919 = vmatprep.mubr.f32.mxu0 0.0
        %v2920 = vand.u32 %v1636, 4294901760
        %v2921 = vsub.f32 %v1636, %v2920
        %v2922 = vand.u32 %v2921, 4294901760
        %v2923 = vsub.f32 %v2921, %v2922
        %v2924 = vand.u32 %v2923, 4294901760
        %2925 = vmatmul.mubr.f32.gmra.mrb[0].mxu0 %v2924
        %v2926 = vpop.f32.mrb[0].mxu0
        %v2927 = vadd.f32 0.0, %v2926
        %v2928 = vpop.f32.mrb[0].mxu0
        %2929 = vmatprep.mubr.f32.mxu0 0.0
        %v2930 = vand.u32 %v1639, 4294901760
        %v2931 = vsub.f32 %v1639, %v2930
        %v2932 = vand.u32 %v2931, 4294901760
        %v2933 = vsub.f32 %v2931, %v2932
        %v2934 = vand.u32 %v2933, 4294901760
        %2935 = vmatmul.mubr.f32.gmra.mrb[0].mxu0 %v2934
        %v2936 = vpop.f32.mrb[0].mxu0
        %v2937 = vadd.f32 0.0, %v2936
        %v2938 = vpop.f32.mrb[0].mxu0
        %2939 = vmatprep.mubr.f32.mxu0 0.0
        %v2940 = vand.u32 %v1642, 4294901760
        %v2941 = vsub.f32 %v1642, %v2940
        %v2942 = vand.u32 %v2941, 4294901760
        %v2943 = vsub.f32 %v2941, %v2942
        %v2944 = vand.u32 %v2943, 4294901760
        %2945 = vmatmul.mubr.f32.gmra.mrb[0].mxu0 %v2944
        %v2946 = vpop.f32.mrb[0].mxu0
        %v2947 = vadd.f32 0.0, %v2946
        %v2948 = vpop.f32.mrb[0].mxu0
        %2949 = vmatprep.mubr.f32.mxu0 0.0
        %v2950 = vand.u32 %v1645, 4294901760
        %v2951 = vsub.f32 %v1645, %v2950
        %v2952 = vand.u32 %v2951, 4294901760
        %v2953 = vsub.f32 %v2951, %v2952
        %v2954 = vand.u32 %v2953, 4294901760
        %2955 = vmatmul.mubr.f32.gmra.mrb[0].mxu0 %v2954
        %v2956 = vpop.f32.mrb[0].mxu0
        %v2957 = vadd.f32 0.0, %v2956
        %v2958 = vpop.f32.mrb[0].mxu0
        %2959 = vmatprep.mubr.f32.mxu0 0.0
        %v2960 = vand.u32 %v1648, 4294901760
        %v2961 = vsub.f32 %v1648, %v2960
        %v2962 = vand.u32 %v2961, 4294901760
        %v2963 = vsub.f32 %v2961, %v2962
        %v2964 = vand.u32 %v2963, 4294901760
        %2965 = vmatmul.mubr.f32.gmra.mrb[0].mxu0 %v2964
        %v2966 = vpop.f32.mrb[0].mxu0
        %v2967 = vadd.f32 0.0, %v2966
        %v2968 = vpop.f32.mrb[0].mxu0
        %2969 = vmatprep.mubr.f32.mxu0 0.0
        %v2970 = vand.u32 %v1651, 4294901760
        %v2971 = vsub.f32 %v1651, %v2970
        %v2972 = vand.u32 %v2971, 4294901760
        %v2973 = vsub.f32 %v2971, %v2972
        %v2974 = vand.u32 %v2973, 4294901760
        %2975 = vmatmul.mubr.f32.gmra.mrb[0].mxu0 %v2974
        %v2976 = vpop.f32.mrb[0].mxu0
        %v2977 = vadd.f32 0.0, %v2976
        %v2978 = vpop.f32.mrb[0].mxu0
        %2979 = vmatprep.mubr.f32.mxu0 0.0
        %v2980 = vand.u32 %v1654, 4294901760
        %v2981 = vsub.f32 %v1654, %v2980
        %v2982 = vand.u32 %v2981, 4294901760
        %v2983 = vsub.f32 %v2981, %v2982
        %v2984 = vand.u32 %v2983, 4294901760
        %2985 = vmatmul.mubr.f32.gmra.mrb[0].mxu0 %v2984
        %v2986 = vpop.f32.mrb[0].mxu0
        %v2987 = vadd.f32 0.0, %v2986
        %v2988 = vpop.f32.mrb[0].mxu0
        %2989 = vmatprep.mubr.f32.mxu0 0.0
        %v2990 = vand.u32 %v1657, 4294901760
        %v2991 = vsub.f32 %v1657, %v2990
        %v2992 = vand.u32 %v2991, 4294901760
        %v2993 = vsub.f32 %v2991, %v2992
        %v2994 = vand.u32 %v2993, 4294901760
        %2995 = vmatmul.mubr.f32.gmra.mrb[0].mxu0 %v2994
        %v2996 = vpop.f32.mrb[0].mxu0
        %v2997 = vadd.f32 0.0, %v2996
        %v2998 = vpop.f32.mrb[0].mxu0
        %2999 = vmatprep.mubr.f32.mxu0 0.0
        %v3000 = vand.u32 %v1660, 4294901760
        %v3001 = vsub.f32 %v1660, %v3000
        %v3002 = vand.u32 %v3001, 4294901760
        %v3003 = vsub.f32 %v3001, %v3002
        %v3004 = vand.u32 %v3003, 4294901760
        %3005 = vmatmul.mubr.f32.gmra.mrb[0].mxu0 %v3004
        %v3006 = vpop.f32.mrb[0].mxu0
        %v3007 = vadd.f32 0.0, %v3006
        %v3008 = vpop.f32.mrb[0].mxu0
        %3009 = vmatprep.mubr.f32.mxu0 0.0
        %v3010 = vand.u32 %v1663, 4294901760
        %v3011 = vsub.f32 %v1663, %v3010
        %v3012 = vand.u32 %v3011, 4294901760
        %v3013 = vsub.f32 %v3011, %v3012
        %v3014 = vand.u32 %v3013, 4294901760
        %3015 = vmatmul.mubr.f32.gmra.mrb[0].mxu0 %v3014
        %v3016 = vpop.f32.mrb[0].mxu0
        %v3017 = vadd.f32 0.0, %v3016
        %v3018 = vpop.f32.mrb[0].mxu0
        %3019 = vmatprep.mubr.f32.mxu0 0.0
        %v3020 = vand.u32 %v1666, 4294901760
        %v3021 = vsub.f32 %v1666, %v3020
        %v3022 = vand.u32 %v3021, 4294901760
        %v3023 = vsub.f32 %v3021, %v3022
        %v3024 = vand.u32 %v3023, 4294901760
        %3025 = vmatmul.mubr.f32.gmra.mrb[0].mxu0 %v3024
        %v3026 = vpop.f32.mrb[0].mxu0
        %v3027 = vadd.f32 0.0, %v3026
        %v3028 = vpop.f32.mrb[0].mxu0
        %3029 = vdwg.mxu0
        %3030 = vmatprep.subr.mxu0 0.0
        %v3031 = vand.u32 %v1596, 4294901760
        %v3032 = vsub.f32 %v1596, %v3031
        %v3033 = vand.u32 %v3032, 4294901760
        %v3034 = vsub.f32 %v3032, %v3033
        %v3035 = vand.u32 %v3034, 4294901760
        %3036 = vmatpush1.msra.mxu0 %v3035
        %3037 = vmatprep.subr.mxu0 0.0
        %v3038 = vand.u32 %v1602, 4294901760
        %v3039 = vsub.f32 %v1602, %v3038
        %v3040 = vand.u32 %v3039, 4294901760
        %v3041 = vsub.f32 %v3039, %v3040
        %v3042 = vand.u32 %v3041, 4294901760
        %3043 = vmatpush1.msra.mxu0 %v3042
        %3044 = vmatprep.subr.mxu0 0.0
        %v3045 = vand.u32 %v1608, 4294901760
        %v3046 = vsub.f32 %v1608, %v3045
        %v3047 = vand.u32 %v3046, 4294901760
        %v3048 = vsub.f32 %v3046, %v3047
        %v3049 = vand.u32 %v3048, 4294901760
        %3050 = vmatpush1.msra.mxu0 %v3049
        %3051 = vmatprep.subr.mxu0 0.0
        %3052 = vmatpush1.msra.mxu0 0.0
        %3053 = vmatprep.subr.mxu0 0.0
        %3054 = vmatpush1.msra.mxu0 0.0
        %3055 = vmatprep.subr.mxu0 0.0
        %3056 = vmatpush1.msra.mxu0 0.0
        %3057 = vmatprep.subr.mxu0 0.0
        %3058 = vmatpush1.msra.mxu0 0.0
        %3059 = vmatprep.subr.mxu0 0.0
        %3060 = vmatpush1.msra.mxu0 0.0
        %3061 = vmatprep.subr.mxu0 0.0
        %3062 = vmatpush1.msra.mxu0 0.0
        %3063 = vmatprep.subr.mxu0 0.0
        %3064 = vmatpush1.msra.mxu0 0.0
        %3065 = vmatprep.subr.mxu0 0.0
        %3066 = vmatpush1.msra.mxu0 0.0
        %3067 = vmatprep.subr.mxu0 0.0
        %3068 = vmatpush1.msra.mxu0 0.0
        %3069 = vmatprep.subr.mxu0 0.0
        %3070 = vmatpush1.msra.mxu0 0.0
        %3071 = vmatprep.subr.mxu0 0.0
        %3072 = vmatpush1.msra.mxu0 0.0
        %3073 = vmatprep.subr.mxu0 0.0
        %3074 = vmatpush1.msra.mxu0 0.0
        %3075 = vmatprep.subr.mxu0 0.0
        %3076 = vmatpush1.msra.mxu0 0.0
        %3077 = vmatprep.subr.mxu0 0.0
        %3078 = vmatpush1.msra.mxu0 0.0
        %3079 = vmatprep.subr.mxu0 0.0
        %3080 = vmatpush1.msra.mxu0 0.0
        %3081 = vmatprep.subr.mxu0 0.0
        %3082 = vmatpush1.msra.mxu0 0.0
        %3083 = vmatprep.subr.mxu0 0.0
        %3084 = vmatpush1.msra.mxu0 0.0
        %3085 = vmatprep.subr.mxu0 0.0
        %3086 = vmatpush1.msra.mxu0 0.0
        %3087 = vmatprep.subr.mxu0 0.0
        %3088 = vmatpush1.msra.mxu0 0.0
        %3089 = vmatprep.subr.mxu0 0.0
        %3090 = vmatpush1.msra.mxu0 0.0
        %3091 = vmatprep.subr.mxu0 0.0
        %3092 = vmatpush1.msra.mxu0 0.0
        %3093 = vmatprep.subr.mxu0 0.0
        %3094 = vmatpush1.msra.mxu0 0.0
        %3095 = vmatprep.subr.mxu0 0.0
        %3096 = vmatpush1.msra.mxu0 0.0
        %3097 = vmatprep.subr.mxu0 0.0
        %3098 = vmatpush1.msra.mxu0 0.0
        %3099 = vmatprep.subr.mxu0 0.0
        %3100 = vmatpush1.msra.mxu0 0.0
        %3101 = vmatprep.subr.mxu0 0.0
        %3102 = vmatpush1.msra.mxu0 0.0
        %3103 = vmatprep.subr.mxu0 0.0
        %3104 = vmatpush1.msra.mxu0 0.0
        %3105 = vmatprep.subr.mxu0 0.0
        %3106 = vmatpush1.msra.mxu0 0.0
        %3107 = vmatprep.subr.mxu0 0.0
        %3108 = vmatpush1.msra.mxu0 0.0
        %3109 = vmatprep.mubr.f32.mxu0 0.0
        %v3110 = vand.u32 %v1627, 4294901760
        %3111 = vmatmul.mubr.f32.gmra.mrb[0].mxu0 %v3110
        %v3112 = vpop.f32.mrb[0].mxu0
        %v3113 = vadd.f32 %v2897, %v3112
        %v3114 = vpop.f32.mrb[0].mxu0
        %3115 = vmatprep.mubr.f32.mxu0 0.0
        %v3116 = vand.u32 %v1630, 4294901760
        %3117 = vmatmul.mubr.f32.gmra.mrb[0].mxu0 %v3116
        %v3118 = vpop.f32.mrb[0].mxu0
        %v3119 = vadd.f32 %v2907, %v3118
        %v3120 = vpop.f32.mrb[0].mxu0
        %3121 = vmatprep.mubr.f32.mxu0 0.0
        %v3122 = vand.u32 %v1633, 4294901760
        %3123 = vmatmul.mubr.f32.gmra.mrb[0].mxu0 %v3122
        %v3124 = vpop.f32.mrb[0].mxu0
        %v3125 = vadd.f32 %v2917, %v3124
        %v3126 = vpop.f32.mrb[0].mxu0
        %3127 = vmatprep.mubr.f32.mxu0 0.0
        %v3128 = vand.u32 %v1636, 4294901760
        %3129 = vmatmul.mubr.f32.gmra.mrb[0].mxu0 %v3128
        %v3130 = vpop.f32.mrb[0].mxu0
        %v3131 = vadd.f32 %v2927, %v3130
        %v3132 = vpop.f32.mrb[0].mxu0
        %3133 = vmatprep.mubr.f32.mxu0 0.0
        %v3134 = vand.u32 %v1639, 4294901760
        %3135 = vmatmul.mubr.f32.gmra.mrb[0].mxu0 %v3134
        %v3136 = vpop.f32.mrb[0].mxu0
        %v3137 = vadd.f32 %v2937, %v3136
        %v3138 = vpop.f32.mrb[0].mxu0
        %3139 = vmatprep.mubr.f32.mxu0 0.0
        %v3140 = vand.u32 %v1642, 4294901760
        %3141 = vmatmul.mubr.f32.gmra.mrb[0].mxu0 %v3140
        %v3142 = vpop.f32.mrb[0].mxu0
        %v3143 = vadd.f32 %v2947, %v3142
        %v3144 = vpop.f32.mrb[0].mxu0
        %3145 = vmatprep.mubr.f32.mxu0 0.0
        %v3146 = vand.u32 %v1645, 4294901760
        %3147 = vmatmul.mubr.f32.gmra.mrb[0].mxu0 %v3146
        %v3148 = vpop.f32.mrb[0].mxu0
        %v3149 = vadd.f32 %v2957, %v3148
        %v3150 = vpop.f32.mrb[0].mxu0
        %3151 = vmatprep.mubr.f32.mxu0 0.0
        %v3152 = vand.u32 %v1648, 4294901760
        %3153 = vmatmul.mubr.f32.gmra.mrb[0].mxu0 %v3152
        %v3154 = vpop.f32.mrb[0].mxu0
        %v3155 = vadd.f32 %v2967, %v3154
        %v3156 = vpop.f32.mrb[0].mxu0
        %3157 = vmatprep.mubr.f32.mxu0 0.0
        %v3158 = vand.u32 %v1651, 4294901760
        %3159 = vmatmul.mubr.f32.gmra.mrb[0].mxu0 %v3158
        %v3160 = vpop.f32.mrb[0].mxu0
        %v3161 = vadd.f32 %v2977, %v3160
        %v3162 = vpop.f32.mrb[0].mxu0
        %3163 = vmatprep.mubr.f32.mxu0 0.0
        %v3164 = vand.u32 %v1654, 4294901760
        %3165 = vmatmul.mubr.f32.gmra.mrb[0].mxu0 %v3164
        %v3166 = vpop.f32.mrb[0].mxu0
        %v3167 = vadd.f32 %v2987, %v3166
        %v3168 = vpop.f32.mrb[0].mxu0
        %3169 = vmatprep.mubr.f32.mxu0 0.0
        %v3170 = vand.u32 %v1657, 4294901760
        %3171 = vmatmul.mubr.f32.gmra.mrb[0].mxu0 %v3170
        %v3172 = vpop.f32.mrb[0].mxu0
        %v3173 = vadd.f32 %v2997, %v3172
        %v3174 = vpop.f32.mrb[0].mxu0
        %3175 = vmatprep.mubr.f32.mxu0 0.0
        %v3176 = vand.u32 %v1660, 4294901760
        %3177 = vmatmul.mubr.f32.gmra.mrb[0].mxu0 %v3176
        %v3178 = vpop.f32.mrb[0].mxu0
        %v3179 = vadd.f32 %v3007, %v3178
        %v3180 = vpop.f32.mrb[0].mxu0
        %3181 = vmatprep.mubr.f32.mxu0 0.0
        %v3182 = vand.u32 %v1663, 4294901760
        %3183 = vmatmul.mubr.f32.gmra.mrb[0].mxu0 %v3182
        %v3184 = vpop.f32.mrb[0].mxu0
        %v3185 = vadd.f32 %v3017, %v3184
        %v3186 = vpop.f32.mrb[0].mxu0
        %3187 = vmatprep.mubr.f32.mxu0 0.0
        %v3188 = vand.u32 %v1666, 4294901760
        %3189 = vmatmul.mubr.f32.gmra.mrb[0].mxu0 %v3188
        %v3190 = vpop.f32.mrb[0].mxu0
        %v3191 = vadd.f32 %v3027, %v3190
        %v3192 = vpop.f32.mrb[0].mxu0
        %3193 = vdwg.mxu0
        %3194 = vmatprep.subr.mxu0 0.0
        %v3195 = vand.u32 %v1596, 4294901760
        %v3196 = vsub.f32 %v1596, %v3195
        %3197 = vmatpush1.msra.mxu0 %v3196
        %3198 = vmatprep.subr.mxu0 0.0
        %v3199 = vand.u32 %v1602, 4294901760
        %v3200 = vsub.f32 %v1602, %v3199
        %3201 = vmatpush1.msra.mxu0 %v3200
        %3202 = vmatprep.subr.mxu0 0.0
        %v3203 = vand.u32 %v1608, 4294901760
        %v3204 = vsub.f32 %v1608, %v3203
        %3205 = vmatpush1.msra.mxu0 %v3204
        %3206 = vmatprep.subr.mxu0 0.0
        %3207 = vmatpush1.msra.mxu0 0.0
        %3208 = vmatprep.subr.mxu0 0.0
        %3209 = vmatpush1.msra.mxu0 0.0
        %3210 = vmatprep.subr.mxu0 0.0
        %3211 = vmatpush1.msra.mxu0 0.0
        %3212 = vmatprep.subr.mxu0 0.0
        %3213 = vmatpush1.msra.mxu0 0.0
        %3214 = vmatprep.subr.mxu0 0.0
        %3215 = vmatpush1.msra.mxu0 0.0
        %3216 = vmatprep.subr.mxu0 0.0
        %3217 = vmatpush1.msra.mxu0 0.0
        %3218 = vmatprep.subr.mxu0 0.0
        %3219 = vmatpush1.msra.mxu0 0.0
        %3220 = vmatprep.subr.mxu0 0.0
        %3221 = vmatpush1.msra.mxu0 0.0
        %3222 = vmatprep.subr.mxu0 0.0
        %3223 = vmatpush1.msra.mxu0 0.0
        %3224 = vmatprep.subr.mxu0 0.0
        %3225 = vmatpush1.msra.mxu0 0.0
        %3226 = vmatprep.subr.mxu0 0.0
        %3227 = vmatpush1.msra.mxu0 0.0
        %3228 = vmatprep.subr.mxu0 0.0
        %3229 = vmatpush1.msra.mxu0 0.0
        %3230 = vmatprep.subr.mxu0 0.0
        %3231 = vmatpush1.msra.mxu0 0.0
        %3232 = vmatprep.subr.mxu0 0.0
        %3233 = vmatpush1.msra.mxu0 0.0
        %3234 = vmatprep.subr.mxu0 0.0
        %3235 = vmatpush1.msra.mxu0 0.0
        %3236 = vmatprep.subr.mxu0 0.0
        %3237 = vmatpush1.msra.mxu0 0.0
        %3238 = vmatprep.subr.mxu0 0.0
        %3239 = vmatpush1.msra.mxu0 0.0
        %3240 = vmatprep.subr.mxu0 0.0
        %3241 = vmatpush1.msra.mxu0 0.0
        %3242 = vmatprep.subr.mxu0 0.0
        %3243 = vmatpush1.msra.mxu0 0.0
        %3244 = vmatprep.subr.mxu0 0.0
        %3245 = vmatpush1.msra.mxu0 0.0
        %3246 = vmatprep.subr.mxu0 0.0
        %3247 = vmatpush1.msra.mxu0 0.0
        %3248 = vmatprep.subr.mxu0 0.0
        %3249 = vmatpush1.msra.mxu0 0.0
        %3250 = vmatprep.subr.mxu0 0.0
        %3251 = vmatpush1.msra.mxu0 0.0
        %3252 = vmatprep.subr.mxu0 0.0
        %3253 = vmatpush1.msra.mxu0 0.0
        %3254 = vmatprep.subr.mxu0 0.0
        %3255 = vmatpush1.msra.mxu0 0.0
        %3256 = vmatprep.subr.mxu0 0.0
        %3257 = vmatpush1.msra.mxu0 0.0
        %3258 = vmatprep.subr.mxu0 0.0
        %3259 = vmatpush1.msra.mxu0 0.0
        %3260 = vmatprep.subr.mxu0 0.0
        %3261 = vmatpush1.msra.mxu0 0.0
        %3262 = vmatprep.subr.mxu0 0.0
        %3263 = vmatpush1.msra.mxu0 0.0
        %3264 = vmatprep.mubr.f32.mxu0 0.0
        %v3265 = vand.u32 %v1627, 4294901760
        %v3266 = vsub.f32 %v1627, %v3265
        %3267 = vmatmul.mubr.f32.gmra.mrb[0].mxu0 %v3266
        %v3268 = vpop.f32.mrb[0].mxu0
        %v3269 = vadd.f32 %v3113, %v3268
        %v3270 = vpop.f32.mrb[0].mxu0
        %3271 = vmatprep.mubr.f32.mxu0 0.0
        %v3272 = vand.u32 %v1630, 4294901760
        %v3273 = vsub.f32 %v1630, %v3272
        %3274 = vmatmul.mubr.f32.gmra.mrb[0].mxu0 %v3273
        %v3275 = vpop.f32.mrb[0].mxu0
        %v3276 = vadd.f32 %v3119, %v3275
        %v3277 = vpop.f32.mrb[0].mxu0
        %3278 = vmatprep.mubr.f32.mxu0 0.0
        %v3279 = vand.u32 %v1633, 4294901760
        %v3280 = vsub.f32 %v1633, %v3279
        %3281 = vmatmul.mubr.f32.gmra.mrb[0].mxu0 %v3280
        %v3282 = vpop.f32.mrb[0].mxu0
        %v3283 = vadd.f32 %v3125, %v3282
        %v3284 = vpop.f32.mrb[0].mxu0
        %3285 = vmatprep.mubr.f32.mxu0 0.0
        %v3286 = vand.u32 %v1636, 4294901760
        %v3287 = vsub.f32 %v1636, %v3286
        %3288 = vmatmul.mubr.f32.gmra.mrb[0].mxu0 %v3287
        %v3289 = vpop.f32.mrb[0].mxu0
        %v3290 = vadd.f32 %v3131, %v3289
        %v3291 = vpop.f32.mrb[0].mxu0
        %3292 = vmatprep.mubr.f32.mxu0 0.0
        %v3293 = vand.u32 %v1639, 4294901760
        %v3294 = vsub.f32 %v1639, %v3293
        %3295 = vmatmul.mubr.f32.gmra.mrb[0].mxu0 %v3294
        %v3296 = vpop.f32.mrb[0].mxu0
        %v3297 = vadd.f32 %v3137, %v3296
        %v3298 = vpop.f32.mrb[0].mxu0
        %3299 = vmatprep.mubr.f32.mxu0 0.0
        %v3300 = vand.u32 %v1642, 4294901760
        %v3301 = vsub.f32 %v1642, %v3300
        %3302 = vmatmul.mubr.f32.gmra.mrb[0].mxu0 %v3301
        %v3303 = vpop.f32.mrb[0].mxu0
        %v3304 = vadd.f32 %v3143, %v3303
        %v3305 = vpop.f32.mrb[0].mxu0
        %3306 = vmatprep.mubr.f32.mxu0 0.0
        %v3307 = vand.u32 %v1645, 4294901760
        %v3308 = vsub.f32 %v1645, %v3307
        %3309 = vmatmul.mubr.f32.gmra.mrb[0].mxu0 %v3308
        %v3310 = vpop.f32.mrb[0].mxu0
        %v3311 = vadd.f32 %v3149, %v3310
        %v3312 = vpop.f32.mrb[0].mxu0
        %3313 = vmatprep.mubr.f32.mxu0 0.0
        %v3314 = vand.u32 %v1648, 4294901760
        %v3315 = vsub.f32 %v1648, %v3314
        %3316 = vmatmul.mubr.f32.gmra.mrb[0].mxu0 %v3315
        %v3317 = vpop.f32.mrb[0].mxu0
        %v3318 = vadd.f32 %v3155, %v3317
        %v3319 = vpop.f32.mrb[0].mxu0
        %3320 = vmatprep.mubr.f32.mxu0 0.0
        %v3321 = vand.u32 %v1651, 4294901760
        %v3322 = vsub.f32 %v1651, %v3321
        %3323 = vmatmul.mubr.f32.gmra.mrb[0].mxu0 %v3322
        %v3324 = vpop.f32.mrb[0].mxu0
        %v3325 = vadd.f32 %v3161, %v3324
        %v3326 = vpop.f32.mrb[0].mxu0
        %3327 = vmatprep.mubr.f32.mxu0 0.0
        %v3328 = vand.u32 %v1654, 4294901760
        %v3329 = vsub.f32 %v1654, %v3328
        %3330 = vmatmul.mubr.f32.gmra.mrb[0].mxu0 %v3329
        %v3331 = vpop.f32.mrb[0].mxu0
        %v3332 = vadd.f32 %v3167, %v3331
        %v3333 = vpop.f32.mrb[0].mxu0
        %3334 = vmatprep.mubr.f32.mxu0 0.0
        %v3335 = vand.u32 %v1657, 4294901760
        %v3336 = vsub.f32 %v1657, %v3335
        %3337 = vmatmul.mubr.f32.gmra.mrb[0].mxu0 %v3336
        %v3338 = vpop.f32.mrb[0].mxu0
        %v3339 = vadd.f32 %v3173, %v3338
        %v3340 = vpop.f32.mrb[0].mxu0
        %3341 = vmatprep.mubr.f32.mxu0 0.0
        %v3342 = vand.u32 %v1660, 4294901760
        %v3343 = vsub.f32 %v1660, %v3342
        %3344 = vmatmul.mubr.f32.gmra.mrb[0].mxu0 %v3343
        %v3345 = vpop.f32.mrb[0].mxu0
        %v3346 = vadd.f32 %v3179, %v3345
        %v3347 = vpop.f32.mrb[0].mxu0
        %3348 = vmatprep.mubr.f32.mxu0 0.0
        %v3349 = vand.u32 %v1663, 4294901760
        %v3350 = vsub.f32 %v1663, %v3349
        %3351 = vmatmul.mubr.f32.gmra.mrb[0].mxu0 %v3350
        %v3352 = vpop.f32.mrb[0].mxu0
        %v3353 = vadd.f32 %v3185, %v3352
        %v3354 = vpop.f32.mrb[0].mxu0
        %3355 = vmatprep.mubr.f32.mxu0 0.0
        %v3356 = vand.u32 %v1666, 4294901760
        %v3357 = vsub.f32 %v1666, %v3356
        %3358 = vmatmul.mubr.f32.gmra.mrb[0].mxu0 %v3357
        %v3359 = vpop.f32.mrb[0].mxu0
        %v3360 = vadd.f32 %v3191, %v3359
        %v3361 = vpop.f32.mrb[0].mxu0
        %3362 = vdwg.mxu0
        %3363 = vmatprep.subr.mxu0 0.0
        %v3364 = vand.u32 %v1596, 4294901760
        %3365 = vmatpush1.msra.mxu0 %v3364
        %3366 = vmatprep.subr.mxu0 0.0
        %v3367 = vand.u32 %v1602, 4294901760
        %3368 = vmatpush1.msra.mxu0 %v3367
        %3369 = vmatprep.subr.mxu0 0.0
        %v3370 = vand.u32 %v1608, 4294901760
        %3371 = vmatpush1.msra.mxu0 %v3370
        %3372 = vmatprep.subr.mxu0 0.0
        %3373 = vmatpush1.msra.mxu0 0.0
        %3374 = vmatprep.subr.mxu0 0.0
        %3375 = vmatpush1.msra.mxu0 0.0
        %3376 = vmatprep.subr.mxu0 0.0
        %3377 = vmatpush1.msra.mxu0 0.0
        %3378 = vmatprep.subr.mxu0 0.0
        %3379 = vmatpush1.msra.mxu0 0.0
        %3380 = vmatprep.subr.mxu0 0.0
        %3381 = vmatpush1.msra.mxu0 0.0
        %3382 = vmatprep.subr.mxu0 0.0
        %3383 = vmatpush1.msra.mxu0 0.0
        %3384 = vmatprep.subr.mxu0 0.0
        %3385 = vmatpush1.msra.mxu0 0.0
        %3386 = vmatprep.subr.mxu0 0.0
        %3387 = vmatpush1.msra.mxu0 0.0
        %3388 = vmatprep.subr.mxu0 0.0
        %3389 = vmatpush1.msra.mxu0 0.0
        %3390 = vmatprep.subr.mxu0 0.0
        %3391 = vmatpush1.msra.mxu0 0.0
        %3392 = vmatprep.subr.mxu0 0.0
        %3393 = vmatpush1.msra.mxu0 0.0
        %3394 = vmatprep.subr.mxu0 0.0
        %3395 = vmatpush1.msra.mxu0 0.0
        %3396 = vmatprep.subr.mxu0 0.0
        %3397 = vmatpush1.msra.mxu0 0.0
        %3398 = vmatprep.subr.mxu0 0.0
        %3399 = vmatpush1.msra.mxu0 0.0
        %3400 = vmatprep.subr.mxu0 0.0
        %3401 = vmatpush1.msra.mxu0 0.0
        %3402 = vmatprep.subr.mxu0 0.0
        %3403 = vmatpush1.msra.mxu0 0.0
        %3404 = vmatprep.subr.mxu0 0.0
        %3405 = vmatpush1.msra.mxu0 0.0
        %3406 = vmatprep.subr.mxu0 0.0
        %3407 = vmatpush1.msra.mxu0 0.0
        %3408 = vmatprep.subr.mxu0 0.0
        %3409 = vmatpush1.msra.mxu0 0.0
        %3410 = vmatprep.subr.mxu0 0.0
        %3411 = vmatpush1.msra.mxu0 0.0
        %3412 = vmatprep.subr.mxu0 0.0
        %3413 = vmatpush1.msra.mxu0 0.0
        %3414 = vmatprep.subr.mxu0 0.0
        %3415 = vmatpush1.msra.mxu0 0.0
        %3416 = vmatprep.subr.mxu0 0.0
        %3417 = vmatpush1.msra.mxu0 0.0
        %3418 = vmatprep.subr.mxu0 0.0
        %3419 = vmatpush1.msra.mxu0 0.0
        %3420 = vmatprep.subr.mxu0 0.0
        %3421 = vmatpush1.msra.mxu0 0.0
        %3422 = vmatprep.subr.mxu0 0.0
        %3423 = vmatpush1.msra.mxu0 0.0
        %3424 = vmatprep.subr.mxu0 0.0
        %3425 = vmatpush1.msra.mxu0 0.0
        %3426 = vmatprep.subr.mxu0 0.0
        %3427 = vmatpush1.msra.mxu0 0.0
        %3428 = vmatprep.subr.mxu0 0.0
        %3429 = vmatpush1.msra.mxu0 0.0
        %3430 = vmatprep.mubr.f32.mxu0 0.0
        %v3431 = vand.u32 %v1627, 4294901760
        %v3432 = vsub.f32 %v1627, %v3431
        %v3433 = vand.u32 %v3432, 4294901760
        %3434 = vmatmul.mubr.f32.gmra.mrb[0].mxu0 %v3433
        %v3435 = vpop.f32.mrb[0].mxu0
        %v3436 = vadd.f32 %v3269, %v3435
        %v3437 = vpop.f32.mrb[0].mxu0
        %3438 = vmatprep.mubr.f32.mxu0 0.0
        %v3439 = vand.u32 %v1630, 4294901760
        %v3440 = vsub.f32 %v1630, %v3439
        %v3441 = vand.u32 %v3440, 4294901760
        %3442 = vmatmul.mubr.f32.gmra.mrb[0].mxu0 %v3441
        %v3443 = vpop.f32.mrb[0].mxu0
        %v3444 = vadd.f32 %v3276, %v3443
        %v3445 = vpop.f32.mrb[0].mxu0
        %3446 = vmatprep.mubr.f32.mxu0 0.0
        %v3447 = vand.u32 %v1633, 4294901760
        %v3448 = vsub.f32 %v1633, %v3447
        %v3449 = vand.u32 %v3448, 4294901760
        %3450 = vmatmul.mubr.f32.gmra.mrb[0].mxu0 %v3449
        %v3451 = vpop.f32.mrb[0].mxu0
        %v3452 = vadd.f32 %v3283, %v3451
        %v3453 = vpop.f32.mrb[0].mxu0
        %3454 = vmatprep.mubr.f32.mxu0 0.0
        %v3455 = vand.u32 %v1636, 4294901760
        %v3456 = vsub.f32 %v1636, %v3455
        %v3457 = vand.u32 %v3456, 4294901760
        %3458 = vmatmul.mubr.f32.gmra.mrb[0].mxu0 %v3457
        %v3459 = vpop.f32.mrb[0].mxu0
        %v3460 = vadd.f32 %v3290, %v3459
        %v3461 = vpop.f32.mrb[0].mxu0
        %3462 = vmatprep.mubr.f32.mxu0 0.0
        %v3463 = vand.u32 %v1639, 4294901760
        %v3464 = vsub.f32 %v1639, %v3463
        %v3465 = vand.u32 %v3464, 4294901760
        %3466 = vmatmul.mubr.f32.gmra.mrb[0].mxu0 %v3465
        %v3467 = vpop.f32.mrb[0].mxu0
        %v3468 = vadd.f32 %v3297, %v3467
        %v3469 = vpop.f32.mrb[0].mxu0
        %3470 = vmatprep.mubr.f32.mxu0 0.0
        %v3471 = vand.u32 %v1642, 4294901760
        %v3472 = vsub.f32 %v1642, %v3471
        %v3473 = vand.u32 %v3472, 4294901760
        %3474 = vmatmul.mubr.f32.gmra.mrb[0].mxu0 %v3473
        %v3475 = vpop.f32.mrb[0].mxu0
        %v3476 = vadd.f32 %v3304, %v3475
        %v3477 = vpop.f32.mrb[0].mxu0
        %3478 = vmatprep.mubr.f32.mxu0 0.0
        %v3479 = vand.u32 %v1645, 4294901760
        %v3480 = vsub.f32 %v1645, %v3479
        %v3481 = vand.u32 %v3480, 4294901760
        %3482 = vmatmul.mubr.f32.gmra.mrb[0].mxu0 %v3481
        %v3483 = vpop.f32.mrb[0].mxu0
        %v3484 = vadd.f32 %v3311, %v3483
        %v3485 = vpop.f32.mrb[0].mxu0
        %3486 = vmatprep.mubr.f32.mxu0 0.0
        %v3487 = vand.u32 %v1648, 4294901760
        %v3488 = vsub.f32 %v1648, %v3487
        %v3489 = vand.u32 %v3488, 4294901760
        %3490 = vmatmul.mubr.f32.gmra.mrb[0].mxu0 %v3489
        %v3491 = vpop.f32.mrb[0].mxu0
        %v3492 = vadd.f32 %v3318, %v3491
        %v3493 = vpop.f32.mrb[0].mxu0
        %3494 = vmatprep.mubr.f32.mxu0 0.0
        %v3495 = vand.u32 %v1651, 4294901760
        %v3496 = vsub.f32 %v1651, %v3495
        %v3497 = vand.u32 %v3496, 4294901760
        %3498 = vmatmul.mubr.f32.gmra.mrb[0].mxu0 %v3497
        %v3499 = vpop.f32.mrb[0].mxu0
        %v3500 = vadd.f32 %v3325, %v3499
        %v3501 = vpop.f32.mrb[0].mxu0
        %3502 = vmatprep.mubr.f32.mxu0 0.0
        %v3503 = vand.u32 %v1654, 4294901760
        %v3504 = vsub.f32 %v1654, %v3503
        %v3505 = vand.u32 %v3504, 4294901760
        %3506 = vmatmul.mubr.f32.gmra.mrb[0].mxu0 %v3505
        %v3507 = vpop.f32.mrb[0].mxu0
        %v3508 = vadd.f32 %v3332, %v3507
        %v3509 = vpop.f32.mrb[0].mxu0
        %3510 = vmatprep.mubr.f32.mxu0 0.0
        %v3511 = vand.u32 %v1657, 4294901760
        %v3512 = vsub.f32 %v1657, %v3511
        %v3513 = vand.u32 %v3512, 4294901760
        %3514 = vmatmul.mubr.f32.gmra.mrb[0].mxu0 %v3513
        %v3515 = vpop.f32.mrb[0].mxu0
        %v3516 = vadd.f32 %v3339, %v3515
        %v3517 = vpop.f32.mrb[0].mxu0
        %3518 = vmatprep.mubr.f32.mxu0 0.0
        %v3519 = vand.u32 %v1660, 4294901760
        %v3520 = vsub.f32 %v1660, %v3519
        %v3521 = vand.u32 %v3520, 4294901760
        %3522 = vmatmul.mubr.f32.gmra.mrb[0].mxu0 %v3521
        %v3523 = vpop.f32.mrb[0].mxu0
        %v3524 = vadd.f32 %v3346, %v3523
        %v3525 = vpop.f32.mrb[0].mxu0
        %3526 = vmatprep.mubr.f32.mxu0 0.0
        %v3527 = vand.u32 %v1663, 4294901760
        %v3528 = vsub.f32 %v1663, %v3527
        %v3529 = vand.u32 %v3528, 4294901760
        %3530 = vmatmul.mubr.f32.gmra.mrb[0].mxu0 %v3529
        %v3531 = vpop.f32.mrb[0].mxu0
        %v3532 = vadd.f32 %v3353, %v3531
        %v3533 = vpop.f32.mrb[0].mxu0
        %3534 = vmatprep.mubr.f32.mxu0 0.0
        %v3535 = vand.u32 %v1666, 4294901760
        %v3536 = vsub.f32 %v1666, %v3535
        %v3537 = vand.u32 %v3536, 4294901760
        %3538 = vmatmul.mubr.f32.gmra.mrb[0].mxu0 %v3537
        %v3539 = vpop.f32.mrb[0].mxu0
        %v3540 = vadd.f32 %v3360, %v3539
        %v3541 = vpop.f32.mrb[0].mxu0
        %3542 = vdwg.mxu0
        %3543 = vmatprep.subr.mxu0 0.0
        %v3544 = vand.u32 %v1596, 4294901760
        %v3545 = vsub.f32 %v1596, %v3544
        %v3546 = vand.u32 %v3545, 4294901760
        %3547 = vmatpush1.msra.mxu0 %v3546
        %3548 = vmatprep.subr.mxu0 0.0
        %v3549 = vand.u32 %v1602, 4294901760
        %v3550 = vsub.f32 %v1602, %v3549
        %v3551 = vand.u32 %v3550, 4294901760
        %3552 = vmatpush1.msra.mxu0 %v3551
        %3553 = vmatprep.subr.mxu0 0.0
        %v3554 = vand.u32 %v1608, 4294901760
        %v3555 = vsub.f32 %v1608, %v3554
        %v3556 = vand.u32 %v3555, 4294901760
        %3557 = vmatpush1.msra.mxu0 %v3556
        %3558 = vmatprep.subr.mxu0 0.0
        %3559 = vmatpush1.msra.mxu0 0.0
        %3560 = vmatprep.subr.mxu0 0.0
        %3561 = vmatpush1.msra.mxu0 0.0
        %3562 = vmatprep.subr.mxu0 0.0
        %3563 = vmatpush1.msra.mxu0 0.0
        %3564 = vmatprep.subr.mxu0 0.0
        %3565 = vmatpush1.msra.mxu0 0.0
        %3566 = vmatprep.subr.mxu0 0.0
        %3567 = vmatpush1.msra.mxu0 0.0
        %3568 = vmatprep.subr.mxu0 0.0
        %3569 = vmatpush1.msra.mxu0 0.0
        %3570 = vmatprep.subr.mxu0 0.0
        %3571 = vmatpush1.msra.mxu0 0.0
        %3572 = vmatprep.subr.mxu0 0.0
        %3573 = vmatpush1.msra.mxu0 0.0
        %3574 = vmatprep.subr.mxu0 0.0
        %3575 = vmatpush1.msra.mxu0 0.0
        %3576 = vmatprep.subr.mxu0 0.0
        %3577 = vmatpush1.msra.mxu0 0.0
        %3578 = vmatprep.subr.mxu0 0.0
        %3579 = vmatpush1.msra.mxu0 0.0
        %3580 = vmatprep.subr.mxu0 0.0
        %3581 = vmatpush1.msra.mxu0 0.0
        %3582 = vmatprep.subr.mxu0 0.0
        %3583 = vmatpush1.msra.mxu0 0.0
        %3584 = vmatprep.subr.mxu0 0.0
        %3585 = vmatpush1.msra.mxu0 0.0
        %3586 = vmatprep.subr.mxu0 0.0
        %3587 = vmatpush1.msra.mxu0 0.0
        %3588 = vmatprep.subr.mxu0 0.0
        %3589 = vmatpush1.msra.mxu0 0.0
        %3590 = vmatprep.subr.mxu0 0.0
        %3591 = vmatpush1.msra.mxu0 0.0
        %3592 = vmatprep.subr.mxu0 0.0
        %3593 = vmatpush1.msra.mxu0 0.0
        %3594 = vmatprep.subr.mxu0 0.0
        %3595 = vmatpush1.msra.mxu0 0.0
        %3596 = vmatprep.subr.mxu0 0.0
        %3597 = vmatpush1.msra.mxu0 0.0
        %3598 = vmatprep.subr.mxu0 0.0
        %3599 = vmatpush1.msra.mxu0 0.0
        %3600 = vmatprep.subr.mxu0 0.0
        %3601 = vmatpush1.msra.mxu0 0.0
        %3602 = vmatprep.subr.mxu0 0.0
        %3603 = vmatpush1.msra.mxu0 0.0
        %3604 = vmatprep.subr.mxu0 0.0
        %3605 = vmatpush1.msra.mxu0 0.0
        %3606 = vmatprep.subr.mxu0 0.0
        %3607 = vmatpush1.msra.mxu0 0.0
        %3608 = vmatprep.subr.mxu0 0.0
        %3609 = vmatpush1.msra.mxu0 0.0
        %3610 = vmatprep.subr.mxu0 0.0
        %3611 = vmatpush1.msra.mxu0 0.0
        %3612 = vmatprep.subr.mxu0 0.0
        %3613 = vmatpush1.msra.mxu0 0.0
        %3614 = vmatprep.subr.mxu0 0.0
        %3615 = vmatpush1.msra.mxu0 0.0
        %3616 = vmatprep.mubr.f32.mxu0 0.0
        %v3617 = vand.u32 %v1627, 4294901760
        %3618 = vmatmul.mubr.f32.gmra.mrb[0].mxu0 %v3617
        %v3619 = vpop.f32.mrb[0].mxu0
        %v3620 = vadd.f32 %v3436, %v3619
        %v3621 = vpop.f32.mrb[0].mxu0
        %3622 = vmatprep.mubr.f32.mxu0 0.0
        %v3623 = vand.u32 %v1630, 4294901760
        %3624 = vmatmul.mubr.f32.gmra.mrb[0].mxu0 %v3623
        %v3625 = vpop.f32.mrb[0].mxu0
        %v3626 = vadd.f32 %v3444, %v3625
        %v3627 = vpop.f32.mrb[0].mxu0
        %3628 = vmatprep.mubr.f32.mxu0 0.0
        %v3629 = vand.u32 %v1633, 4294901760
        %3630 = vmatmul.mubr.f32.gmra.mrb[0].mxu0 %v3629
        %v3631 = vpop.f32.mrb[0].mxu0
        %v3632 = vadd.f32 %v3452, %v3631
        %v3633 = vpop.f32.mrb[0].mxu0
        %3634 = vmatprep.mubr.f32.mxu0 0.0
        %v3635 = vand.u32 %v1636, 4294901760
        %3636 = vmatmul.mubr.f32.gmra.mrb[0].mxu0 %v3635
        %v3637 = vpop.f32.mrb[0].mxu0
        %v3638 = vadd.f32 %v3460, %v3637
        %v3639 = vpop.f32.mrb[0].mxu0
        %3640 = vmatprep.mubr.f32.mxu0 0.0
        %v3641 = vand.u32 %v1639, 4294901760
        %3642 = vmatmul.mubr.f32.gmra.mrb[0].mxu0 %v3641
        %v3643 = vpop.f32.mrb[0].mxu0
        %v3644 = vadd.f32 %v3468, %v3643
        %v3645 = vpop.f32.mrb[0].mxu0
        %3646 = vmatprep.mubr.f32.mxu0 0.0
        %v3647 = vand.u32 %v1642, 4294901760
        %3648 = vmatmul.mubr.f32.gmra.mrb[0].mxu0 %v3647
        %v3649 = vpop.f32.mrb[0].mxu0
        %v3650 = vadd.f32 %v3476, %v3649
        %v3651 = vpop.f32.mrb[0].mxu0
        %3652 = vmatprep.mubr.f32.mxu0 0.0
        %v3653 = vand.u32 %v1645, 4294901760
        %3654 = vmatmul.mubr.f32.gmra.mrb[0].mxu0 %v3653
        %v3655 = vpop.f32.mrb[0].mxu0
        %v3656 = vadd.f32 %v3484, %v3655
        %v3657 = vpop.f32.mrb[0].mxu0
        %3658 = vmatprep.mubr.f32.mxu0 0.0
        %v3659 = vand.u32 %v1648, 4294901760
        %3660 = vmatmul.mubr.f32.gmra.mrb[0].mxu0 %v3659
        %v3661 = vpop.f32.mrb[0].mxu0
        %v3662 = vadd.f32 %v3492, %v3661
        %v3663 = vpop.f32.mrb[0].mxu0
        %3664 = vmatprep.mubr.f32.mxu0 0.0
        %v3665 = vand.u32 %v1651, 4294901760
        %3666 = vmatmul.mubr.f32.gmra.mrb[0].mxu0 %v3665
        %v3667 = vpop.f32.mrb[0].mxu0
        %v3668 = vadd.f32 %v3500, %v3667
        %v3669 = vpop.f32.mrb[0].mxu0
        %3670 = vmatprep.mubr.f32.mxu0 0.0
        %v3671 = vand.u32 %v1654, 4294901760
        %3672 = vmatmul.mubr.f32.gmra.mrb[0].mxu0 %v3671
        %v3673 = vpop.f32.mrb[0].mxu0
        %v3674 = vadd.f32 %v3508, %v3673
        %v3675 = vpop.f32.mrb[0].mxu0
        %3676 = vmatprep.mubr.f32.mxu0 0.0
        %v3677 = vand.u32 %v1657, 4294901760
        %3678 = vmatmul.mubr.f32.gmra.mrb[0].mxu0 %v3677
        %v3679 = vpop.f32.mrb[0].mxu0
        %v3680 = vadd.f32 %v3516, %v3679
        %v3681 = vpop.f32.mrb[0].mxu0
        %3682 = vmatprep.mubr.f32.mxu0 0.0
        %v3683 = vand.u32 %v1660, 4294901760
        %3684 = vmatmul.mubr.f32.gmra.mrb[0].mxu0 %v3683
        %v3685 = vpop.f32.mrb[0].mxu0
        %v3686 = vadd.f32 %v3524, %v3685
        %v3687 = vpop.f32.mrb[0].mxu0
        %3688 = vmatprep.mubr.f32.mxu0 0.0
        %v3689 = vand.u32 %v1663, 4294901760
        %3690 = vmatmul.mubr.f32.gmra.mrb[0].mxu0 %v3689
        %v3691 = vpop.f32.mrb[0].mxu0
        %v3692 = vadd.f32 %v3532, %v3691
        %v3693 = vpop.f32.mrb[0].mxu0
        %3694 = vmatprep.mubr.f32.mxu0 0.0
        %v3695 = vand.u32 %v1666, 4294901760
        %3696 = vmatmul.mubr.f32.gmra.mrb[0].mxu0 %v3695
        %v3697 = vpop.f32.mrb[0].mxu0
        %v3698 = vadd.f32 %v3540, %v3697
        %v3699 = vpop.f32.mrb[0].mxu0
        %3700 = vdwg.mxu0
        %3701 = vmatprep.subr.mxu0 0.0
        %v3702 = vand.u32 %v1596, 4294901760
        %3703 = vmatpush1.msra.mxu0 %v3702
        %3704 = vmatprep.subr.mxu0 0.0
        %v3705 = vand.u32 %v1602, 4294901760
        %3706 = vmatpush1.msra.mxu0 %v3705
        %3707 = vmatprep.subr.mxu0 0.0
        %v3708 = vand.u32 %v1608, 4294901760
        %3709 = vmatpush1.msra.mxu0 %v3708
        %3710 = vmatprep.subr.mxu0 0.0
        %3711 = vmatpush1.msra.mxu0 0.0
        %3712 = vmatprep.subr.mxu0 0.0
        %3713 = vmatpush1.msra.mxu0 0.0
        %3714 = vmatprep.subr.mxu0 0.0
        %3715 = vmatpush1.msra.mxu0 0.0
        %3716 = vmatprep.subr.mxu0 0.0
        %3717 = vmatpush1.msra.mxu0 0.0
        %3718 = vmatprep.subr.mxu0 0.0
        %3719 = vmatpush1.msra.mxu0 0.0
        %3720 = vmatprep.subr.mxu0 0.0
        %3721 = vmatpush1.msra.mxu0 0.0
        %3722 = vmatprep.subr.mxu0 0.0
        %3723 = vmatpush1.msra.mxu0 0.0
        %3724 = vmatprep.subr.mxu0 0.0
        %3725 = vmatpush1.msra.mxu0 0.0
        %3726 = vmatprep.subr.mxu0 0.0
        %3727 = vmatpush1.msra.mxu0 0.0
        %3728 = vmatprep.subr.mxu0 0.0
        %3729 = vmatpush1.msra.mxu0 0.0
        %3730 = vmatprep.subr.mxu0 0.0
        %3731 = vmatpush1.msra.mxu0 0.0
        %3732 = vmatprep.subr.mxu0 0.0
        %3733 = vmatpush1.msra.mxu0 0.0
        %3734 = vmatprep.subr.mxu0 0.0
        %3735 = vmatpush1.msra.mxu0 0.0
        %3736 = vmatprep.subr.mxu0 0.0
        %3737 = vmatpush1.msra.mxu0 0.0
        %3738 = vmatprep.subr.mxu0 0.0
        %3739 = vmatpush1.msra.mxu0 0.0
        %3740 = vmatprep.subr.mxu0 0.0
        %3741 = vmatpush1.msra.mxu0 0.0
        %3742 = vmatprep.subr.mxu0 0.0
        %3743 = vmatpush1.msra.mxu0 0.0
        %3744 = vmatprep.subr.mxu0 0.0
        %3745 = vmatpush1.msra.mxu0 0.0
        %3746 = vmatprep.subr.mxu0 0.0
        %3747 = vmatpush1.msra.mxu0 0.0
        %3748 = vmatprep.subr.mxu0 0.0
        %3749 = vmatpush1.msra.mxu0 0.0
        %3750 = vmatprep.subr.mxu0 0.0
        %3751 = vmatpush1.msra.mxu0 0.0
        %3752 = vmatprep.subr.mxu0 0.0
        %3753 = vmatpush1.msra.mxu0 0.0
        %3754 = vmatprep.subr.mxu0 0.0
        %3755 = vmatpush1.msra.mxu0 0.0
        %3756 = vmatprep.subr.mxu0 0.0
        %3757 = vmatpush1.msra.mxu0 0.0
        %3758 = vmatprep.subr.mxu0 0.0
        %3759 = vmatpush1.msra.mxu0 0.0
        %3760 = vmatprep.subr.mxu0 0.0
        %3761 = vmatpush1.msra.mxu0 0.0
        %3762 = vmatprep.subr.mxu0 0.0
        %3763 = vmatpush1.msra.mxu0 0.0
        %3764 = vmatprep.subr.mxu0 0.0
        %3765 = vmatpush1.msra.mxu0 0.0
        %3766 = vmatprep.subr.mxu0 0.0
        %3767 = vmatpush1.msra.mxu0 0.0
        %3768 = vmatprep.mubr.f32.mxu0 0.0
        %v3769 = vand.u32 %v1627, 4294901760
        %3770 = vmatmul.mubr.f32.gmra.mrb[0].mxu0 %v3769
        %v3771 = vpop.f32.mrb[0].mxu0
        %v3772 = vadd.f32 %v3620, %v3771
        %v3773 = vpop.f32.mrb[0].mxu0
        %3774 = vmatprep.mubr.f32.mxu0 0.0
        %v3775 = vand.u32 %v1630, 4294901760
        %3776 = vmatmul.mubr.f32.gmra.mrb[0].mxu0 %v3775
        %v3777 = vpop.f32.mrb[0].mxu0
        %v3778 = vadd.f32 %v3626, %v3777
        %v3779 = vpop.f32.mrb[0].mxu0
        %3780 = vmatprep.mubr.f32.mxu0 0.0
        %v3781 = vand.u32 %v1633, 4294901760
        %3782 = vmatmul.mubr.f32.gmra.mrb[0].mxu0 %v3781
        %v3783 = vpop.f32.mrb[0].mxu0
        %v3784 = vadd.f32 %v3632, %v3783
        %v3785 = vpop.f32.mrb[0].mxu0
        %3786 = vmatprep.mubr.f32.mxu0 0.0
        %v3787 = vand.u32 %v1636, 4294901760
        %3788 = vmatmul.mubr.f32.gmra.mrb[0].mxu0 %v3787
        %v3789 = vpop.f32.mrb[0].mxu0
        %v3790 = vadd.f32 %v3638, %v3789
        %v3791 = vpop.f32.mrb[0].mxu0
        %3792 = vmatprep.mubr.f32.mxu0 0.0
        %v3793 = vand.u32 %v1639, 4294901760
        %3794 = vmatmul.mubr.f32.gmra.mrb[0].mxu0 %v3793
        %v3795 = vpop.f32.mrb[0].mxu0
        %v3796 = vadd.f32 %v3644, %v3795
        %v3797 = vpop.f32.mrb[0].mxu0
        %3798 = vmatprep.mubr.f32.mxu0 0.0
        %v3799 = vand.u32 %v1642, 4294901760
        %3800 = vmatmul.mubr.f32.gmra.mrb[0].mxu0 %v3799
        %v3801 = vpop.f32.mrb[0].mxu0
        %v3802 = vadd.f32 %v3650, %v3801
        %v3803 = vpop.f32.mrb[0].mxu0
        %3804 = vmatprep.mubr.f32.mxu0 0.0
        %v3805 = vand.u32 %v1645, 4294901760
        %3806 = vmatmul.mubr.f32.gmra.mrb[0].mxu0 %v3805
        %v3807 = vpop.f32.mrb[0].mxu0
        %v3808 = vadd.f32 %v3656, %v3807
        %v3809 = vpop.f32.mrb[0].mxu0
        %3810 = vmatprep.mubr.f32.mxu0 0.0
        %v3811 = vand.u32 %v1648, 4294901760
        %3812 = vmatmul.mubr.f32.gmra.mrb[0].mxu0 %v3811
        %v3813 = vpop.f32.mrb[0].mxu0
        %v3814 = vadd.f32 %v3662, %v3813
        %v3815 = vpop.f32.mrb[0].mxu0
        %3816 = vmatprep.mubr.f32.mxu0 0.0
        %v3817 = vand.u32 %v1651, 4294901760
        %3818 = vmatmul.mubr.f32.gmra.mrb[0].mxu0 %v3817
        %v3819 = vpop.f32.mrb[0].mxu0
        %v3820 = vadd.f32 %v3668, %v3819
        %v3821 = vpop.f32.mrb[0].mxu0
        %3822 = vmatprep.mubr.f32.mxu0 0.0
        %v3823 = vand.u32 %v1654, 4294901760
        %3824 = vmatmul.mubr.f32.gmra.mrb[0].mxu0 %v3823
        %v3825 = vpop.f32.mrb[0].mxu0
        %v3826 = vadd.f32 %v3674, %v3825
        %v3827 = vpop.f32.mrb[0].mxu0
        %3828 = vmatprep.mubr.f32.mxu0 0.0
        %v3829 = vand.u32 %v1657, 4294901760
        %3830 = vmatmul.mubr.f32.gmra.mrb[0].mxu0 %v3829
        %v3831 = vpop.f32.mrb[0].mxu0
        %v3832 = vadd.f32 %v3680, %v3831
        %v3833 = vpop.f32.mrb[0].mxu0
        %3834 = vmatprep.mubr.f32.mxu0 0.0
        %v3835 = vand.u32 %v1660, 4294901760
        %3836 = vmatmul.mubr.f32.gmra.mrb[0].mxu0 %v3835
        %v3837 = vpop.f32.mrb[0].mxu0
        %v3838 = vadd.f32 %v3686, %v3837
        %v3839 = vpop.f32.mrb[0].mxu0
        %3840 = vmatprep.mubr.f32.mxu0 0.0
        %v3841 = vand.u32 %v1663, 4294901760
        %3842 = vmatmul.mubr.f32.gmra.mrb[0].mxu0 %v3841
        %v3843 = vpop.f32.mrb[0].mxu0
        %v3844 = vadd.f32 %v3692, %v3843
        %v3845 = vpop.f32.mrb[0].mxu0
        %3846 = vmatprep.mubr.f32.mxu0 0.0
        %v3847 = vand.u32 %v1666, 4294901760
        %3848 = vmatmul.mubr.f32.gmra.mrb[0].mxu0 %v3847
        %v3849 = vpop.f32.mrb[0].mxu0
        %v3850 = vadd.f32 %v3698, %v3849
        %v3851 = vpop.f32.mrb[0].mxu0
        %3852 = vdwg.mxu0
        %v3853 = vsub.f32 %v2727, 1.0
        %v3854 = vsub.f32 %v2729, 1.0
        %v3855 = vsub.f32 %v3772, 1.0
        %v3856 = vsub.f32 %v2734, 1.0
        %v3857 = vsub.f32 %v2736, 1.0
        %v3858 = vsub.f32 %v3778, 1.0
        %v3859 = vsub.f32 %v2741, 1.0
        %v3860 = vsub.f32 %v2743, 1.0
        %v3861 = vsub.f32 %v3784, 1.0
        %v3862 = vsub.f32 %v2748, 1.0
        %v3863 = vsub.f32 %v2750, 1.0
        %v3864 = vsub.f32 %v3790, 1.0
        %v3865 = vsub.f32 %v2755, 1.0
        %v3866 = vsub.f32 %v2757, 1.0
        %v3867 = vsub.f32 %v3796, 1.0
        %v3868 = vsub.f32 %v2762, 1.0
        %v3869 = vsub.f32 %v2764, 1.0
        %v3870 = vsub.f32 %v3802, 1.0
        %v3871 = vsub.f32 %v2769, 1.0
        %v3872 = vsub.f32 %v2771, 1.0
        %v3873 = vsub.f32 %v3808, 1.0
        %v3874 = vsub.f32 %v2776, 1.0
        %v3875 = vsub.f32 %v2778, 1.0
        %v3876 = vsub.f32 %v3814, 1.0
        %v3877 = vsub.f32 %v2783, 1.0
        %v3878 = vsub.f32 %v2785, 1.0
        %v3879 = vsub.f32 %v3820, 1.0
        %v3880 = vsub.f32 %v2790, 1.0
        %v3881 = vsub.f32 %v2792, 1.0
        %v3882 = vsub.f32 %v3826, 1.0
        %v3883 = vsub.f32 %v2797, 1.0
        %v3884 = vsub.f32 %v2799, 1.0
        %v3885 = vsub.f32 %v3832, 1.0
        %v3886 = vsub.f32 %v2804, 1.0
        %v3887 = vsub.f32 %v2806, 1.0
        %v3888 = vsub.f32 %v3838, 1.0
        %v3889 = vsub.f32 %v2811, 1.0
        %v3890 = vsub.f32 %v2813, 1.0
        %v3891 = vsub.f32 %v3844, 1.0
        %v3892 = vsub.f32 %v2818, 1.0
        %v3893 = vsub.f32 %v2820, 1.0
        %v3894 = vsub.f32 %v3850, 1.0
        %3895 = vst [vmem:[%s163] sm:$0xff] %v3853
        %3896 = vst [vmem:[%s163 + $0x8] sm:$0xff] %v3854
        %3897 = vst [vmem:[%s163 + $0x10] sm:$0xff] %v3855
        %3898 = vst [vmem:[%s163 + $0x18] sm:$0xff] %v3856
        %3899 = vst [vmem:[%s163 + $0x20] sm:$0xff] %v3857
        %3900 = vst [vmem:[%s163 + $0x28] sm:$0xff] %v3858
        %3901 = vst [vmem:[%s163 + $0x30] sm:$0xff] %v3859
        %3902 = vst [vmem:[%s163 + $0x38] sm:$0xff] %v3860
        %3903 = vst [vmem:[%s163 + $0x40] sm:$0xff] %v3861
        %3904 = vst [vmem:[%s163 + $0x48] sm:$0xff] %v3862
        %3905 = vst [vmem:[%s163 + $0x50] sm:$0xff] %v3863
        %3906 = vst [vmem:[%s163 + $0x58] sm:$0xff] %v3864
        %3907 = vst [vmem:[%s163 + $0x60] sm:$0xff] %v3865
        %3908 = vst [vmem:[%s163 + $0x68] sm:$0xff] %v3866
        %3909 = vst [vmem:[%s163 + $0x70] sm:$0xff] %v3867
        %3910 = vst [vmem:[%s163 + $0x78] sm:$0xff] %v3868
        %3911 = vst [vmem:[%s163 + $0x80] sm:$0xff] %v3869
        %3912 = vst [vmem:[%s163 + $0x88] sm:$0xff] %v3870
        %3913 = vst [vmem:[%s163 + $0x90] sm:$0xff] %v3871
        %3914 = vst [vmem:[%s163 + $0x98] sm:$0xff] %v3872
        %3915 = vst [vmem:[%s163 + $0xa0] sm:$0xff] %v3873
        %3916 = vst [vmem:[%s163 + $0xa8] sm:$0xff] %v3874
        %3917 = vst [vmem:[%s163 + $0xb0] sm:$0xff] %v3875
        %3918 = vst [vmem:[%s163 + $0xb8] sm:$0xff] %v3876
        %3919 = vst [vmem:[%s163 + $0xc0] sm:$0xff] %v3877
        %3920 = vst [vmem:[%s163 + $0xc8] sm:$0xff] %v3878
        %3921 = vst [vmem:[%s163 + $0xd0] sm:$0xff] %v3879
        %3922 = vst [vmem:[%s163 + $0xd8] sm:$0xff] %v3880
        %3923 = vst [vmem:[%s163 + $0xe0] sm:$0xff] %v3881
        %3924 = vst [vmem:[%s163 + $0xe8] sm:$0xff] %v3882
        %3925 = vst [vmem:[%s163 + $0xf0] sm:$0xff] %v3883
        %3926 = vst [vmem:[%s163 + $0xf8] sm:$0xff] %v3884
        %3927 = vst [vmem:[%s163 + $0x100] sm:$0xff] %v3885
        %3928 = vst [vmem:[%s163 + $0x108] sm:$0xff] %v3886
        %3929 = vst [vmem:[%s163 + $0x110] sm:$0xff] %v3887
        %3930 = vst [vmem:[%s163 + $0x118] sm:$0xff] %v3888
        %3931 = vst [vmem:[%s163 + $0x120] sm:$0xff] %v3889
        %3932 = vst [vmem:[%s163 + $0x128] sm:$0xff] %v3890
        %3933 = vst [vmem:[%s163 + $0x130] sm:$0xff] %v3891
        %3934 = vst [vmem:[%s163 + $0x138] sm:$0xff] %v3892
        %3935 = vst [vmem:[%s163 + $0x140] sm:$0xff] %v3893
        %3936 = vst [vmem:[%s163 + $0x148] sm:$0xff] %v3894
        %s3937 = sand.u32 %s89, 1
        %s3938 = scalar_lea.sflag [#allocation4], %s3937
        %s3939 = sand.u32 %s89, 1
        %s3940 = smul.addr %s3939, 336
        %s3941 = scalar_lea.vmem [#allocation5], %s3940
        // Predicated region
        $region37: #{tpu_custom_call.1} parent=31 // pred_check
          %p3942 = pneg %p99
        $region38: #{tpu_custom_call.1} parent=31 // pred_check_branch
          %3944 = sbr.rel (%p3942) target = $region40
        $region39: #{tpu_custom_call.1} parent=31 // pred_region
          %s3946 = ssub.s32 5376, 5376
          %3947 = vsyncadd %s3938, %s3946
          %s3948 = smul.addr %s18, 42
          %s3949 = smul.addr %s3948, 128
          %s3950 = scalar_lea.hbm %s3, %s3949
          %s3951 = sshll.u32 %s3941, 4
          %s3952 = int_to_ptr.vmem [resolvable:$true] %s3951
          %3957 = dma.vmem_to_hbm [thread:$0]  %s3952, 5376, %s3950, %s3938, 384, 384, 24
        $region40: #{tpu_custom_call.1} parent=31 // pred_fallthru
          _
      $region32: #{tpu_custom_call.1} parent=5 // pred_fallthru
        _
      %p3958 = scmp.le.s32.totalorder 2, %s13
      // Predicated region
      $region41: #{tpu_custom_call.1} parent=5 // pred_check
        %p3959 = pneg %p3958
      $region42: #{tpu_custom_call.1} parent=5 // pred_check_branch
        %3961 = sbr.rel (%p3959) target = $region44
      $region43: #{tpu_custom_call.1} parent=5 // pred_region
        %s3962 = ssub.s32 %s13, 2
        // Predicated region
        $region45: #{tpu_custom_call.1} parent=43 // pred_check
          %p3963 = pneg %p105
        $region46: #{tpu_custom_call.1} parent=43 // pred_check_branch
          %3965 = sbr.rel (%p3963) target = $region48
        $region47: #{tpu_custom_call.1} parent=43 // pred_region
          %s3966 = sand.u32 %s90, 1
          %s3967 = scalar_lea.sflag [#allocation4], %s3966
          %s3968 = sand.u32 %s90, 1
          %s3969 = smul.addr %s3968, 336
          %s3970 = scalar_lea.vmem [#allocation5], %s3969
          %3971 = dma.done %s3967, 5376
        $region48: #{tpu_custom_call.1} parent=43 // pred_fallthru
          _
      $region44: #{tpu_custom_call.1} parent=5 // pred_fallthru
        _
    $region6: #{tpu_custom_call.1} parent=1 // loop_footer
      %s17 = sadd.s32 1, %s13
    $region7: #{tpu_custom_call.1} parent=1 // loop_footer_branch
      %12 = sbr.rel target = $region3
    $region8: #{tpu_custom_call.1} parent=1 // loop_exit
      _
    %3972 = vsyncpa [#allocation3], 1
    %s3973 = scalar_lea.sflag [#allocation3], 1
    %3974 = vsyncpa %s3973, 1
    %3975 = vsyncpa [#allocation4], 1
    %s3976 = scalar_lea.sflag [#allocation4], 1
    %3977 = vsyncpa %s3976, 1

</llo_original>
